<compile_context>
chip_gen: v7x
topology: tpu7x:2x2x1
jax: 0.10.0
libtpu: 0.0.40
codegen_flags: <defaults>
</compile_context>

<pallas_src>
import functools

import jax
import jax.numpy as jnp
from jax.experimental import pallas as pl
from jax.experimental.pallas import tpu as pltpu


# ----------------------------------------------------------------------------
# Fused ViT kernel: grid=(depth,); one grid step == one transformer block.
# ----------------------------------------------------------------------------
def _vit_kernel(patches_ref, pw_ref, rb_ref,
                ln1g_ref, ln1b_ref, wqkv_ref, bqkv_ref, wo_ref, bo_ref,
                ln2g_ref, ln2b_ref, w1_ref, b1_ref, w2_ref, b2_ref,
                fcw_ref, fcb_ref,
                out_ref, y_ref,
                *, batch, seq_pad, seq, dim, eps):
    l = pl.program_id(0)
    last = pl.num_programs(0) - 1

    # ---- layer-0 prologue: patch embedding + PE + conv bias + cls prepend ---
    @pl.when(l == 0)
    def _():
        pmat = patches_ref[...].astype(jnp.bfloat16)              # (B*Sp, K)
        tok = jnp.dot(pmat, pw_ref[...], preferred_element_type=jnp.float32)
        # rb rows per batch: [cls ; pe + conv_bias ; zero padding]
        y_ref[...] = tok + rb_ref[...]

    y = y_ref[...]                                                # (B*Sp, D) f32

    def ln(x, g, b):
        # one-pass stats: var = E[x^2] - E[x]^2  (2 XLU reductions, not 4)
        mu = jnp.mean(x, axis=-1, keepdims=True)
        m2 = jnp.mean(x * x, axis=-1, keepdims=True)
        inv = jax.lax.rsqrt(m2 - mu * mu + eps)
        return (x - mu) * inv * g + b

    # ---- attention: LN -> fused QKV -> softmax(QK^T)V -> out proj -> +res ---
    h = ln(y, ln1g_ref[0], ln1b_ref[0]).astype(jnp.bfloat16)
    qkv = jnp.dot(h, wqkv_ref[0],
                  preferred_element_type=jnp.float32) + bqkv_ref[0]
    # (B*Sp, 3D) f32; Wq already carries the 1/sqrt(D) score scale.

    key_pos = jax.lax.broadcasted_iota(jnp.int32, (seq_pad, seq_pad), 1)
    key_mask = key_pos < seq                       # mask padded key columns

    attn = []
    for b in range(batch):                         # static unroll; 8-aligned
        lo = b * seq_pad
        qb = qkv[lo:lo + seq_pad, 0 * dim:1 * dim].astype(jnp.bfloat16)
        kb = qkv[lo:lo + seq_pad, 1 * dim:2 * dim].astype(jnp.bfloat16)
        vb = qkv[lo:lo + seq_pad, 2 * dim:3 * dim].astype(jnp.bfloat16)
        # contract last dims directly (no explicit transpose).
        s = jax.lax.dot_general(qb, kb, (((1,), (1,)), ((), ())),
                                preferred_element_type=jnp.float32)
        s = jnp.where(key_mask, s, -1e30)
        m = jnp.max(s, axis=-1, keepdims=True)
        p = jnp.exp(s - m)
        p = p * pl.reciprocal(jnp.sum(p, axis=-1, keepdims=True), approx=True)
        attn.append(jnp.dot(p.astype(jnp.bfloat16), vb,
                            preferred_element_type=jnp.float32))
    a = jnp.concatenate(attn, axis=0).astype(jnp.bfloat16)        # (B*Sp, D)
    a = jnp.dot(a, wo_ref[0], preferred_element_type=jnp.float32) + bo_ref[0]
    y = y + a                                                     # residual

    # ---- MLP: LN -> Linear -> GELU -> Linear -> +res -------------------------
    h2 = ln(y, ln2g_ref[0], ln2b_ref[0]).astype(jnp.bfloat16)
    z = jnp.dot(h2, w1_ref[0], preferred_element_type=jnp.float32) + b1_ref[0]
    # TODO(synk): tanh-approx GELU; PyTorch nn.GELU default is exact erf.
    z = jax.nn.gelu(z).astype(jnp.bfloat16)
    z = jnp.dot(z, w2_ref[0], preferred_element_type=jnp.float32) + b2_ref[0]
    y = y + z
    y_ref[...] = y

    # ---- last-layer epilogue: classification head on the cls token ----------
    @pl.when(l == last)
    def _():
        cls_rows = jnp.concatenate(
            [y[b * seq_pad:b * seq_pad + 1, :] for b in range(batch)], axis=0)
        logits = jnp.dot(cls_rows.astype(jnp.bfloat16), fcw_ref[...],
                         preferred_element_type=jnp.float32) + fcb_ref[...]
        out_ref[...] = jax.nn.sigmoid(logits)


# ----------------------------------------------------------------------------
# Wrapper: patchify, padding, per-row bias, single pallas_call.
# ----------------------------------------------------------------------------
def vit_forward(x, params, *, patch):
    B, C, H, W = x.shape
    Hp, Wp = H // patch, W // patch
    S = Hp * Wp                      # patch tokens
    Sc = S + 1                       # + cls token
    Sp = ((Sc + 7) // 8) * 8         # sublane-pad the token count
    K = C * patch * patch
    D = params["patch_w"].shape[1]
    depth = params["wqkv"].shape[0]
    cls_num = params["fc_w"].shape[1]
    M = B * Sp

    # Conv2d(kernel=stride=patch, pad=0) == patchify + matmul.
    patches = (x.reshape(B, C, Hp, patch, Wp, patch)
                 .transpose(0, 2, 4, 1, 3, 5)
                 .reshape(B, S, K))
    patches = jnp.concatenate(
        [jnp.zeros((B, 1, K), patches.dtype),          # cls slot (bias-only row)
         patches,
         jnp.zeros((B, Sp - Sc, K), patches.dtype)],   # pad to multiple of 8
        axis=1).reshape(M, K)

    row_bias = jnp.concatenate(
        [params["cls"],                                # cls token (no PE, per ref)
         params["pe"] + params["patch_b"],             # PE + conv bias
         jnp.zeros((Sp - Sc, D), jnp.float32)], axis=0)
    row_bias = jnp.tile(row_bias, (B, 1))              # (B*Sp, D)

    kernel = functools.partial(_vit_kernel, batch=B, seq_pad=Sp, seq=Sc,
                               dim=D, eps=1e-5)

    per_layer3 = lambda l: (l, 0, 0)
    const2 = lambda l: (0, 0)

    operands = (patches, params["patch_w"], row_bias,
                params["ln1_g"], params["ln1_b"], params["wqkv"],
                params["bqkv"], params["wo"], params["bo"],
                params["ln2_g"], params["ln2_b"], params["w1"], params["b1"],
                params["w2"], params["b2"], params["fc_w"], params["fc_b"])

    flops = (2 * M * K * D                              # patch embed
             + depth * (2 * M * D * 3 * D               # fused QKV
                        + 4 * B * Sp * Sp * D           # QK^T and PV
                        + 2 * M * D * D                 # out proj
                        + 4 * M * D * D)                # MLP (2 x DxD)
             + 2 * B * D * cls_num)                     # head
    transcendentals = depth * (B * Sp * Sp + M * D + 2 * M) + B * cls_num
    bytes_accessed = int(sum(int(a.size) * a.dtype.itemsize for a in operands)
                         + B * cls_num * 4)

    in_specs = [
        pl.BlockSpec((M, K), const2),                   # patches (VMEM resident)
        pl.BlockSpec((K, D), const2),                   # patch embed weight
        pl.BlockSpec((M, D), const2),                   # fused cls/PE/bias rows
        pl.BlockSpec((1, 1, D), per_layer3),            # ln1_g
        pl.BlockSpec((1, 1, D), per_layer3),            # ln1_b
        pl.BlockSpec((1, D, 3 * D), per_layer3),        # wqkv (Wq pre-scaled)
        pl.BlockSpec((1, 1, 3 * D), per_layer3),        # bqkv
        pl.BlockSpec((1, D, D), per_layer3),            # wo
        pl.BlockSpec((1, 1, D), per_layer3),            # bo
        pl.BlockSpec((1, 1, D), per_layer3),            # ln2_g
        pl.BlockSpec((1, 1, D), per_layer3),            # ln2_b
        pl.BlockSpec((1, D, D), per_layer3),            # w1
        pl.BlockSpec((1, 1, D), per_layer3),            # b1
        pl.BlockSpec((1, D, D), per_layer3),            # w2
        pl.BlockSpec((1, 1, D), per_layer3),            # b2
        pl.BlockSpec((D, cls_num), const2),             # fc_w
        pl.BlockSpec((1, cls_num), const2),             # fc_b
    ]

    return pl.pallas_call(
        kernel,
        out_shape=jax.ShapeDtypeStruct((B, cls_num), jnp.float32),
        grid=(depth,),
        in_specs=in_specs,
        out_specs=pl.BlockSpec((B, cls_num), const2),
        scratch_shapes=[pltpu.VMEM((M, D), jnp.float32)],   # residual stream
        compiler_params=pltpu.CompilerParams(
            dimension_semantics=("arbitrary",)),            # depth is sequential
        cost_estimate=pl.CostEstimate(flops=flops,
                                      transcendentals=transcendentals,
                                      bytes_accessed=bytes_accessed),
    )(*operands)


# ----------------------------------------------------------------------------
# Parameters (weights stacked over depth; Wq pre-scaled by 1/sqrt(D)).
# ----------------------------------------------------------------------------
def sinusoidal_pe(seq_len, dim):
    # TODO(synk): `pose_embed` is undefined in the reference; a standard
    # sinusoidal embedding over the S patch positions is assumed.
    pos = jnp.arange(seq_len, dtype=jnp.float32)[:, None]
    i = jnp.arange(0, dim, 2, dtype=jnp.float32)[None, :]
    div = jnp.exp(-jnp.log(10000.0) * i / dim)
    pe = jnp.zeros((seq_len, dim), jnp.float32)
    pe = pe.at[:, 0::2].set(jnp.sin(pos * div))
    pe = pe.at[:, 1::2].set(jnp.cos(pos * div))
    return pe


def init_params(key, dim_in, dim_hid, cls_num, patch, depth, seq_len):
    D = dim_hid
    K = dim_in * patch * patch
    ks = iter(jax.random.split(key, 10))
    nrm = lambda k, s, sc=0.02: sc * jax.random.normal(k, s, dtype=jnp.float32)

    wqkv = nrm(next(ks), (depth, D, 3 * D))
    # Fold the attention 1/sqrt(D) score scale into Wq (one-time weight
    # transform; bq would be scaled identically but is zero-initialized).
    wqkv = wqkv.at[:, :, :D].multiply(1.0 / float(D) ** 0.5)

    # TODO(synk): reference `Transformer` is not provided; single-head
    # attention + MLP hidden = dim_hid assumed; dropout is identity (eval).
    return {
        "patch_w": nrm(next(ks), (K, D), 0.1).astype(jnp.bfloat16),
        "patch_b": 0.1 * jax.random.normal(next(ks), (1, D), dtype=jnp.float32),
        "pe": sinusoidal_pe(seq_len, D),
        "cls": jax.random.normal(next(ks), (1, D), dtype=jnp.float32),
        "fc_w": nrm(next(ks), (D, cls_num)).astype(jnp.bfloat16),
        "fc_b": jnp.zeros((1, cls_num), jnp.float32),
        "ln1_g": jnp.ones((depth, 1, D), jnp.float32),
        "ln1_b": jnp.zeros((depth, 1, D), jnp.float32),
        "wqkv": wqkv.astype(jnp.bfloat16),
        "bqkv": jnp.zeros((depth, 1, 3 * D), jnp.float32),
        "wo": nrm(next(ks), (depth, D, D)).astype(jnp.bfloat16),
        "bo": jnp.zeros((depth, 1, D), jnp.float32),
        "ln2_g": jnp.ones((depth, 1, D), jnp.float32),
        "ln2_b": jnp.zeros((depth, 1, D), jnp.float32),
        "w1": nrm(next(ks), (depth, D, D)).astype(jnp.bfloat16),
        "b1": jnp.zeros((depth, 1, D), jnp.float32),
        "w2": nrm(next(ks), (depth, D, D)).astype(jnp.bfloat16),
        "b2": jnp.zeros((depth, 1, D), jnp.float32),
    }


if __name__ == "__main__":
    # Module defaults: dim_in=3, dim_hid=256, cls_num=10, patch=stride=2,
    # depth=4.  H=W=16 -> 64 patch tokens + cls (padded to 72 in-kernel).
    B, C, H, W = 2, 3, 16, 16
    DIM_HID, CLS_NUM, PATCH, DEPTH = 256, 10, 2, 4
    S = (H // PATCH) * (W // PATCH)

    key = jax.random.PRNGKey(0)
    kx, kp = jax.random.split(key)
    x = jax.random.normal(kx, (B, C, H, W), dtype=jnp.float32)
    params = init_params(kp, C, DIM_HID, CLS_NUM, PATCH, DEPTH, S)

    fwd = jax.jit(functools.partial(vit_forward, patch=PATCH))
    out = jax.block_until_ready(fwd(x, params))

    assert out.shape == (B, CLS_NUM)
    assert bool(jnp.all(jnp.isfinite(out)))
    print("KERNEL_OK")
</pallas_src>

<mosaic_0001>
module attributes {stable_mosaic.version = 11 : i64} {
  func.func @_vit_kernel(%arg0: i32, %arg1: memref<144x12xf32, #tpu.memory_space<vmem>>, %arg2: memref<12x256xbf16, #tpu.memory_space<vmem>>, %arg3: memref<144x256xf32, #tpu.memory_space<vmem>>, %arg4: memref<1x1x256xf32, #tpu.memory_space<vmem>>, %arg5: memref<1x1x256xf32, #tpu.memory_space<vmem>>, %arg6: memref<1x256x768xbf16, #tpu.memory_space<vmem>>, %arg7: memref<1x1x768xf32, #tpu.memory_space<vmem>>, %arg8: memref<1x256x256xbf16, #tpu.memory_space<vmem>>, %arg9: memref<1x1x256xf32, #tpu.memory_space<vmem>>, %arg10: memref<1x1x256xf32, #tpu.memory_space<vmem>>, %arg11: memref<1x1x256xf32, #tpu.memory_space<vmem>>, %arg12: memref<1x256x256xbf16, #tpu.memory_space<vmem>>, %arg13: memref<1x1x256xf32, #tpu.memory_space<vmem>>, %arg14: memref<1x256x256xbf16, #tpu.memory_space<vmem>>, %arg15: memref<1x1x256xf32, #tpu.memory_space<vmem>>, %arg16: memref<256x10xbf16, #tpu.memory_space<vmem>>, %arg17: memref<1x10xf32, #tpu.memory_space<vmem>>, %arg18: memref<2x10xf32, #tpu.memory_space<vmem>>, %arg19: memref<144x256xf32, #tpu.memory_space<vmem>>) attributes {dimension_semantics = [#tpu.dimension_semantics<arbitrary>], iteration_bounds = array<i64: 4>, scalar_prefetch = 0 : i64, scratch_operands = 1 : i64, tpu.core_type = #tpu.core_type<tc>, window_params = [{pipeline_mode = #tpu.pipeline_mode<synchronous>, transform_indices = @transform_0, window_bounds = array<i64: 144, 12>}, {pipeline_mode = #tpu.pipeline_mode<synchronous>, transform_indices = @transform_1, window_bounds = array<i64: 12, 256>}, {pipeline_mode = #tpu.pipeline_mode<synchronous>, transform_indices = @transform_2, window_bounds = array<i64: 144, 256>}, {transform_indices = @transform_3, window_bounds = array<i64: 1, 1, 256>}, {transform_indices = @transform_4, window_bounds = array<i64: 1, 1, 256>}, {transform_indices = @transform_5, window_bounds = array<i64: 1, 256, 768>}, {transform_indices = @transform_6, window_bounds = array<i64: 1, 1, 768>}, {transform_indices = @transform_7, window_bounds = array<i64: 1, 256, 256>}, {transform_indices = @transform_8, window_bounds = array<i64: 1, 1, 256>}, {transform_indices = @transform_9, window_bounds = array<i64: 1, 1, 256>}, {transform_indices = @transform_10, window_bounds = array<i64: 1, 1, 256>}, {transform_indices = @transform_11, window_bounds = array<i64: 1, 256, 256>}, {transform_indices = @transform_12, window_bounds = array<i64: 1, 1, 256>}, {transform_indices = @transform_13, window_bounds = array<i64: 1, 256, 256>}, {transform_indices = @transform_14, window_bounds = array<i64: 1, 1, 256>}, {pipeline_mode = #tpu.pipeline_mode<synchronous>, transform_indices = @transform_15, window_bounds = array<i64: 256, 10>}, {pipeline_mode = #tpu.pipeline_mode<synchronous>, transform_indices = @transform_16, window_bounds = array<i64: 1, 10>}, {pipeline_mode = #tpu.pipeline_mode<synchronous>, transform_indices = @transform_17, window_bounds = array<i64: 2, 10>}]} {
    %c0_i32 = arith.constant 0 : i32
    %0 = arith.cmpi eq, %arg0, %c0_i32 : i32
    %1 = arith.extui %0 : i1 to i32
    %c0_i32_0 = arith.constant 0 : i32
    %2 = arith.cmpi ne, %1, %c0_i32_0 : i32
    scf.if %2 {
      %c0_68 = arith.constant 0 : index
      %c0_69 = arith.constant 0 : index
      %153 = vector.load %arg1[%c0_68, %c0_69] : memref<144x12xf32, #tpu.memory_space<vmem>>, vector<144x12xf32>
      %154 = arith.truncf %153 : vector<144x12xf32> to vector<144x12xbf16>
      %c0_70 = arith.constant 0 : index
      %c0_71 = arith.constant 0 : index
      %155 = vector.load %arg2[%c0_70, %c0_71] : memref<12x256xbf16, #tpu.memory_space<vmem>>, vector<12x256xbf16>
      %cst_72 = arith.constant dense<0.000000e+00> : vector<144x256xf32>
      %156 = tpu.matmul %154, %155, %cst_72 {dimension_numbers = #tpu.dot_dimension_numbers<[1], [0], [0], [1], [0, 0, 1, 1], [], []>} : vector<144x12xbf16>, vector<12x256xbf16>, vector<144x256xf32> -> vector<144x256xf32>
      %c0_73 = arith.constant 0 : index
      %c0_74 = arith.constant 0 : index
      %157 = vector.load %arg3[%c0_73, %c0_74] : memref<144x256xf32, #tpu.memory_space<vmem>>, vector<144x256xf32>
      %158 = arith.addf %156, %157 : vector<144x256xf32>
      %c0_75 = arith.constant 0 : index
      %c0_76 = arith.constant 0 : index
      %159 = vector.load %arg19[%c0_75, %c0_76] : memref<144x256xf32, #tpu.memory_space<vmem>>, vector<144x256xf32>
      tpu.vector_store %arg19[%c0_75, %c0_76], %158 {strides = array<i32>} : memref<144x256xf32, #tpu.memory_space<vmem>>, vector<144x256xf32>,
    } else {
    }
    %c0 = arith.constant 0 : index
    %c0_1 = arith.constant 0 : index
    %3 = vector.load %arg19[%c0, %c0_1] : memref<144x256xf32, #tpu.memory_space<vmem>>, vector<144x256xf32>
    %c0_2 = arith.constant 0 : index
    %c0_3 = arith.constant 0 : index
    %c0_4 = arith.constant 0 : index
    %4 = vector.load %arg4[%c0_2, %c0_3, %c0_4] : memref<1x1x256xf32, #tpu.memory_space<vmem>>, vector<1x1x256xf32>
    %5 = vector.shape_cast %4 : vector<1x1x256xf32> to vector<1x256xf32>
    %c0_5 = arith.constant 0 : index
    %c0_6 = arith.constant 0 : index
    %c0_7 = arith.constant 0 : index
    %6 = vector.load %arg5[%c0_5, %c0_6, %c0_7] : memref<1x1x256xf32, #tpu.memory_space<vmem>>, vector<1x1x256xf32>
    %7 = vector.shape_cast %6 : vector<1x1x256xf32> to vector<1x256xf32>
    %cst = arith.constant dense<0.000000e+00> : vector<144xf32>
    %8 = vector.multi_reduction <add>, %3, %cst [1] : vector<144x256xf32> to vector<144xf32>
    %9 = vector.shape_cast %8 : vector<144xf32> to vector<144x1xf32>
    %cst_8 = arith.constant 2.560000e+02 : f32
    %10 = vector.broadcast %cst_8 : f32 to vector<144x1xf32>
    %11 = arith.divf %9, %10 : vector<144x1xf32>
    %12 = arith.mulf %3, %3 : vector<144x256xf32>
    %cst_9 = arith.constant dense<0.000000e+00> : vector<144xf32>
    %13 = vector.multi_reduction <add>, %12, %cst_9 [1] : vector<144x256xf32> to vector<144xf32>
    %14 = vector.shape_cast %13 : vector<144xf32> to vector<144x1xf32>
    %cst_10 = arith.constant 2.560000e+02 : f32
    %15 = vector.broadcast %cst_10 : f32 to vector<144x1xf32>
    %16 = arith.divf %14, %15 : vector<144x1xf32>
    %17 = arith.mulf %11, %11 : vector<144x1xf32>
    %18 = arith.subf %16, %17 : vector<144x1xf32>
    %cst_11 = arith.constant 9.99999974E-6 : f32
    %19 = vector.broadcast %cst_11 : f32 to vector<144x1xf32>
    %20 = arith.addf %18, %19 : vector<144x1xf32>
    %21 = math.rsqrt %20 : vector<144x1xf32>
    %22 = vector.broadcast %11 : vector<144x1xf32> to vector<144x256xf32>
    %23 = arith.subf %3, %22 : vector<144x256xf32>
    %24 = vector.broadcast %21 : vector<144x1xf32> to vector<144x256xf32>
    %25 = arith.mulf %23, %24 : vector<144x256xf32>
    %26 = vector.broadcast %5 : vector<1x256xf32> to vector<144x256xf32>
    %27 = arith.mulf %25, %26 : vector<144x256xf32>
    %28 = vector.broadcast %7 : vector<1x256xf32> to vector<144x256xf32>
    %29 = arith.addf %27, %28 : vector<144x256xf32>
    %30 = arith.truncf %29 : vector<144x256xf32> to vector<144x256xbf16>
    %c0_12 = arith.constant 0 : index
    %c0_13 = arith.constant 0 : index
    %c0_14 = arith.constant 0 : index
    %31 = vector.load %arg6[%c0_12, %c0_13, %c0_14] : memref<1x256x768xbf16, #tpu.memory_space<vmem>>, vector<1x256x768xbf16>
    %32 = vector.shape_cast %31 : vector<1x256x768xbf16> to vector<256x768xbf16>
    %cst_15 = arith.constant dense<0.000000e+00> : vector<144x768xf32>
    %33 = tpu.matmul %30, %32, %cst_15 {dimension_numbers = #tpu.dot_dimension_numbers<[1], [0], [0], [1], [0, 0, 1, 1], [], []>} : vector<144x256xbf16>, vector<256x768xbf16>, vector<144x768xf32> -> vector<144x768xf32>
    %c0_16 = arith.constant 0 : index
    %c0_17 = arith.constant 0 : index
    %c0_18 = arith.constant 0 : index
    %34 = vector.load %arg7[%c0_16, %c0_17, %c0_18] : memref<1x1x768xf32, #tpu.memory_space<vmem>>, vector<1x1x768xf32>
    %35 = vector.shape_cast %34 : vector<1x1x768xf32> to vector<1x768xf32>
    %36 = vector.broadcast %35 : vector<1x768xf32> to vector<144x768xf32>
    %37 = arith.addf %33, %36 : vector<144x768xf32>
    %38 = tpu.iota {dimensions = array<i32: 1>} : vector<72x72xi32>
    %c65_i32 = arith.constant 65 : i32
    %39 = vector.broadcast %c65_i32 : i32 to vector<72x72xi32>
    %40 = arith.cmpi slt, %38, %39 : vector<72x72xi32>
    %41 = vector.extract_strided_slice %37 {offsets = [0, 0], sizes = [72, 256], strides = [1, 1]} : vector<144x768xf32> to vector<72x256xf32>
    %42 = arith.truncf %41 : vector<72x256xf32> to vector<72x256xbf16>
    %43 = vector.extract_strided_slice %37 {offsets = [0, 256], sizes = [72, 256], strides = [1, 1]} : vector<144x768xf32> to vector<72x256xf32>
    %44 = arith.truncf %43 : vector<72x256xf32> to vector<72x256xbf16>
    %45 = vector.extract_strided_slice %37 {offsets = [0, 512], sizes = [72, 256], strides = [1, 1]} : vector<144x768xf32> to vector<72x256xf32>
    %46 = arith.truncf %45 : vector<72x256xf32> to vector<72x256xbf16>
    %cst_19 = arith.constant dense<0.000000e+00> : vector<72x72xf32>
    %47 = tpu.matmul %42, %44, %cst_19 {dimension_numbers = #tpu.dot_dimension_numbers<[1], [1], [0], [0], [0, 0, 1, 0], [], []>} : vector<72x256xbf16>, vector<72x256xbf16>, vector<72x72xf32> -> vector<72x72xf32>
    %cst_20 = arith.constant -1.000000e+30 : f32
    %48 = vector.broadcast %cst_20 : f32 to vector<72x72xf32>
    %49 = arith.select %40, %47, %48 : vector<72x72xi1>, vector<72x72xf32>
    %cst_21 = arith.constant dense<0xFF800000> : vector<72xf32>
    %50 = vector.multi_reduction <maximumf>, %49, %cst_21 [1] : vector<72x72xf32> to vector<72xf32>
    %51 = vector.shape_cast %50 : vector<72xf32> to vector<72x1xf32>
    %52 = vector.broadcast %51 : vector<72x1xf32> to vector<72x72xf32>
    %53 = arith.subf %49, %52 : vector<72x72xf32>
    %54 = math.exp %53 : vector<72x72xf32>
    %cst_22 = arith.constant dense<0.000000e+00> : vector<72xf32>
    %55 = vector.multi_reduction <add>, %54, %cst_22 [1] : vector<72x72xf32> to vector<72xf32>
    %56 = vector.shape_cast %55 : vector<72xf32> to vector<72x1xf32>
    %57 = tpu.reciprocal %56 {approx = true} : vector<72x1xf32> -> vector<72x1xf32>
    %58 = vector.broadcast %57 : vector<72x1xf32> to vector<72x72xf32>
    %59 = arith.mulf %54, %58 : vector<72x72xf32>
    %60 = arith.truncf %59 : vector<72x72xf32> to vector<72x72xbf16>
    %cst_23 = arith.constant dense<0.000000e+00> : vector<72x256xf32>
    %61 = tpu.matmul %60, %46, %cst_23 {dimension_numbers = #tpu.dot_dimension_numbers<[1], [0], [0], [1], [0, 0, 1, 1], [], []>} : vector<72x72xbf16>, vector<72x256xbf16>, vector<72x256xf32> -> vector<72x256xf32>
    %62 = vector.extract_strided_slice %37 {offsets = [72, 0], sizes = [72, 256], strides = [1, 1]} : vector<144x768xf32> to vector<72x256xf32>
    %63 = arith.truncf %62 : vector<72x256xf32> to vector<72x256xbf16>
    %64 = vector.extract_strided_slice %37 {offsets = [72, 256], sizes = [72, 256], strides = [1, 1]} : vector<144x768xf32> to vector<72x256xf32>
    %65 = arith.truncf %64 : vector<72x256xf32> to vector<72x256xbf16>
    %66 = vector.extract_strided_slice %37 {offsets = [72, 512], sizes = [72, 256], strides = [1, 1]} : vector<144x768xf32> to vector<72x256xf32>
    %67 = arith.truncf %66 : vector<72x256xf32> to vector<72x256xbf16>
    %cst_24 = arith.constant dense<0.000000e+00> : vector<72x72xf32>
    %68 = tpu.matmul %63, %65, %cst_24 {dimension_numbers = #tpu.dot_dimension_numbers<[1], [1], [0], [0], [0, 0, 1, 0], [], []>} : vector<72x256xbf16>, vector<72x256xbf16>, vector<72x72xf32> -> vector<72x72xf32>
    %cst_25 = arith.constant -1.000000e+30 : f32
    %69 = vector.broadcast %cst_25 : f32 to vector<72x72xf32>
    %70 = arith.select %40, %68, %69 : vector<72x72xi1>, vector<72x72xf32>
    %cst_26 = arith.constant dense<0xFF800000> : vector<72xf32>
    %71 = vector.multi_reduction <maximumf>, %70, %cst_26 [1] : vector<72x72xf32> to vector<72xf32>
    %72 = vector.shape_cast %71 : vector<72xf32> to vector<72x1xf32>
    %73 = vector.broadcast %72 : vector<72x1xf32> to vector<72x72xf32>
    %74 = arith.subf %70, %73 : vector<72x72xf32>
    %75 = math.exp %74 : vector<72x72xf32>
    %cst_27 = arith.constant dense<0.000000e+00> : vector<72xf32>
    %76 = vector.multi_reduction <add>, %75, %cst_27 [1] : vector<72x72xf32> to vector<72xf32>
    %77 = vector.shape_cast %76 : vector<72xf32> to vector<72x1xf32>
    %78 = tpu.reciprocal %77 {approx = true} : vector<72x1xf32> -> vector<72x1xf32>
    %79 = vector.broadcast %78 : vector<72x1xf32> to vector<72x72xf32>
    %80 = arith.mulf %75, %79 : vector<72x72xf32>
    %81 = arith.truncf %80 : vector<72x72xf32> to vector<72x72xbf16>
    %cst_28 = arith.constant dense<0.000000e+00> : vector<72x256xf32>
    %82 = tpu.matmul %81, %67, %cst_28 {dimension_numbers = #tpu.dot_dimension_numbers<[1], [0], [0], [1], [0, 0, 1, 1], [], []>} : vector<72x72xbf16>, vector<72x256xbf16>, vector<72x256xf32> -> vector<72x256xf32>
    %83 = tpu.concatenate %61, %82 in 0 : vector<72x256xf32>, vector<72x256xf32> -> vector<144x256xf32>
    %84 = arith.truncf %83 : vector<144x256xf32> to vector<144x256xbf16>
    %c0_29 = arith.constant 0 : index
    %c0_30 = arith.constant 0 : index
    %c0_31 = arith.constant 0 : index
    %85 = vector.load %arg8[%c0_29, %c0_30, %c0_31] : memref<1x256x256xbf16, #tpu.memory_space<vmem>>, vector<1x256x256xbf16>
    %86 = vector.shape_cast %85 : vector<1x256x256xbf16> to vector<256x256xbf16>
    %cst_32 = arith.constant dense<0.000000e+00> : vector<144x256xf32>
    %87 = tpu.matmul %84, %86, %cst_32 {dimension_numbers = #tpu.dot_dimension_numbers<[1], [0], [0], [1], [0, 0, 1, 1], [], []>} : vector<144x256xbf16>, vector<256x256xbf16>, vector<144x256xf32> -> vector<144x256xf32>
    %c0_33 = arith.constant 0 : index
    %c0_34 = arith.constant 0 : index
    %c0_35 = arith.constant 0 : index
    %88 = vector.load %arg9[%c0_33, %c0_34, %c0_35] : memref<1x1x256xf32, #tpu.memory_space<vmem>>, vector<1x1x256xf32>
    %89 = vector.shape_cast %88 : vector<1x1x256xf32> to vector<1x256xf32>
    %90 = vector.broadcast %89 : vector<1x256xf32> to vector<144x256xf32>
    %91 = arith.addf %87, %90 : vector<144x256xf32>
    %92 = arith.addf %3, %91 : vector<144x256xf32>
    %c0_36 = arith.constant 0 : index
    %c0_37 = arith.constant 0 : index
    %c0_38 = arith.constant 0 : index
    %93 = vector.load %arg10[%c0_36, %c0_37, %c0_38] : memref<1x1x256xf32, #tpu.memory_space<vmem>>, vector<1x1x256xf32>
    %94 = vector.shape_cast %93 : vector<1x1x256xf32> to vector<1x256xf32>
    %c0_39 = arith.constant 0 : index
    %c0_40 = arith.constant 0 : index
    %c0_41 = arith.constant 0 : index
    %95 = vector.load %arg11[%c0_39, %c0_40, %c0_41] : memref<1x1x256xf32, #tpu.memory_space<vmem>>, vector<1x1x256xf32>
    %96 = vector.shape_cast %95 : vector<1x1x256xf32> to vector<1x256xf32>
    %cst_42 = arith.constant dense<0.000000e+00> : vector<144xf32>
    %97 = vector.multi_reduction <add>, %92, %cst_42 [1] : vector<144x256xf32> to vector<144xf32>
    %98 = vector.shape_cast %97 : vector<144xf32> to vector<144x1xf32>
    %cst_43 = arith.constant 2.560000e+02 : f32
    %99 = vector.broadcast %cst_43 : f32 to vector<144x1xf32>
    %100 = arith.divf %98, %99 : vector<144x1xf32>
    %101 = arith.mulf %92, %92 : vector<144x256xf32>
    %cst_44 = arith.constant dense<0.000000e+00> : vector<144xf32>
    %102 = vector.multi_reduction <add>, %101, %cst_44 [1] : vector<144x256xf32> to vector<144xf32>
    %103 = vector.shape_cast %102 : vector<144xf32> to vector<144x1xf32>
    %cst_45 = arith.constant 2.560000e+02 : f32
    %104 = vector.broadcast %cst_45 : f32 to vector<144x1xf32>
    %105 = arith.divf %103, %104 : vector<144x1xf32>
    %106 = arith.mulf %100, %100 : vector<144x1xf32>
    %107 = arith.subf %105, %106 : vector<144x1xf32>
    %cst_46 = arith.constant 9.99999974E-6 : f32
    %108 = vector.broadcast %cst_46 : f32 to vector<144x1xf32>
    %109 = arith.addf %107, %108 : vector<144x1xf32>
    %110 = math.rsqrt %109 : vector<144x1xf32>
    %111 = vector.broadcast %100 : vector<144x1xf32> to vector<144x256xf32>
    %112 = arith.subf %92, %111 : vector<144x256xf32>
    %113 = vector.broadcast %110 : vector<144x1xf32> to vector<144x256xf32>
    %114 = arith.mulf %112, %113 : vector<144x256xf32>
    %115 = vector.broadcast %94 : vector<1x256xf32> to vector<144x256xf32>
    %116 = arith.mulf %114, %115 : vector<144x256xf32>
    %117 = vector.broadcast %96 : vector<1x256xf32> to vector<144x256xf32>
    %118 = arith.addf %116, %117 : vector<144x256xf32>
    %119 = arith.truncf %118 : vector<144x256xf32> to vector<144x256xbf16>
    %c0_47 = arith.constant 0 : index
    %c0_48 = arith.constant 0 : index
    %c0_49 = arith.constant 0 : index
    %120 = vector.load %arg12[%c0_47, %c0_48, %c0_49] : memref<1x256x256xbf16, #tpu.memory_space<vmem>>, vector<1x256x256xbf16>
    %121 = vector.shape_cast %120 : vector<1x256x256xbf16> to vector<256x256xbf16>
    %cst_50 = arith.constant dense<0.000000e+00> : vector<144x256xf32>
    %122 = tpu.matmul %119, %121, %cst_50 {dimension_numbers = #tpu.dot_dimension_numbers<[1], [0], [0], [1], [0, 0, 1, 1], [], []>} : vector<144x256xbf16>, vector<256x256xbf16>, vector<144x256xf32> -> vector<144x256xf32>
    %c0_51 = arith.constant 0 : index
    %c0_52 = arith.constant 0 : index
    %c0_53 = arith.constant 0 : index
    %123 = vector.load %arg13[%c0_51, %c0_52, %c0_53] : memref<1x1x256xf32, #tpu.memory_space<vmem>>, vector<1x1x256xf32>
    %124 = vector.shape_cast %123 : vector<1x1x256xf32> to vector<1x256xf32>
    %125 = vector.broadcast %124 : vector<1x256xf32> to vector<144x256xf32>
    %126 = arith.addf %122, %125 : vector<144x256xf32>
    %127 = arith.mulf %126, %126 : vector<144x256xf32>
    %128 = arith.mulf %126, %127 : vector<144x256xf32>
    %cst_54 = arith.constant 4.471500e-02 : f32
    %129 = vector.broadcast %cst_54 : f32 to vector<144x256xf32>
    %130 = arith.mulf %129, %128 : vector<144x256xf32>
    %131 = arith.addf %126, %130 : vector<144x256xf32>
    %cst_55 = arith.constant 0.797884583 : f32
    %132 = vector.broadcast %cst_55 : f32 to vector<144x256xf32>
    %133 = arith.mulf %132, %131 : vector<144x256xf32>
    %134 = math.tanh %133 : vector<144x256xf32>
    %cst_56 = arith.constant 1.000000e+00 : f32
    %135 = vector.broadcast %cst_56 : f32 to vector<144x256xf32>
    %136 = arith.addf %135, %134 : vector<144x256xf32>
    %cst_57 = arith.constant 5.000000e-01 : f32
    %137 = vector.broadcast %cst_57 : f32 to vector<144x256xf32>
    %138 = arith.mulf %137, %136 : vector<144x256xf32>
    %139 = arith.mulf %126, %138 : vector<144x256xf32>
    %140 = arith.truncf %139 : vector<144x256xf32> to vector<144x256xbf16>
    %c0_58 = arith.constant 0 : index
    %c0_59 = arith.constant 0 : index
    %c0_60 = arith.constant 0 : index
    %141 = vector.load %arg14[%c0_58, %c0_59, %c0_60] : memref<1x256x256xbf16, #tpu.memory_space<vmem>>, vector<1x256x256xbf16>
    %142 = vector.shape_cast %141 : vector<1x256x256xbf16> to vector<256x256xbf16>
    %cst_61 = arith.constant dense<0.000000e+00> : vector<144x256xf32>
    %143 = tpu.matmul %140, %142, %cst_61 {dimension_numbers = #tpu.dot_dimension_numbers<[1], [0], [0], [1], [0, 0, 1, 1], [], []>} : vector<144x256xbf16>, vector<256x256xbf16>, vector<144x256xf32> -> vector<144x256xf32>
    %c0_62 = arith.constant 0 : index
    %c0_63 = arith.constant 0 : index
    %c0_64 = arith.constant 0 : index
    %144 = vector.load %arg15[%c0_62, %c0_63, %c0_64] : memref<1x1x256xf32, #tpu.memory_space<vmem>>, vector<1x1x256xf32>
    %145 = vector.shape_cast %144 : vector<1x1x256xf32> to vector<1x256xf32>
    %146 = vector.broadcast %145 : vector<1x256xf32> to vector<144x256xf32>
    %147 = arith.addf %143, %146 : vector<144x256xf32>
    %148 = arith.addf %92, %147 : vector<144x256xf32>
    %c0_65 = arith.constant 0 : index
    %c0_66 = arith.constant 0 : index
    %149 = vector.load %arg19[%c0_65, %c0_66] : memref<144x256xf32, #tpu.memory_space<vmem>>, vector<144x256xf32>
    tpu.vector_store %arg19[%c0_65, %c0_66], %148 {strides = array<i32>} : memref<144x256xf32, #tpu.memory_space<vmem>>, vector<144x256xf32>,
    %c3_i32 = arith.constant 3 : i32
    %150 = arith.cmpi eq, %arg0, %c3_i32 : i32
    %151 = arith.extui %150 : i1 to i32
    %c0_i32_67 = arith.constant 0 : i32
    %152 = arith.cmpi ne, %151, %c0_i32_67 : i32
    scf.if %152 {
      %153 = vector.extract_strided_slice %148 {offsets = [0, 0], sizes = [1, 256], strides = [1, 1]} : vector<144x256xf32> to vector<1x256xf32>
      %154 = vector.extract_strided_slice %148 {offsets = [72, 0], sizes = [1, 256], strides = [1, 1]} : vector<144x256xf32> to vector<1x256xf32>
      %155 = tpu.concatenate %153, %154 in 0 : vector<1x256xf32>, vector<1x256xf32> -> vector<2x256xf32>
      %156 = arith.truncf %155 : vector<2x256xf32> to vector<2x256xbf16>
      %c0_68 = arith.constant 0 : index
      %c0_69 = arith.constant 0 : index
      %157 = vector.load %arg16[%c0_68, %c0_69] : memref<256x10xbf16, #tpu.memory_space<vmem>>, vector<256x10xbf16>
      %cst_70 = arith.constant dense<0.000000e+00> : vector<2x10xf32>
      %158 = tpu.matmul %156, %157, %cst_70 {dimension_numbers = #tpu.dot_dimension_numbers<[1], [0], [0], [1], [0, 0, 1, 1], [], []>} : vector<2x256xbf16>, vector<256x10xbf16>, vector<2x10xf32> -> vector<2x10xf32>
      %c0_71 = arith.constant 0 : index
      %c0_72 = arith.constant 0 : index
      %159 = vector.load %arg17[%c0_71, %c0_72] : memref<1x10xf32, #tpu.memory_space<vmem>>, vector<1x10xf32>
      %160 = vector.broadcast %159 : vector<1x10xf32> to vector<2x10xf32>
      %161 = arith.addf %158, %160 : vector<2x10xf32>
      %162 = arith.negf %161 : vector<2x10xf32>
      %163 = math.exp %162 : vector<2x10xf32>
      %cst_73 = arith.constant 1.000000e+00 : f32
      %164 = vector.broadcast %cst_73 : f32 to vector<2x10xf32>
      %165 = arith.addf %164, %163 : vector<2x10xf32>
      %166 = arith.divf %164, %165 : vector<2x10xf32>
      %c0_74 = arith.constant 0 : index
      %c0_75 = arith.constant 0 : index
      %167 = vector.load %arg18[%c0_74, %c0_75] : memref<2x10xf32, #tpu.memory_space<vmem>>, vector<2x10xf32>
      tpu.vector_store %arg18[%c0_74, %c0_75], %166 {strides = array<i32>} : memref<2x10xf32, #tpu.memory_space<vmem>>, vector<2x10xf32>,
    } else {
    }
    return
  }
  func.func @transform_0(%arg0: i32) -> (i32, i32) {
    %c0_i32 = arith.constant 0 : i32
    %c0_i32_0 = arith.constant 0 : i32
    %c0_i32_1 = arith.constant 0 : i32
    return %c0_i32, %c0_i32_0 : i32, i32
  }
  func.func @transform_1(%arg0: i32) -> (i32, i32) {
    %c0_i32 = arith.constant 0 : i32
    %c0_i32_0 = arith.constant 0 : i32
    %c0_i32_1 = arith.constant 0 : i32
    return %c0_i32, %c0_i32_0 : i32, i32
  }
  func.func @transform_2(%arg0: i32) -> (i32, i32) {
    %c0_i32 = arith.constant 0 : i32
    %c0_i32_0 = arith.constant 0 : i32
    %c0_i32_1 = arith.constant 0 : i32
    return %c0_i32, %c0_i32_0 : i32, i32
  }
  func.func @transform_3(%arg0: i32) -> (i32, i32, i32) {
    %c0_i32 = arith.constant 0 : i32
    %c0_i32_0 = arith.constant 0 : i32
    %c0_i32_1 = arith.constant 0 : i32
    return %arg0, %c0_i32, %c0_i32_0 : i32, i32, i32
  }
  func.func @transform_4(%arg0: i32) -> (i32, i32, i32) {
    %c0_i32 = arith.constant 0 : i32
    %c0_i32_0 = arith.constant 0 : i32
    %c0_i32_1 = arith.constant 0 : i32
    return %arg0, %c0_i32, %c0_i32_0 : i32, i32, i32
  }
  func.func @transform_5(%arg0: i32) -> (i32, i32, i32) {
    %c0_i32 = arith.constant 0 : i32
    %c0_i32_0 = arith.constant 0 : i32
    %c0_i32_1 = arith.constant 0 : i32
    return %arg0, %c0_i32, %c0_i32_0 : i32, i32, i32
  }
  func.func @transform_6(%arg0: i32) -> (i32, i32, i32) {
    %c0_i32 = arith.constant 0 : i32
    %c0_i32_0 = arith.constant 0 : i32
    %c0_i32_1 = arith.constant 0 : i32
    return %arg0, %c0_i32, %c0_i32_0 : i32, i32, i32
  }
  func.func @transform_7(%arg0: i32) -> (i32, i32, i32) {
    %c0_i32 = arith.constant 0 : i32
    %c0_i32_0 = arith.constant 0 : i32
    %c0_i32_1 = arith.constant 0 : i32
    return %arg0, %c0_i32, %c0_i32_0 : i32, i32, i32
  }
  func.func @transform_8(%arg0: i32) -> (i32, i32, i32) {
    %c0_i32 = arith.constant 0 : i32
    %c0_i32_0 = arith.constant 0 : i32
    %c0_i32_1 = arith.constant 0 : i32
    return %arg0, %c0_i32, %c0_i32_0 : i32, i32, i32
  }
  func.func @transform_9(%arg0: i32) -> (i32, i32, i32) {
    %c0_i32 = arith.constant 0 : i32
    %c0_i32_0 = arith.constant 0 : i32
    %c0_i32_1 = arith.constant 0 : i32
    return %arg0, %c0_i32, %c0_i32_0 : i32, i32, i32
  }
  func.func @transform_10(%arg0: i32) -> (i32, i32, i32) {
    %c0_i32 = arith.constant 0 : i32
    %c0_i32_0 = arith.constant 0 : i32
    %c0_i32_1 = arith.constant 0 : i32
    return %arg0, %c0_i32, %c0_i32_0 : i32, i32, i32
  }
  func.func @transform_11(%arg0: i32) -> (i32, i32, i32) {
    %c0_i32 = arith.constant 0 : i32
    %c0_i32_0 = arith.constant 0 : i32
    %c0_i32_1 = arith.constant 0 : i32
    return %arg0, %c0_i32, %c0_i32_0 : i32, i32, i32
  }
  func.func @transform_12(%arg0: i32) -> (i32, i32, i32) {
    %c0_i32 = arith.constant 0 : i32
    %c0_i32_0 = arith.constant 0 : i32
    %c0_i32_1 = arith.constant 0 : i32
    return %arg0, %c0_i32, %c0_i32_0 : i32, i32, i32
  }
  func.func @transform_13(%arg0: i32) -> (i32, i32, i32) {
    %c0_i32 = arith.constant 0 : i32
    %c0_i32_0 = arith.constant 0 : i32
    %c0_i32_1 = arith.constant 0 : i32
    return %arg0, %c0_i32, %c0_i32_0 : i32, i32, i32
  }
  func.func @transform_14(%arg0: i32) -> (i32, i32, i32) {
    %c0_i32 = arith.constant 0 : i32
    %c0_i32_0 = arith.constant 0 : i32
    %c0_i32_1 = arith.constant 0 : i32
    return %arg0, %c0_i32, %c0_i32_0 : i32, i32, i32
  }
  func.func @transform_15(%arg0: i32) -> (i32, i32) {
    %c0_i32 = arith.constant 0 : i32
    %c0_i32_0 = arith.constant 0 : i32
    %c0_i32_1 = arith.constant 0 : i32
    return %c0_i32, %c0_i32_0 : i32, i32
  }
  func.func @transform_16(%arg0: i32) -> (i32, i32) {
    %c0_i32 = arith.constant 0 : i32
    %c0_i32_0 = arith.constant 0 : i32
    %c0_i32_1 = arith.constant 0 : i32
    return %c0_i32, %c0_i32_0 : i32, i32
  }
  func.func @transform_17(%arg0: i32) -> (i32, i32) {
    %c0_i32 = arith.constant 0 : i32
    %c0_i32_0 = arith.constant 0 : i32
    %c0_i32_1 = arith.constant 0 : i32
    return %c0_i32, %c0_i32_0 : i32, i32
  }
}

</mosaic_0001>

<llo_original>
// kernel: vit_forward.1
$region0: #{vit_forward.1}
  #allocation0 [shape = 'u32[]', space=smem, size = 0x4, offset = 0x4, fixed_abs, tag = 'smem constant byte address 0x4 - core index']
  #allocation1 [shape = 'u32[144,128]{1,0:T(1,128)}', space=vmem, size = 0x12000, scoped, tag = 'internal scratch']
  #allocation2 [shape = 'f32[144,256]{1,0:T(8,128)}', space=vmem, size = 0x24000, scoped, tag = 'scratch operand']
  %s0 = inlined_call_operand.vmem [shape: f32[144,12], index: 0, kind: input, shape index: {}]
  %s1 = inlined_call_operand.vmem [shape: bf16[12,256], index: 1, kind: input, shape index: {}]
  %s2 = inlined_call_operand.vmem [shape: f32[144,256], index: 2, kind: input, shape index: {}]
  %s3 = inlined_call_operand.vmem [shape: f32[4,1,256], index: 3, kind: input, shape index: {}]
  %s4 = inlined_call_operand.vmem [shape: f32[4,1,256], index: 4, kind: input, shape index: {}]
  %s5 = inlined_call_operand.vmem [shape: bf16[4,256,768], index: 5, kind: input, shape index: {}]
  %s6 = inlined_call_operand.vmem [shape: f32[4,1,768], index: 6, kind: input, shape index: {}]
  %s7 = inlined_call_operand.hbm [shape: bf16[4,256,256], index: 7, kind: input, shape index: {}]
  %s8 = inlined_call_operand.vmem [shape: f32[4,1,256], index: 8, kind: input, shape index: {}]
  %s9 = inlined_call_operand.vmem [shape: f32[4,1,256], index: 9, kind: input, shape index: {}]
  %s10 = inlined_call_operand.vmem [shape: f32[4,1,256], index: 10, kind: input, shape index: {}]
  %s11 = inlined_call_operand.hbm [shape: bf16[4,256,256], index: 11, kind: input, shape index: {}]
  %s12 = inlined_call_operand.vmem [shape: f32[4,1,256], index: 12, kind: input, shape index: {}]
  %s13 = inlined_call_operand.hbm [shape: bf16[4,256,256], index: 13, kind: input, shape index: {}]
  %s14 = inlined_call_operand.vmem [shape: f32[4,1,256], index: 14, kind: input, shape index: {}]
  %s15 = inlined_call_operand.vmem [shape: bf16[256,10], index: 15, kind: input, shape index: {}]
  %s16 = inlined_call_operand.vmem [shape: f32[1,10], index: 16, kind: input, shape index: {}]
  %s17 = inlined_call_operand.hbm [shape: f32[2,10], index: 17, kind: output, shape index: {}]
  %s18 = sld [smem:[#allocation0]]
  $region121: #{vit_forward.1} parent=0
    _
  %s20 = ssub.s32 1, %s18
  %s21 = scalar_select 0, %s20, %s18
  $region1: #{vit_forward.1} parent=0
    #allocation3 [shape = 'u8[262144]{0}', space=vmem, size = 0x40000, scoped, tag = 'input window, operand 7']
    #allocation4 [shape = 's32[2]{0}', space=sflag, size = 0x8, scoped, tag = 'scoped memory for vit_forward.1']
    #allocation5 [shape = 's32[2]{0}', space=sflag, size = 0x8, scoped, tag = 'scoped memory for vit_forward.1']
    #allocation6 [shape = 'u8[262144]{0}', space=vmem, size = 0x40000, scoped, tag = 'input window, operand 11']
    #allocation7 [shape = 's32[2]{0}', space=sflag, size = 0x8, scoped, tag = 'scoped memory for vit_forward.1']
    #allocation8 [shape = 'u8[262144]{0}', space=vmem, size = 0x40000, scoped, tag = 'input window, operand 13']
    #allocation9 [shape = 'u8[1024]{0}', space=vmem, size = 0x400, scoped, tag = 'output window, operand 0, single buffered']
    %22 = vsyncpa [#allocation4], 0
    %s23 = scalar_lea.sflag [#allocation4], 1
    %24 = vsyncpa %s23, 0
    %25 = vsyncpa [#allocation7], 0
    %s26 = scalar_lea.sflag [#allocation7], 1
    %27 = vsyncpa %s26, 0
    %28 = vsyncpa [#allocation5], 0
    loop: start=0, step=1, limit=6
    $region2: #{vit_forward.1} parent=1 // loop_pre_header
      _
    $region3: #{vit_forward.1} parent=1 // loop_header
      %s30 = sphi 0, %s34
      %p31 = scmp.ge.s32.totalorder %s30, 6
      %s38 = sphi 0, %s38
      %s40 = sphi 0, %s38
      %s41 = sphi 0, %s40
      %s55 = sphi 0, %s41
      %s59 = sphi 0, %s59
      %s61 = sphi 0, %s59
      %s62 = sphi 0, %s61
      %s76 = sphi 0, %s62
      %s80 = sphi 0, %s80
      %s82 = sphi 0, %s80
      %s83 = sphi 0, %s82
      %s97 = sphi 0, %s83
      %s103 = sphi 0, %s105
      %s106 = sphi 0, %s103
      %s107 = sphi 0, %s106
      %s123 = sphi 0, %s107
      %s129 = sphi 0, %s131
      %s132 = sphi 0, %s129
      %s133 = sphi 0, %s132
      %s149 = sphi 0, %s133
      %s155 = sphi 0, %s157
      %s158 = sphi 0, %s155
      %s159 = sphi 0, %s158
      %s175 = sphi 0, %s159
      %s181 = sphi 0, %s183
      %s184 = sphi 0, %s181
      %s185 = sphi 0, %s184
      %s201 = sphi 0, %s185
      %s207 = sphi 0, %s209
      %s210 = sphi 0, %s207
      %s211 = sphi 0, %s210
      %s227 = sphi 0, %s211
      %s233 = sphi 0, %s235
      %s236 = sphi 0, %s233
      %s237 = sphi 0, %s236
      %s253 = sphi 0, %s237
      %s259 = sphi 0, %s261
      %s262 = sphi 0, %s259
      %s263 = sphi 0, %s262
      %s279 = sphi 0, %s263
      %s285 = sphi 0, %s287
      %s288 = sphi 0, %s285
      %s289 = sphi 0, %s288
      %s305 = sphi 0, %s289
      %s311 = sphi 0, %s313
      %s314 = sphi 0, %s311
      %s315 = sphi 0, %s314
      %s331 = sphi 0, %s315
      %s337 = sphi 0, %s339
      %s340 = sphi 0, %s337
      %s341 = sphi 0, %s340
      %s357 = sphi 0, %s341
      %s363 = sphi 0, %s365
      %s366 = sphi 0, %s363
      %s367 = sphi 0, %s366
      %s383 = sphi 0, %s367
      %s389 = sphi 0, %s391
      %s392 = sphi 0, %s389
      %s393 = sphi 0, %s392
      %s409 = sphi 0, %s393
      %s413 = sphi 0, %s413
      %s415 = sphi 0, %s413
      %s416 = sphi 0, %s415
      %s430 = sphi 0, %s416
      %s434 = sphi 0, %s434
      %s436 = sphi 0, %s434
      %s437 = sphi 0, %s436
      %s451 = sphi 0, %s437
      %s455 = sphi 0, %s455
      %s457 = sphi 0, %s455
      %s458 = sphi 0, %s457
      %s472 = sphi 0, %s458
    $region4: #{vit_forward.1} parent=1 // loop_header_branch
      %33 = sbr.rel (%p31) target = $region8
    $region5: #{vit_forward.1} parent=1 // loop_body
      %s35 = ssub.s32 %s30, 1
      %s36 = ssub.s32 %s30, 2
      %s37 = sadd.s32 %s30, 1
      %s39 = sadd.s32 %s38, 1
      %p42 = scmp.eq.s32.totalorder %s30, 3
      %p43 = scmp.ne.s32.totalorder %s38, %s40
      %p44 = scmp.eq.s32.totalorder %s30, 0
      %p45 = por %p43, %p44
      %p46 = scmp.ne.s32.totalorder %s38, %s40
      %p47 = scmp.eq.s32.totalorder %s35, 3
      %p48 = por %p46, %p47
      %p49 = scmp.ne.s32.totalorder %s40, %s41
      %p50 = scmp.eq.s32.totalorder %s35, 0
      %p51 = por %p49, %p50
      %p52 = scmp.ne.s32.totalorder %s40, %s41
      %p53 = scmp.eq.s32.totalorder %s36, 3
      %p54 = por %p52, %p53
      %p56 = scmp.ne.s32.totalorder %s41, %s55
      %p57 = scmp.eq.s32.totalorder %s36, 0
      %p58 = por %p56, %p57
      %s60 = sadd.s32 %s59, 1
      %p63 = scmp.eq.s32.totalorder %s30, 3
      %p64 = scmp.ne.s32.totalorder %s59, %s61
      %p65 = scmp.eq.s32.totalorder %s30, 0
      %p66 = por %p64, %p65
      %p67 = scmp.ne.s32.totalorder %s59, %s61
      %p68 = scmp.eq.s32.totalorder %s35, 3
      %p69 = por %p67, %p68
      %p70 = scmp.ne.s32.totalorder %s61, %s62
      %p71 = scmp.eq.s32.totalorder %s35, 0
      %p72 = por %p70, %p71
      %p73 = scmp.ne.s32.totalorder %s61, %s62
      %p74 = scmp.eq.s32.totalorder %s36, 3
      %p75 = por %p73, %p74
      %p77 = scmp.ne.s32.totalorder %s62, %s76
      %p78 = scmp.eq.s32.totalorder %s36, 0
      %p79 = por %p77, %p78
      %s81 = sadd.s32 %s80, 1
      %p84 = scmp.eq.s32.totalorder %s30, 3
      %p85 = scmp.ne.s32.totalorder %s80, %s82
      %p86 = scmp.eq.s32.totalorder %s30, 0
      %p87 = por %p85, %p86
      %p88 = scmp.ne.s32.totalorder %s80, %s82
      %p89 = scmp.eq.s32.totalorder %s35, 3
      %p90 = por %p88, %p89
      %p91 = scmp.ne.s32.totalorder %s82, %s83
      %p92 = scmp.eq.s32.totalorder %s35, 0
      %p93 = por %p91, %p92
      %p94 = scmp.ne.s32.totalorder %s82, %s83
      %p95 = scmp.eq.s32.totalorder %s36, 3
      %p96 = por %p94, %p95
      %p98 = scmp.ne.s32.totalorder %s83, %s97
      %p99 = scmp.eq.s32.totalorder %s36, 0
      %p100 = por %p98, %p99
      %s101 = ssub.s32 %s30, %s37
      %p102 = scmp.eq.s32.totalorder %s101, 0
      %s104 = sadd.s32 %s103, 1
      %s105 = scalar_select %p102, %s103, %s104
      %p108 = pneg %p102
      %p109 = scmp.eq.s32.totalorder %s30, 3
      %p110 = por %p108, %p109
      %p111 = scmp.ne.s32.totalorder %s103, %s106
      %p112 = scmp.eq.s32.totalorder %s30, 0
      %p113 = por %p111, %p112
      %p114 = scmp.ne.s32.totalorder %s103, %s106
      %p115 = scmp.eq.s32.totalorder %s35, 3
      %p116 = por %p114, %p115
      %p117 = scmp.ne.s32.totalorder %s106, %s107
      %p118 = scmp.eq.s32.totalorder %s35, 0
      %p119 = por %p117, %p118
      %p120 = scmp.ne.s32.totalorder %s106, %s107
      %p121 = scmp.eq.s32.totalorder %s36, 3
      %p122 = por %p120, %p121
      %p124 = scmp.ne.s32.totalorder %s107, %s123
      %p125 = scmp.eq.s32.totalorder %s36, 0
      %p126 = por %p124, %p125
      %s127 = ssub.s32 %s30, %s37
      %p128 = scmp.eq.s32.totalorder %s127, 0
      %s130 = sadd.s32 %s129, 1
      %s131 = scalar_select %p128, %s129, %s130
      %p134 = pneg %p128
      %p135 = scmp.eq.s32.totalorder %s30, 3
      %p136 = por %p134, %p135
      %p137 = scmp.ne.s32.totalorder %s129, %s132
      %p138 = scmp.eq.s32.totalorder %s30, 0
      %p139 = por %p137, %p138
      %p140 = scmp.ne.s32.totalorder %s129, %s132
      %p141 = scmp.eq.s32.totalorder %s35, 3
      %p142 = por %p140, %p141
      %p143 = scmp.ne.s32.totalorder %s132, %s133
      %p144 = scmp.eq.s32.totalorder %s35, 0
      %p145 = por %p143, %p144
      %p146 = scmp.ne.s32.totalorder %s132, %s133
      %p147 = scmp.eq.s32.totalorder %s36, 3
      %p148 = por %p146, %p147
      %p150 = scmp.ne.s32.totalorder %s133, %s149
      %p151 = scmp.eq.s32.totalorder %s36, 0
      %p152 = por %p150, %p151
      %s153 = ssub.s32 %s30, %s37
      %p154 = scmp.eq.s32.totalorder %s153, 0
      %s156 = sadd.s32 %s155, 1
      %s157 = scalar_select %p154, %s155, %s156
      %p160 = pneg %p154
      %p161 = scmp.eq.s32.totalorder %s30, 3
      %p162 = por %p160, %p161
      %p163 = scmp.ne.s32.totalorder %s155, %s158
      %p164 = scmp.eq.s32.totalorder %s30, 0
      %p165 = por %p163, %p164
      %p166 = scmp.ne.s32.totalorder %s155, %s158
      %p167 = scmp.eq.s32.totalorder %s35, 3
      %p168 = por %p166, %p167
      %p169 = scmp.ne.s32.totalorder %s158, %s159
      %p170 = scmp.eq.s32.totalorder %s35, 0
      %p171 = por %p169, %p170
      %p172 = scmp.ne.s32.totalorder %s158, %s159
      %p173 = scmp.eq.s32.totalorder %s36, 3
      %p174 = por %p172, %p173
      %p176 = scmp.ne.s32.totalorder %s159, %s175
      %p177 = scmp.eq.s32.totalorder %s36, 0
      %p178 = por %p176, %p177
      %s179 = ssub.s32 %s30, %s37
      %p180 = scmp.eq.s32.totalorder %s179, 0
      %s182 = sadd.s32 %s181, 1
      %s183 = scalar_select %p180, %s181, %s182
      %p186 = pneg %p180
      %p187 = scmp.eq.s32.totalorder %s30, 3
      %p188 = por %p186, %p187
      %p189 = scmp.ne.s32.totalorder %s181, %s184
      %p190 = scmp.eq.s32.totalorder %s30, 0
      %p191 = por %p189, %p190
      %p192 = scmp.ne.s32.totalorder %s181, %s184
      %p193 = scmp.eq.s32.totalorder %s35, 3
      %p194 = por %p192, %p193
      %p195 = scmp.ne.s32.totalorder %s184, %s185
      %p196 = scmp.eq.s32.totalorder %s35, 0
      %p197 = por %p195, %p196
      %p198 = scmp.ne.s32.totalorder %s184, %s185
      %p199 = scmp.eq.s32.totalorder %s36, 3
      %p200 = por %p198, %p199
      %p202 = scmp.ne.s32.totalorder %s185, %s201
      %p203 = scmp.eq.s32.totalorder %s36, 0
      %p204 = por %p202, %p203
      %s205 = ssub.s32 %s30, %s37
      %p206 = scmp.eq.s32.totalorder %s205, 0
      %s208 = sadd.s32 %s207, 1
      %s209 = scalar_select %p206, %s207, %s208
      %p212 = pneg %p206
      %p213 = scmp.eq.s32.totalorder %s30, 3
      %p214 = por %p212, %p213
      %p215 = scmp.ne.s32.totalorder %s207, %s210
      %p216 = scmp.eq.s32.totalorder %s30, 0
      %p217 = por %p215, %p216
      %p218 = scmp.ne.s32.totalorder %s207, %s210
      %p219 = scmp.eq.s32.totalorder %s35, 3
      %p220 = por %p218, %p219
      %p221 = scmp.ne.s32.totalorder %s210, %s211
      %p222 = scmp.eq.s32.totalorder %s35, 0
      %p223 = por %p221, %p222
      %p224 = scmp.ne.s32.totalorder %s210, %s211
      %p225 = scmp.eq.s32.totalorder %s36, 3
      %p226 = por %p224, %p225
      %p228 = scmp.ne.s32.totalorder %s211, %s227
      %p229 = scmp.eq.s32.totalorder %s36, 0
      %p230 = por %p228, %p229
      %s231 = ssub.s32 %s30, %s37
      %p232 = scmp.eq.s32.totalorder %s231, 0
      %s234 = sadd.s32 %s233, 1
      %s235 = scalar_select %p232, %s233, %s234
      %p238 = pneg %p232
      %p239 = scmp.eq.s32.totalorder %s30, 3
      %p240 = por %p238, %p239
      %p241 = scmp.ne.s32.totalorder %s233, %s236
      %p242 = scmp.eq.s32.totalorder %s30, 0
      %p243 = por %p241, %p242
      %p244 = scmp.ne.s32.totalorder %s233, %s236
      %p245 = scmp.eq.s32.totalorder %s35, 3
      %p246 = por %p244, %p245
      %p247 = scmp.ne.s32.totalorder %s236, %s237
      %p248 = scmp.eq.s32.totalorder %s35, 0
      %p249 = por %p247, %p248
      %p250 = scmp.ne.s32.totalorder %s236, %s237
      %p251 = scmp.eq.s32.totalorder %s36, 3
      %p252 = por %p250, %p251
      %p254 = scmp.ne.s32.totalorder %s237, %s253
      %p255 = scmp.eq.s32.totalorder %s36, 0
      %p256 = por %p254, %p255
      %s257 = ssub.s32 %s30, %s37
      %p258 = scmp.eq.s32.totalorder %s257, 0
      %s260 = sadd.s32 %s259, 1
      %s261 = scalar_select %p258, %s259, %s260
      %p264 = pneg %p258
      %p265 = scmp.eq.s32.totalorder %s30, 3
      %p266 = por %p264, %p265
      %p267 = scmp.ne.s32.totalorder %s259, %s262
      %p268 = scmp.eq.s32.totalorder %s30, 0
      %p269 = por %p267, %p268
      %p270 = scmp.ne.s32.totalorder %s259, %s262
      %p271 = scmp.eq.s32.totalorder %s35, 3
      %p272 = por %p270, %p271
      %p273 = scmp.ne.s32.totalorder %s262, %s263
      %p274 = scmp.eq.s32.totalorder %s35, 0
      %p275 = por %p273, %p274
      %p276 = scmp.ne.s32.totalorder %s262, %s263
      %p277 = scmp.eq.s32.totalorder %s36, 3
      %p278 = por %p276, %p277
      %p280 = scmp.ne.s32.totalorder %s263, %s279
      %p281 = scmp.eq.s32.totalorder %s36, 0
      %p282 = por %p280, %p281
      %s283 = ssub.s32 %s30, %s37
      %p284 = scmp.eq.s32.totalorder %s283, 0
      %s286 = sadd.s32 %s285, 1
      %s287 = scalar_select %p284, %s285, %s286
      %p290 = pneg %p284
      %p291 = scmp.eq.s32.totalorder %s30, 3
      %p292 = por %p290, %p291
      %p293 = scmp.ne.s32.totalorder %s285, %s288
      %p294 = scmp.eq.s32.totalorder %s30, 0
      %p295 = por %p293, %p294
      %p296 = scmp.ne.s32.totalorder %s285, %s288
      %p297 = scmp.eq.s32.totalorder %s35, 3
      %p298 = por %p296, %p297
      %p299 = scmp.ne.s32.totalorder %s288, %s289
      %p300 = scmp.eq.s32.totalorder %s35, 0
      %p301 = por %p299, %p300
      %p302 = scmp.ne.s32.totalorder %s288, %s289
      %p303 = scmp.eq.s32.totalorder %s36, 3
      %p304 = por %p302, %p303
      %p306 = scmp.ne.s32.totalorder %s289, %s305
      %p307 = scmp.eq.s32.totalorder %s36, 0
      %p308 = por %p306, %p307
      %s309 = ssub.s32 %s30, %s37
      %p310 = scmp.eq.s32.totalorder %s309, 0
      %s312 = sadd.s32 %s311, 1
      %s313 = scalar_select %p310, %s311, %s312
      %p316 = pneg %p310
      %p317 = scmp.eq.s32.totalorder %s30, 3
      %p318 = por %p316, %p317
      %p319 = scmp.ne.s32.totalorder %s311, %s314
      %p320 = scmp.eq.s32.totalorder %s30, 0
      %p321 = por %p319, %p320
      %p322 = scmp.ne.s32.totalorder %s311, %s314
      %p323 = scmp.eq.s32.totalorder %s35, 3
      %p324 = por %p322, %p323
      %p325 = scmp.ne.s32.totalorder %s314, %s315
      %p326 = scmp.eq.s32.totalorder %s35, 0
      %p327 = por %p325, %p326
      %p328 = scmp.ne.s32.totalorder %s314, %s315
      %p329 = scmp.eq.s32.totalorder %s36, 3
      %p330 = por %p328, %p329
      %p332 = scmp.ne.s32.totalorder %s315, %s331
      %p333 = scmp.eq.s32.totalorder %s36, 0
      %p334 = por %p332, %p333
      %s335 = ssub.s32 %s30, %s37
      %p336 = scmp.eq.s32.totalorder %s335, 0
      %s338 = sadd.s32 %s337, 1
      %s339 = scalar_select %p336, %s337, %s338
      %p342 = pneg %p336
      %p343 = scmp.eq.s32.totalorder %s30, 3
      %p344 = por %p342, %p343
      %p345 = scmp.ne.s32.totalorder %s337, %s340
      %p346 = scmp.eq.s32.totalorder %s30, 0
      %p347 = por %p345, %p346
      %p348 = scmp.ne.s32.totalorder %s337, %s340
      %p349 = scmp.eq.s32.totalorder %s35, 3
      %p350 = por %p348, %p349
      %p351 = scmp.ne.s32.totalorder %s340, %s341
      %p352 = scmp.eq.s32.totalorder %s35, 0
      %p353 = por %p351, %p352
      %p354 = scmp.ne.s32.totalorder %s340, %s341
      %p355 = scmp.eq.s32.totalorder %s36, 3
      %p356 = por %p354, %p355
      %p358 = scmp.ne.s32.totalorder %s341, %s357
      %p359 = scmp.eq.s32.totalorder %s36, 0
      %p360 = por %p358, %p359
      %s361 = ssub.s32 %s30, %s37
      %p362 = scmp.eq.s32.totalorder %s361, 0
      %s364 = sadd.s32 %s363, 1
      %s365 = scalar_select %p362, %s363, %s364
      %p368 = pneg %p362
      %p369 = scmp.eq.s32.totalorder %s30, 3
      %p370 = por %p368, %p369
      %p371 = scmp.ne.s32.totalorder %s363, %s366
      %p372 = scmp.eq.s32.totalorder %s30, 0
      %p373 = por %p371, %p372
      %p374 = scmp.ne.s32.totalorder %s363, %s366
      %p375 = scmp.eq.s32.totalorder %s35, 3
      %p376 = por %p374, %p375
      %p377 = scmp.ne.s32.totalorder %s366, %s367
      %p378 = scmp.eq.s32.totalorder %s35, 0
      %p379 = por %p377, %p378
      %p380 = scmp.ne.s32.totalorder %s366, %s367
      %p381 = scmp.eq.s32.totalorder %s36, 3
      %p382 = por %p380, %p381
      %p384 = scmp.ne.s32.totalorder %s367, %s383
      %p385 = scmp.eq.s32.totalorder %s36, 0
      %p386 = por %p384, %p385
      %s387 = ssub.s32 %s30, %s37
      %p388 = scmp.eq.s32.totalorder %s387, 0
      %s390 = sadd.s32 %s389, 1
      %s391 = scalar_select %p388, %s389, %s390
      %p394 = pneg %p388
      %p395 = scmp.eq.s32.totalorder %s30, 3
      %p396 = por %p394, %p395
      %p397 = scmp.ne.s32.totalorder %s389, %s392
      %p398 = scmp.eq.s32.totalorder %s30, 0
      %p399 = por %p397, %p398
      %p400 = scmp.ne.s32.totalorder %s389, %s392
      %p401 = scmp.eq.s32.totalorder %s35, 3
      %p402 = por %p400, %p401
      %p403 = scmp.ne.s32.totalorder %s392, %s393
      %p404 = scmp.eq.s32.totalorder %s35, 0
      %p405 = por %p403, %p404
      %p406 = scmp.ne.s32.totalorder %s392, %s393
      %p407 = scmp.eq.s32.totalorder %s36, 3
      %p408 = por %p406, %p407
      %p410 = scmp.ne.s32.totalorder %s393, %s409
      %p411 = scmp.eq.s32.totalorder %s36, 0
      %p412 = por %p410, %p411
      %s414 = sadd.s32 %s413, 1
      %p417 = scmp.eq.s32.totalorder %s30, 3
      %p418 = scmp.ne.s32.totalorder %s413, %s415
      %p419 = scmp.eq.s32.totalorder %s30, 0
      %p420 = por %p418, %p419
      %p421 = scmp.ne.s32.totalorder %s413, %s415
      %p422 = scmp.eq.s32.totalorder %s35, 3
      %p423 = por %p421, %p422
      %p424 = scmp.ne.s32.totalorder %s415, %s416
      %p425 = scmp.eq.s32.totalorder %s35, 0
      %p426 = por %p424, %p425
      %p427 = scmp.ne.s32.totalorder %s415, %s416
      %p428 = scmp.eq.s32.totalorder %s36, 3
      %p429 = por %p427, %p428
      %p431 = scmp.ne.s32.totalorder %s416, %s430
      %p432 = scmp.eq.s32.totalorder %s36, 0
      %p433 = por %p431, %p432
      %s435 = sadd.s32 %s434, 1
      %p438 = scmp.eq.s32.totalorder %s30, 3
      %p439 = scmp.ne.s32.totalorder %s434, %s436
      %p440 = scmp.eq.s32.totalorder %s30, 0
      %p441 = por %p439, %p440
      %p442 = scmp.ne.s32.totalorder %s434, %s436
      %p443 = scmp.eq.s32.totalorder %s35, 3
      %p444 = por %p442, %p443
      %p445 = scmp.ne.s32.totalorder %s436, %s437
      %p446 = scmp.eq.s32.totalorder %s35, 0
      %p447 = por %p445, %p446
      %p448 = scmp.ne.s32.totalorder %s436, %s437
      %p449 = scmp.eq.s32.totalorder %s36, 3
      %p450 = por %p448, %p449
      %p452 = scmp.ne.s32.totalorder %s437, %s451
      %p453 = scmp.eq.s32.totalorder %s36, 0
      %p454 = por %p452, %p453
      %s456 = sadd.s32 %s455, 1
      %p459 = scmp.eq.s32.totalorder %s30, 3
      %p460 = scmp.ne.s32.totalorder %s455, %s457
      %p461 = scmp.eq.s32.totalorder %s30, 0
      %p462 = por %p460, %p461
      %p463 = scmp.ne.s32.totalorder %s455, %s457
      %p464 = scmp.eq.s32.totalorder %s35, 3
      %p465 = por %p463, %p464
      %p466 = scmp.ne.s32.totalorder %s457, %s458
      %p467 = scmp.eq.s32.totalorder %s35, 0
      %p468 = por %p466, %p467
      %p469 = scmp.ne.s32.totalorder %s457, %s458
      %p470 = scmp.eq.s32.totalorder %s36, 3
      %p471 = por %p469, %p470
      %p473 = scmp.ne.s32.totalorder %s458, %s472
      %p474 = scmp.eq.s32.totalorder %s36, 0
      %p475 = por %p473, %p474
      %p476 = scmp.le.s32.totalorder 1, %s30
      %p477 = scmp.lt.s32.totalorder %s30, 5
      %p478 = pnand %p476, %p477
      %p479 = pneg %p478
      // Predicated region
      $region9: #{vit_forward.1} parent=5 // pred_check
        _
      $region10: #{vit_forward.1} parent=5 // pred_check_branch
        %481 = sbr.rel (%p478) target = $region12
      $region11: #{vit_forward.1} parent=5 // pred_region
        %s482 = ssub.s32 %s30, 1
        // Predicated region
        $region13: #{vit_forward.1} parent=11 // pred_check
          %p483 = pneg %p51
        $region14: #{vit_forward.1} parent=11 // pred_check_branch
          %485 = sbr.rel (%p483) target = $region16
        $region15: #{vit_forward.1} parent=11 // pred_region
          _
        $region16: #{vit_forward.1} parent=11 // pred_fallthru
          _
        // Predicated region
        $region17: #{vit_forward.1} parent=11 // pred_check
          %p486 = pneg %p72
        $region18: #{vit_forward.1} parent=11 // pred_check_branch
          %488 = sbr.rel (%p486) target = $region20
        $region19: #{vit_forward.1} parent=11 // pred_region
          _
        $region20: #{vit_forward.1} parent=11 // pred_fallthru
          _
        // Predicated region
        $region21: #{vit_forward.1} parent=11 // pred_check
          %p489 = pneg %p93
        $region22: #{vit_forward.1} parent=11 // pred_check_branch
          %491 = sbr.rel (%p489) target = $region24
        $region23: #{vit_forward.1} parent=11 // pred_region
          _
        $region24: #{vit_forward.1} parent=11 // pred_fallthru
          _
        // Predicated region
        $region25: #{vit_forward.1} parent=11 // pred_check
          %p492 = pneg %p426
        $region26: #{vit_forward.1} parent=11 // pred_check_branch
          %494 = sbr.rel (%p492) target = $region28
        $region27: #{vit_forward.1} parent=11 // pred_region
          _
        $region28: #{vit_forward.1} parent=11 // pred_fallthru
          _
        // Predicated region
        $region29: #{vit_forward.1} parent=11 // pred_check
          %p495 = pneg %p447
        $region30: #{vit_forward.1} parent=11 // pred_check_branch
          %497 = sbr.rel (%p495) target = $region32
        $region31: #{vit_forward.1} parent=11 // pred_region
          _
        $region32: #{vit_forward.1} parent=11 // pred_fallthru
          _
      $region12: #{vit_forward.1} parent=5 // pred_fallthru
        _
      %p498 = scmp.lt.s32.totalorder %s30, 4
      // Predicated region
      $region33: #{vit_forward.1} parent=5 // pred_check
        %p499 = pneg %p498
      $region34: #{vit_forward.1} parent=5 // pred_check_branch
        %501 = sbr.rel (%p499) target = $region36
      $region35: #{vit_forward.1} parent=5 // pred_region
        // Predicated region
        $region37: #{vit_forward.1} parent=35 // pred_check
          %p502 = pneg %p113
        $region38: #{vit_forward.1} parent=35 // pred_check_branch
          %504 = sbr.rel (%p502) target = $region40
        $region39: #{vit_forward.1} parent=35 // pred_region
          %p505 = scmp.lt.s32.totalorder %s30, 3
          %s506 = scalar_select %p505, %s30, 3
          %s507 = smul.addr %s506, 2
          %s508 = scalar_lea.vmem %s3, %s507
        $region40: #{vit_forward.1} parent=35 // pred_fallthru
          _
        // Predicated region
        $region41: #{vit_forward.1} parent=35 // pred_check
          %p509 = pneg %p139
        $region42: #{vit_forward.1} parent=35 // pred_check_branch
          %511 = sbr.rel (%p509) target = $region44
        $region43: #{vit_forward.1} parent=35 // pred_region
          %p512 = scmp.lt.s32.totalorder %s30, 3
          %s513 = scalar_select %p512, %s30, 3
          %s514 = smul.addr %s513, 2
          %s515 = scalar_lea.vmem %s4, %s514
        $region44: #{vit_forward.1} parent=35 // pred_fallthru
          _
        // Predicated region
        $region45: #{vit_forward.1} parent=35 // pred_check
          %p516 = pneg %p165
        $region46: #{vit_forward.1} parent=35 // pred_check_branch
          %518 = sbr.rel (%p516) target = $region48
        $region47: #{vit_forward.1} parent=35 // pred_region
          %p519 = scmp.lt.s32.totalorder %s30, 3
          %s520 = scalar_select %p519, %s30, 3
          %s521 = smul.addr %s520, 192
          %s522 = smul.addr %s521, 4
          %s523 = scalar_lea.vmem %s5, %s522
        $region48: #{vit_forward.1} parent=35 // pred_fallthru
          _
        // Predicated region
        $region49: #{vit_forward.1} parent=35 // pred_check
          %p524 = pneg %p191
        $region50: #{vit_forward.1} parent=35 // pred_check_branch
          %526 = sbr.rel (%p524) target = $region52
        $region51: #{vit_forward.1} parent=35 // pred_region
          %p527 = scmp.lt.s32.totalorder %s30, 3
          %s528 = scalar_select %p527, %s30, 3
          %s529 = smul.addr %s528, 6
          %s530 = scalar_lea.vmem %s6, %s529
        $region52: #{vit_forward.1} parent=35 // pred_fallthru
          _
        // Predicated region
        $region53: #{vit_forward.1} parent=35 // pred_check
          %p531 = pneg %p217
        $region54: #{vit_forward.1} parent=35 // pred_check_branch
          %533 = sbr.rel (%p531) target = $region56
        $region55: #{vit_forward.1} parent=35 // pred_region
          %s534 = sand.u32 %s207, 1
          %s535 = scalar_lea.sflag [#allocation4], %s534
          %s536 = sand.u32 %s207, 1
          %s537 = smul.addr %s536, 256
          %s538 = scalar_lea.vmem [#allocation3], %s537
          %s540 = ssub.s32 4096, 4096
          %541 = vsyncadd %s535, %s540
          %s542 = smul.addr %s30, 64
          %s543 = smul.addr %s542, 64
          %s544 = scalar_lea.hbm %s7, %s543
          %s545 = sshll.u32 %s538, 4
          %s546 = int_to_ptr.vmem [resolvable:$true] %s545
          %551 = dma.hbm_to_vmem [thread:$0]  %s544, 4096, %s546, %s535, 128, 128, 8
        $region56: #{vit_forward.1} parent=35 // pred_fallthru
          _
        // Predicated region
        $region57: #{vit_forward.1} parent=35 // pred_check
          %p552 = pneg %p243
        $region58: #{vit_forward.1} parent=35 // pred_check_branch
          %554 = sbr.rel (%p552) target = $region60
        $region59: #{vit_forward.1} parent=35 // pred_region
          %p555 = scmp.lt.s32.totalorder %s30, 3
          %s556 = scalar_select %p555, %s30, 3
          %s557 = smul.addr %s556, 2
          %s558 = scalar_lea.vmem %s8, %s557
        $region60: #{vit_forward.1} parent=35 // pred_fallthru
          _
        // Predicated region
        $region61: #{vit_forward.1} parent=35 // pred_check
          %p559 = pneg %p269
        $region62: #{vit_forward.1} parent=35 // pred_check_branch
          %561 = sbr.rel (%p559) target = $region64
        $region63: #{vit_forward.1} parent=35 // pred_region
          %p562 = scmp.lt.s32.totalorder %s30, 3
          %s563 = scalar_select %p562, %s30, 3
          %s564 = smul.addr %s563, 2
          %s565 = scalar_lea.vmem %s9, %s564
        $region64: #{vit_forward.1} parent=35 // pred_fallthru
          _
        // Predicated region
        $region65: #{vit_forward.1} parent=35 // pred_check
          %p566 = pneg %p295
        $region66: #{vit_forward.1} parent=35 // pred_check_branch
          %568 = sbr.rel (%p566) target = $region68
        $region67: #{vit_forward.1} parent=35 // pred_region
          %p569 = scmp.lt.s32.totalorder %s30, 3
          %s570 = scalar_select %p569, %s30, 3
          %s571 = smul.addr %s570, 2
          %s572 = scalar_lea.vmem %s10, %s571
        $region68: #{vit_forward.1} parent=35 // pred_fallthru
          _
        // Predicated region
        $region69: #{vit_forward.1} parent=35 // pred_check
          %p573 = pneg %p321
        $region70: #{vit_forward.1} parent=35 // pred_check_branch
          %575 = sbr.rel (%p573) target = $region72
        $region71: #{vit_forward.1} parent=35 // pred_region
          %s576 = sand.u32 %s30, 1
          %s577 = scalar_lea.sflag [#allocation7], %s576
          %s578 = sand.u32 %s311, 1
          %s579 = smul.addr %s578, 256
          %s580 = scalar_lea.vmem [#allocation6], %s579
          %s582 = ssub.s32 4096, 4096
          %583 = vsyncadd %s577, %s582
          %s584 = smul.addr %s30, 64
          %s585 = smul.addr %s584, 64
          %s586 = scalar_lea.hbm %s11, %s585
          %s587 = sshll.u32 %s580, 4
          %s588 = int_to_ptr.vmem [resolvable:$true] %s587
          %593 = dma.hbm_to_vmem [thread:$0]  %s586, 4096, %s588, %s577, 128, 128, 8
        $region72: #{vit_forward.1} parent=35 // pred_fallthru
          _
        // Predicated region
        $region73: #{vit_forward.1} parent=35 // pred_check
          %p594 = pneg %p347
        $region74: #{vit_forward.1} parent=35 // pred_check_branch
          %596 = sbr.rel (%p594) target = $region76
        $region75: #{vit_forward.1} parent=35 // pred_region
          %p597 = scmp.lt.s32.totalorder %s30, 3
          %s598 = scalar_select %p597, %s30, 3
          %s599 = smul.addr %s598, 2
          %s600 = scalar_lea.vmem %s12, %s599
        $region76: #{vit_forward.1} parent=35 // pred_fallthru
          _
        // Predicated region
        $region77: #{vit_forward.1} parent=35 // pred_check
          %p601 = pneg %p373
        $region78: #{vit_forward.1} parent=35 // pred_check_branch
          %603 = sbr.rel (%p601) target = $region80
        $region79: #{vit_forward.1} parent=35 // pred_region
          %s604 = sand.u32 %s30, 1
          %s605 = scalar_lea.sflag [#allocation7], %s604
          %s606 = sand.u32 %s363, 1
          %s607 = smul.addr %s606, 256
          %s608 = scalar_lea.vmem [#allocation8], %s607
          %s610 = ssub.s32 4096, 4096
          %611 = vsyncadd %s605, %s610
          %s612 = smul.addr %s30, 64
          %s613 = smul.addr %s612, 64
          %s614 = scalar_lea.hbm %s13, %s613
          %s615 = sshll.u32 %s608, 4
          %s616 = int_to_ptr.vmem [resolvable:$true] %s615
          %621 = dma.hbm_to_vmem [thread:$0]  %s614, 4096, %s616, %s605, 128, 128, 8
        $region80: #{vit_forward.1} parent=35 // pred_fallthru
          _
        // Predicated region
        $region81: #{vit_forward.1} parent=35 // pred_check
          %p622 = pneg %p399
        $region82: #{vit_forward.1} parent=35 // pred_check_branch
          %624 = sbr.rel (%p622) target = $region84
        $region83: #{vit_forward.1} parent=35 // pred_region
          %p625 = scmp.lt.s32.totalorder %s30, 3
          %s626 = scalar_select %p625, %s30, 3
          %s627 = smul.addr %s626, 2
          %s628 = scalar_lea.vmem %s14, %s627
        $region84: #{vit_forward.1} parent=35 // pred_fallthru
          _
      $region36: #{vit_forward.1} parent=5 // pred_fallthru
        _
      %p629 = scmp.le.s32.totalorder 1, %s30
      %p630 = scmp.lt.s32.totalorder %s30, 5
      %p631 = pnand %p629, %p630
      %p632 = pneg %p631
      // Predicated region
      $region85: #{vit_forward.1} parent=5 // pred_check
        _
      $region86: #{vit_forward.1} parent=5 // pred_check_branch
        %634 = sbr.rel (%p631) target = $region88
      $region87: #{vit_forward.1} parent=5 // pred_region
        %s635 = ssub.s32 %s30, 1
        %s636 = sand.u32 %s210, 1
        %s637 = scalar_lea.sflag [#allocation4], %s636
        %s638 = sand.u32 %s210, 1
        %s639 = smul.addr %s638, 256
        %s640 = scalar_lea.vmem [#allocation3], %s639
        // Predicated region
        $region89: #{vit_forward.1} parent=87 // pred_check
          %p641 = pneg %p223
        $region90: #{vit_forward.1} parent=87 // pred_check_branch
          %643 = sbr.rel (%p641) target = $region92
        $region91: #{vit_forward.1} parent=87 // pred_region
          %644 = dma.done %s637, 4096
        $region92: #{vit_forward.1} parent=87 // pred_fallthru
          _
        %s645 = sand.u32 %s35, 1
        %s646 = scalar_lea.sflag [#allocation7], %s645
        %s647 = sand.u32 %s314, 1
        %s648 = smul.addr %s647, 256
        %s649 = scalar_lea.vmem [#allocation6], %s648
        // Predicated region
        $region93: #{vit_forward.1} parent=87 // pred_check
          %p650 = pneg %p327
        $region94: #{vit_forward.1} parent=87 // pred_check_branch
          %652 = sbr.rel (%p650) target = $region96
        $region95: #{vit_forward.1} parent=87 // pred_region
          %653 = dma.done %s646, 4096
        $region96: #{vit_forward.1} parent=87 // pred_fallthru
          _
        %s654 = sand.u32 %s35, 1
        %s655 = scalar_lea.sflag [#allocation7], %s654
        %s656 = sand.u32 %s366, 1
        %s657 = smul.addr %s656, 256
        %s658 = scalar_lea.vmem [#allocation8], %s657
        // Predicated region
        $region97: #{vit_forward.1} parent=87 // pred_check
          %p659 = pneg %p379
        $region98: #{vit_forward.1} parent=87 // pred_check_branch
          %661 = sbr.rel (%p659) target = $region100
        $region99: #{vit_forward.1} parent=87 // pred_region
          %662 = dma.done %s655, 4096
        $region100: #{vit_forward.1} parent=87 // pred_fallthru
          _
        %p663 = pneg %p51
        %p664 = pneg %p48
        %p665 = pneg %p72
        %p666 = pneg %p69
        %p667 = pneg %p93
        %p668 = pneg %p90
        %p669 = scmp.lt.s32.totalorder %s35, 3
        %s670 = scalar_select %p669, %s35, 3
        %s671 = smul.addr %s670, 2
        %s672 = scalar_lea.vmem %s3, %s671
        %p673 = pneg %p119
        %p674 = pneg %p116
        %p675 = scmp.lt.s32.totalorder %s35, 3
        %s676 = scalar_select %p675, %s35, 3
        %s677 = smul.addr %s676, 2
        %s678 = scalar_lea.vmem %s4, %s677
        %p679 = pneg %p145
        %p680 = pneg %p142
        %p681 = scmp.lt.s32.totalorder %s35, 3
        %s682 = scalar_select %p681, %s35, 3
        %s683 = smul.addr %s682, 192
        %s684 = smul.addr %s683, 4
        %s685 = scalar_lea.vmem %s5, %s684
        %p686 = pneg %p171
        %p687 = pneg %p168
        %p688 = scmp.lt.s32.totalorder %s35, 3
        %s689 = scalar_select %p688, %s35, 3
        %s690 = smul.addr %s689, 6
        %s691 = scalar_lea.vmem %s6, %s690
        %p692 = pneg %p197
        %p693 = pneg %p194
        %s694 = sand.u32 %s210, 1
        %s695 = scalar_lea.sflag [#allocation4], %s694
        %s696 = sand.u32 %s210, 1
        %s697 = smul.addr %s696, 256
        %s698 = scalar_lea.vmem [#allocation3], %s697
        %p699 = pneg %p223
        %p700 = pneg %p220
        %p701 = scmp.lt.s32.totalorder %s35, 3
        %s702 = scalar_select %p701, %s35, 3
        %s703 = smul.addr %s702, 2
        %s704 = scalar_lea.vmem %s8, %s703
        %p705 = pneg %p249
        %p706 = pneg %p246
        %p707 = scmp.lt.s32.totalorder %s35, 3
        %s708 = scalar_select %p707, %s35, 3
        %s709 = smul.addr %s708, 2
        %s710 = scalar_lea.vmem %s9, %s709
        %p711 = pneg %p275
        %p712 = pneg %p272
        %p713 = scmp.lt.s32.totalorder %s35, 3
        %s714 = scalar_select %p713, %s35, 3
        %s715 = smul.addr %s714, 2
        %s716 = scalar_lea.vmem %s10, %s715
        %p717 = pneg %p301
        %p718 = pneg %p298
        %s719 = sand.u32 %s35, 1
        %s720 = scalar_lea.sflag [#allocation7], %s719
        %s721 = sand.u32 %s314, 1
        %s722 = smul.addr %s721, 256
        %s723 = scalar_lea.vmem [#allocation6], %s722
        %p724 = pneg %p327
        %p725 = pneg %p324
        %p726 = scmp.lt.s32.totalorder %s35, 3
        %s727 = scalar_select %p726, %s35, 3
        %s728 = smul.addr %s727, 2
        %s729 = scalar_lea.vmem %s12, %s728
        %p730 = pneg %p353
        %p731 = pneg %p350
        %s732 = sand.u32 %s35, 1
        %s733 = scalar_lea.sflag [#allocation7], %s732
        %s734 = sand.u32 %s366, 1
        %s735 = smul.addr %s734, 256
        %s736 = scalar_lea.vmem [#allocation8], %s735
        %p737 = pneg %p379
        %p738 = pneg %p376
        %p739 = scmp.lt.s32.totalorder %s35, 3
        %s740 = scalar_select %p739, %s35, 3
        %s741 = smul.addr %s740, 2
        %s742 = scalar_lea.vmem %s14, %s741
        %p743 = pneg %p405
        %p744 = pneg %p402
        %p745 = pneg %p426
        %p746 = pneg %p423
        %p747 = pneg %p447
        %p748 = pneg %p444
        %p749 = pneg %p468
        %p750 = pneg %p465
        %p751 = scmp.lt.s32.totalorder %s35, 3
        %s752 = scalar_select %p751, %s35, 3
        %s753 = smul.addr %s752, 2
        %s754 = scalar_lea.vmem %s3, %s753
        %p755 = scmp.lt.s32.totalorder %s35, 3
        %s756 = scalar_select %p755, %s35, 3
        %s757 = smul.addr %s756, 2
        %s758 = scalar_lea.vmem %s4, %s757
        %p759 = scmp.lt.s32.totalorder %s35, 3
        %s760 = scalar_select %p759, %s35, 3
        %s761 = smul.addr %s760, 192
        %s762 = smul.addr %s761, 4
        %s763 = scalar_lea.vmem %s5, %s762
        %p764 = scmp.lt.s32.totalorder %s35, 3
        %s765 = scalar_select %p764, %s35, 3
        %s766 = smul.addr %s765, 6
        %s767 = scalar_lea.vmem %s6, %s766
        %p768 = scmp.lt.s32.totalorder %s35, 3
        %s769 = scalar_select %p768, %s35, 3
        %s770 = smul.addr %s769, 2
        %s771 = scalar_lea.vmem %s8, %s770
        %p772 = scmp.lt.s32.totalorder %s35, 3
        %s773 = scalar_select %p772, %s35, 3
        %s774 = smul.addr %s773, 2
        %s775 = scalar_lea.vmem %s9, %s774
        %p776 = scmp.lt.s32.totalorder %s35, 3
        %s777 = scalar_select %p776, %s35, 3
        %s778 = smul.addr %s777, 2
        %s779 = scalar_lea.vmem %s10, %s778
        %p780 = scmp.lt.s32.totalorder %s35, 3
        %s781 = scalar_select %p780, %s35, 3
        %s782 = smul.addr %s781, 2
        %s783 = scalar_lea.vmem %s12, %s782
        %p784 = scmp.lt.s32.totalorder %s35, 3
        %s785 = scalar_select %p784, %s35, 3
        %s786 = smul.addr %s785, 2
        %s787 = scalar_lea.vmem %s14, %s786
        %p789 = scmp.eq.s32.totalorder %s35, 0
        // Predicated region
        $region101: #{vit_forward.1} parent=87 // pred_check
          %p790 = pneg %p789
        $region102: #{vit_forward.1} parent=87 // pred_check_branch
          %792 = sbr.rel (%p790) target = $region104
        $region103: #{vit_forward.1} parent=87 // pred_region
          %v793 = vld [vmem:[%s0] sm:$0xff]
          %v794 = vld [vmem:[%s0 + $0x8] sm:$0xff]
          %v795 = vld [vmem:[%s0 + $0x10] sm:$0xff]
          %v796 = vld [vmem:[%s0 + $0x18] sm:$0xff]
          %v797 = vld [vmem:[%s0 + $0x20] sm:$0xff]
          %v798 = vld [vmem:[%s0 + $0x28] sm:$0xff]
          %v799 = vld [vmem:[%s0 + $0x30] sm:$0xff]
          %v800 = vld [vmem:[%s0 + $0x38] sm:$0xff]
          %v801 = vld [vmem:[%s0 + $0x40] sm:$0xff]
          %v802 = vld [vmem:[%s0 + $0x48] sm:$0xff]
          %v803 = vld [vmem:[%s0 + $0x50] sm:$0xff]
          %v804 = vld [vmem:[%s0 + $0x58] sm:$0xff]
          %v805 = vld [vmem:[%s0 + $0x60] sm:$0xff]
          %v806 = vld [vmem:[%s0 + $0x68] sm:$0xff]
          %v807 = vld [vmem:[%s0 + $0x70] sm:$0xff]
          %v808 = vld [vmem:[%s0 + $0x78] sm:$0xff]
          %v809 = vld [vmem:[%s0 + $0x80] sm:$0xff]
          %v810 = vld [vmem:[%s0 + $0x88] sm:$0xff]
          %v811 = vpack.c.bf16 %v794, %v793
          %v812 = vpack.c.bf16 %v796, %v795
          %v813 = vpack.c.bf16 %v798, %v797
          %v814 = vpack.c.bf16 %v800, %v799
          %v815 = vpack.c.bf16 %v802, %v801
          %v816 = vpack.c.bf16 %v804, %v803
          %v817 = vpack.c.bf16 %v806, %v805
          %v818 = vpack.c.bf16 %v808, %v807
          %v819 = vpack.c.bf16 %v810, %v809
          %v820 = vld [vmem:[%s1] sm:$0xff]
          %v821 = vld [vmem:[%s1 + $0x8] sm:$0x33]
          %v822 = vld [vmem:[%s2] sm:$0xff]
          %v823 = vld [vmem:[%s2 + $0x8] sm:$0xff]
          %v824 = vld [vmem:[%s2 + $0x10] sm:$0xff]
          %v825 = vld [vmem:[%s2 + $0x18] sm:$0xff]
          %v826 = vld [vmem:[%s2 + $0x20] sm:$0xff]
          %v827 = vld [vmem:[%s2 + $0x28] sm:$0xff]
          %v828 = vld [vmem:[%s2 + $0x30] sm:$0xff]
          %v829 = vld [vmem:[%s2 + $0x38] sm:$0xff]
          %v830 = vld [vmem:[%s2 + $0x40] sm:$0xff]
          %v831 = vld [vmem:[%s2 + $0x48] sm:$0xff]
          %v832 = vld [vmem:[%s2 + $0x50] sm:$0xff]
          %v833 = vld [vmem:[%s2 + $0x58] sm:$0xff]
          %v834 = vld [vmem:[%s2 + $0x60] sm:$0xff]
          %v835 = vld [vmem:[%s2 + $0x68] sm:$0xff]
          %v836 = vld [vmem:[%s2 + $0x70] sm:$0xff]
          %v837 = vld [vmem:[%s2 + $0x78] sm:$0xff]
          %v838 = vld [vmem:[%s2 + $0x80] sm:$0xff]
          %v839 = vld [vmem:[%s2 + $0x88] sm:$0xff]
          %v840 = vld [vmem:[%s2 + $0x90] sm:$0xff]
          %v841 = vld [vmem:[%s2 + $0x98] sm:$0xff]
          %v842 = vld [vmem:[%s2 + $0xa0] sm:$0xff]
          %v843 = vld [vmem:[%s2 + $0xa8] sm:$0xff]
          %v844 = vld [vmem:[%s2 + $0xb0] sm:$0xff]
          %v845 = vld [vmem:[%s2 + $0xb8] sm:$0xff]
          %v846 = vld [vmem:[%s2 + $0xc0] sm:$0xff]
          %v847 = vld [vmem:[%s2 + $0xc8] sm:$0xff]
          %v848 = vld [vmem:[%s2 + $0xd0] sm:$0xff]
          %v849 = vld [vmem:[%s2 + $0xd8] sm:$0xff]
          %v850 = vld [vmem:[%s2 + $0xe0] sm:$0xff]
          %v851 = vld [vmem:[%s2 + $0xe8] sm:$0xff]
          %v852 = vld [vmem:[%s2 + $0xf0] sm:$0xff]
          %v853 = vld [vmem:[%s2 + $0xf8] sm:$0xff]
          %v854 = vld [vmem:[%s2 + $0x100] sm:$0xff]
          %v855 = vld [vmem:[%s2 + $0x108] sm:$0xff]
          %v856 = vld [vmem:[%s2 + $0x110] sm:$0xff]
          %v857 = vld [vmem:[%s2 + $0x118] sm:$0xff]
          %v860 = vunpack.c.l.b16 %v820
          %v861 = vunpack.c.h.b16 %v820
          %v862 = vunpack.c.l.b16 %v821
          %v863 = vunpack.c.h.b16 %v821
          %v864 = vpack.c.b16 %v862, %v860
          %v865 = vpack.c.b16 %v863, %v861
          %vm866 = vcmask 97280
          %v868 = vsel %vm866, %v811, 0
          %v871 = vsel %vm866, %v812, 0
          %v874 = vsel %vm866, %v813, 0
          %v877 = vsel %vm866, %v814, 0
          %v880 = vsel %vm866, %v815, 0
          %v883 = vsel %vm866, %v816, 0
          %v886 = vsel %vm866, %v817, 0
          %v889 = vsel %vm866, %v818, 0
          %v892 = vsel %vm866, %v819, 0
          %vm894 = vcmask 1045504
          %v896 = vsel %vm894, %v864, 0
          %v899 = vsel %vm894, %v865, 0
          %901 = vmatprep.subr.bf16.mxu0 %v899
          %902 = vmatpush1.bf16.msra.mxu0 %v896
          %903 = vmatprep.subr.bf16.mxu0 0
          %904 = vmatpush1.bf16.msra.mxu0 0
          %905 = vmatprep.subr.bf16.mxu0 0
          %906 = vmatpush1.bf16.msra.mxu0 0
          %907 = vmatprep.subr.bf16.mxu0 0
          %908 = vmatpush1.bf16.msra.mxu0 0
          %909 = vmatprep.subr.bf16.mxu0 0
          %910 = vmatpush1.bf16.msra.mxu0 0
          %911 = vmatprep.subr.bf16.mxu0 0
          %912 = vmatpush1.bf16.msra.mxu0 0
          %913 = vmatprep.subr.bf16.mxu0 0
          %914 = vmatpush1.bf16.msra.mxu0 0
          %915 = vmatprep.subr.bf16.mxu0 0
          %916 = vmatpush1.bf16.msra.mxu0 0
          %917 = vmatprep.subr.bf16.mxu0 0
          %918 = vmatpush1.bf16.msra.mxu0 0
          %919 = vmatprep.subr.bf16.mxu0 0
          %920 = vmatpush1.bf16.msra.mxu0 0
          %921 = vmatprep.subr.bf16.mxu0 0
          %922 = vmatpush1.bf16.msra.mxu0 0
          %923 = vmatprep.subr.bf16.mxu0 0
          %924 = vmatpush1.bf16.msra.mxu0 0
          %925 = vmatprep.subr.bf16.mxu0 0
          %926 = vmatpush1.bf16.msra.mxu0 0
          %927 = vmatprep.subr.bf16.mxu0 0
          %928 = vmatpush1.bf16.msra.mxu0 0
          %929 = vmatprep.subr.bf16.mxu0 0
          %930 = vmatpush1.bf16.msra.mxu0 0
          %931 = vmatprep.subr.bf16.mxu0 0
          %932 = vmatpush1.bf16.msra.mxu0 0
          %933 = vmatprep.mubr.bf16.mxu0 0
          %934 = vmatmul.mubr.bf16.gmra.mrb[0].mxu0 %v868
          %v935 = vpop.f32.mrb[0].mxu0
          %v936 = vadd.f32 %v822, %v935
          %v937 = vpop.f32.mrb[0].mxu0
          %v938 = vadd.f32 %v823, %v937
          %v939 = vpop.f32.mrb[0].mxu0
          %v940 = vadd.f32 %v824, %v939
          %v941 = vpop.f32.mrb[0].mxu0
          %v942 = vadd.f32 %v825, %v941
          %943 = vmatprep.mubr.bf16.mxu0 0
          %944 = vmatmul.mubr.bf16.gmra.mrb[0].mxu0 %v871
          %v945 = vpop.f32.mrb[0].mxu0
          %v946 = vadd.f32 %v826, %v945
          %v947 = vpop.f32.mrb[0].mxu0
          %v948 = vadd.f32 %v827, %v947
          %v949 = vpop.f32.mrb[0].mxu0
          %v950 = vadd.f32 %v828, %v949
          %v951 = vpop.f32.mrb[0].mxu0
          %v952 = vadd.f32 %v829, %v951
          %953 = vmatprep.mubr.bf16.mxu0 0
          %954 = vmatmul.mubr.bf16.gmra.mrb[0].mxu0 %v874
          %v955 = vpop.f32.mrb[0].mxu0
          %v956 = vadd.f32 %v830, %v955
          %v957 = vpop.f32.mrb[0].mxu0
          %v958 = vadd.f32 %v831, %v957
          %v959 = vpop.f32.mrb[0].mxu0
          %v960 = vadd.f32 %v832, %v959
          %v961 = vpop.f32.mrb[0].mxu0
          %v962 = vadd.f32 %v833, %v961
          %963 = vmatprep.mubr.bf16.mxu0 0
          %964 = vmatmul.mubr.bf16.gmra.mrb[0].mxu0 %v877
          %v965 = vpop.f32.mrb[0].mxu0
          %v966 = vadd.f32 %v834, %v965
          %v967 = vpop.f32.mrb[0].mxu0
          %v968 = vadd.f32 %v835, %v967
          %v969 = vpop.f32.mrb[0].mxu0
          %v970 = vadd.f32 %v836, %v969
          %v971 = vpop.f32.mrb[0].mxu0
          %v972 = vadd.f32 %v837, %v971
          %973 = vmatprep.mubr.bf16.mxu0 0
          %974 = vmatmul.mubr.bf16.gmra.mrb[0].mxu0 %v880
          %v975 = vpop.f32.mrb[0].mxu0
          %v976 = vadd.f32 %v838, %v975
          %v977 = vpop.f32.mrb[0].mxu0
          %v978 = vadd.f32 %v839, %v977
          %v979 = vpop.f32.mrb[0].mxu0
          %v980 = vadd.f32 %v840, %v979
          %v981 = vpop.f32.mrb[0].mxu0
          %v982 = vadd.f32 %v841, %v981
          %983 = vmatprep.mubr.bf16.mxu0 0
          %984 = vmatmul.mubr.bf16.gmra.mrb[0].mxu0 %v883
          %v985 = vpop.f32.mrb[0].mxu0
          %v986 = vadd.f32 %v842, %v985
          %v987 = vpop.f32.mrb[0].mxu0
          %v988 = vadd.f32 %v843, %v987
          %v989 = vpop.f32.mrb[0].mxu0
          %v990 = vadd.f32 %v844, %v989
          %v991 = vpop.f32.mrb[0].mxu0
          %v992 = vadd.f32 %v845, %v991
          %993 = vmatprep.mubr.bf16.mxu0 0
          %994 = vmatmul.mubr.bf16.gmra.mrb[0].mxu0 %v886
          %v995 = vpop.f32.mrb[0].mxu0
          %v996 = vadd.f32 %v846, %v995
          %v997 = vpop.f32.mrb[0].mxu0
          %v998 = vadd.f32 %v847, %v997
          %v999 = vpop.f32.mrb[0].mxu0
          %v1000 = vadd.f32 %v848, %v999
          %v1001 = vpop.f32.mrb[0].mxu0
          %v1002 = vadd.f32 %v849, %v1001
          %1003 = vmatprep.mubr.bf16.mxu0 0
          %1004 = vmatmul.mubr.bf16.gmra.mrb[0].mxu0 %v889
          %v1005 = vpop.f32.mrb[0].mxu0
          %v1006 = vadd.f32 %v850, %v1005
          %v1007 = vpop.f32.mrb[0].mxu0
          %v1008 = vadd.f32 %v851, %v1007
          %v1009 = vpop.f32.mrb[0].mxu0
          %v1010 = vadd.f32 %v852, %v1009
          %v1011 = vpop.f32.mrb[0].mxu0
          %v1012 = vadd.f32 %v853, %v1011
          %1013 = vmatprep.mubr.bf16.mxu0 0
          %1014 = vmatmul.mubr.bf16.gmra.mrb[0].mxu0 %v892
          %v1015 = vpop.f32.mrb[0].mxu0
          %v1016 = vadd.f32 %v854, %v1015
          %v1017 = vpop.f32.mrb[0].mxu0
          %v1018 = vadd.f32 %v855, %v1017
          %v1019 = vpop.f32.mrb[0].mxu0
          %v1020 = vadd.f32 %v856, %v1019
          %v1021 = vpop.f32.mrb[0].mxu0
          %v1022 = vadd.f32 %v857, %v1021
          %1023 = vdwg.mxu0
          %1024 = vst [vmem:[#allocation2] sm:$0xff] %v936
          %1025 = vst [vmem:[#allocation2 + $0x8] sm:$0xff] %v938
          %1026 = vst [vmem:[#allocation2 + $0x10] sm:$0xff] %v940
          %1027 = vst [vmem:[#allocation2 + $0x18] sm:$0xff] %v942
          %1028 = vst [vmem:[#allocation2 + $0x20] sm:$0xff] %v946
          %1029 = vst [vmem:[#allocation2 + $0x28] sm:$0xff] %v948
          %1030 = vst [vmem:[#allocation2 + $0x30] sm:$0xff] %v950
          %1031 = vst [vmem:[#allocation2 + $0x38] sm:$0xff] %v952
          %1032 = vst [vmem:[#allocation2 + $0x40] sm:$0xff] %v956
          %1033 = vst [vmem:[#allocation2 + $0x48] sm:$0xff] %v958
          %1034 = vst [vmem:[#allocation2 + $0x50] sm:$0xff] %v960
          %1035 = vst [vmem:[#allocation2 + $0x58] sm:$0xff] %v962
          %1036 = vst [vmem:[#allocation2 + $0x60] sm:$0xff] %v966
          %1037 = vst [vmem:[#allocation2 + $0x68] sm:$0xff] %v968
          %1038 = vst [vmem:[#allocation2 + $0x70] sm:$0xff] %v970
          %1039 = vst [vmem:[#allocation2 + $0x78] sm:$0xff] %v972
          %1040 = vst [vmem:[#allocation2 + $0x80] sm:$0xff] %v976
          %1041 = vst [vmem:[#allocation2 + $0x88] sm:$0xff] %v978
          %1042 = vst [vmem:[#allocation2 + $0x90] sm:$0xff] %v980
          %1043 = vst [vmem:[#allocation2 + $0x98] sm:$0xff] %v982
          %1044 = vst [vmem:[#allocation2 + $0xa0] sm:$0xff] %v986
          %1045 = vst [vmem:[#allocation2 + $0xa8] sm:$0xff] %v988
          %1046 = vst [vmem:[#allocation2 + $0xb0] sm:$0xff] %v990
          %1047 = vst [vmem:[#allocation2 + $0xb8] sm:$0xff] %v992
          %1048 = vst [vmem:[#allocation2 + $0xc0] sm:$0xff] %v996
          %1049 = vst [vmem:[#allocation2 + $0xc8] sm:$0xff] %v998
          %1050 = vst [vmem:[#allocation2 + $0xd0] sm:$0xff] %v1000
          %1051 = vst [vmem:[#allocation2 + $0xd8] sm:$0xff] %v1002
          %1052 = vst [vmem:[#allocation2 + $0xe0] sm:$0xff] %v1006
          %1053 = vst [vmem:[#allocation2 + $0xe8] sm:$0xff] %v1008
          %1054 = vst [vmem:[#allocation2 + $0xf0] sm:$0xff] %v1010
          %1055 = vst [vmem:[#allocation2 + $0xf8] sm:$0xff] %v1012
          %1056 = vst [vmem:[#allocation2 + $0x100] sm:$0xff] %v1016
          %1057 = vst [vmem:[#allocation2 + $0x108] sm:$0xff] %v1018
          %1058 = vst [vmem:[#allocation2 + $0x110] sm:$0xff] %v1020
          %1059 = vst [vmem:[#allocation2 + $0x118] sm:$0xff] %v1022
        $region104: #{vit_forward.1} parent=87 // pred_fallthru
          _
        %v1060 = vld [vmem:[#allocation2] sm:$0xff]
        %v1061 = vld [vmem:[#allocation2 + $0x8] sm:$0xff]
        %v1062 = vld [vmem:[#allocation2 + $0x10] sm:$0xff]
        %v1063 = vld [vmem:[#allocation2 + $0x18] sm:$0xff]
        %v1064 = vld [vmem:[#allocation2 + $0x20] sm:$0xff]
        %v1065 = vld [vmem:[#allocation2 + $0x28] sm:$0xff]
        %v1066 = vld [vmem:[#allocation2 + $0x30] sm:$0xff]
        %v1067 = vld [vmem:[#allocation2 + $0x38] sm:$0xff]
        %v1068 = vld [vmem:[#allocation2 + $0x40] sm:$0xff]
        %v1069 = vld [vmem:[#allocation2 + $0x48] sm:$0xff]
        %v1070 = vld [vmem:[#allocation2 + $0x50] sm:$0xff]
        %v1071 = vld [vmem:[#allocation2 + $0x58] sm:$0xff]
        %v1072 = vld [vmem:[#allocation2 + $0x60] sm:$0xff]
        %v1073 = vld [vmem:[#allocation2 + $0x68] sm:$0xff]
        %v1074 = vld [vmem:[#allocation2 + $0x70] sm:$0xff]
        %v1075 = vld [vmem:[#allocation2 + $0x78] sm:$0xff]
        %v1076 = vld [vmem:[#allocation2 + $0x80] sm:$0xff]
        %v1077 = vld [vmem:[#allocation2 + $0x88] sm:$0xff]
        %v1078 = vld [vmem:[#allocation2 + $0x90] sm:$0xff]
        %v1079 = vld [vmem:[#allocation2 + $0x98] sm:$0xff]
        %v1080 = vld [vmem:[#allocation2 + $0xa0] sm:$0xff]
        %v1081 = vld [vmem:[#allocation2 + $0xa8] sm:$0xff]
        %v1082 = vld [vmem:[#allocation2 + $0xb0] sm:$0xff]
        %v1083 = vld [vmem:[#allocation2 + $0xb8] sm:$0xff]
        %v1084 = vld [vmem:[#allocation2 + $0xc0] sm:$0xff]
        %v1085 = vld [vmem:[#allocation2 + $0xc8] sm:$0xff]
        %v1086 = vld [vmem:[#allocation2 + $0xd0] sm:$0xff]
        %v1087 = vld [vmem:[#allocation2 + $0xd8] sm:$0xff]
        %v1088 = vld [vmem:[#allocation2 + $0xe0] sm:$0xff]
        %v1089 = vld [vmem:[#allocation2 + $0xe8] sm:$0xff]
        %v1090 = vld [vmem:[#allocation2 + $0xf0] sm:$0xff]
        %v1091 = vld [vmem:[#allocation2 + $0xf8] sm:$0xff]
        %v1092 = vld [vmem:[#allocation2 + $0x100] sm:$0xff]
        %v1093 = vld [vmem:[#allocation2 + $0x108] sm:$0xff]
        %v1094 = vld [vmem:[#allocation2 + $0x110] sm:$0xff]
        %v1095 = vld [vmem:[#allocation2 + $0x118] sm:$0xff]
        %v1096 = vld [vmem:[%s754] sm:$0x3]
        %v1097 = vld [vmem:[%s758] sm:$0x3]
        %v1098 = vadd.f32 %v1060, %v1061
        %1099 = vadd.xlane.f32.xlu0 %v1098
        %v1100 = vpop.xlane.xlu0 %1099
        %v1101 = vadd.f32 %v1062, %v1063
        %1102 = vadd.xlane.f32.xlu0 %v1101
        %v1103 = vpop.xlane.xlu0 %1102
        %v1104 = vadd.f32 %v1064, %v1065
        %1105 = vadd.xlane.f32.xlu0 %v1104
        %v1106 = vpop.xlane.xlu0 %1105
        %v1107 = vadd.f32 %v1066, %v1067
        %1108 = vadd.xlane.f32.xlu0 %v1107
        %v1109 = vpop.xlane.xlu0 %1108
        %v1110 = vadd.f32 %v1068, %v1069
        %1111 = vadd.xlane.f32.xlu0 %v1110
        %v1112 = vpop.xlane.xlu0 %1111
        %v1113 = vadd.f32 %v1070, %v1071
        %1114 = vadd.xlane.f32.xlu0 %v1113
        %v1115 = vpop.xlane.xlu0 %1114
        %v1116 = vadd.f32 %v1072, %v1073
        %1117 = vadd.xlane.f32.xlu0 %v1116
        %v1118 = vpop.xlane.xlu0 %1117
        %v1119 = vadd.f32 %v1074, %v1075
        %1120 = vadd.xlane.f32.xlu0 %v1119
        %v1121 = vpop.xlane.xlu0 %1120
        %v1122 = vadd.f32 %v1076, %v1077
        %1123 = vadd.xlane.f32.xlu0 %v1122
        %v1124 = vpop.xlane.xlu0 %1123
        %v1125 = vadd.f32 %v1078, %v1079
        %1126 = vadd.xlane.f32.xlu0 %v1125
        %v1127 = vpop.xlane.xlu0 %1126
        %v1128 = vadd.f32 %v1080, %v1081
        %1129 = vadd.xlane.f32.xlu0 %v1128
        %v1130 = vpop.xlane.xlu0 %1129
        %v1131 = vadd.f32 %v1082, %v1083
        %1132 = vadd.xlane.f32.xlu0 %v1131
        %v1133 = vpop.xlane.xlu0 %1132
        %v1134 = vadd.f32 %v1084, %v1085
        %1135 = vadd.xlane.f32.xlu0 %v1134
        %v1136 = vpop.xlane.xlu0 %1135
        %v1137 = vadd.f32 %v1086, %v1087
        %1138 = vadd.xlane.f32.xlu0 %v1137
        %v1139 = vpop.xlane.xlu0 %1138
        %v1140 = vadd.f32 %v1088, %v1089
        %1141 = vadd.xlane.f32.xlu0 %v1140
        %v1142 = vpop.xlane.xlu0 %1141
        %v1143 = vadd.f32 %v1090, %v1091
        %1144 = vadd.xlane.f32.xlu0 %v1143
        %v1145 = vpop.xlane.xlu0 %1144
        %v1146 = vadd.f32 %v1092, %v1093
        %1147 = vadd.xlane.f32.xlu0 %v1146
        %v1148 = vpop.xlane.xlu0 %1147
        %v1149 = vadd.f32 %v1094, %v1095
        %1150 = vadd.xlane.f32.xlu0 %v1149
        %v1151 = vpop.xlane.xlu0 %1150
        %v1152 = vrcp.pop 256.0
        %v1153 = vmul.f32 %v1100, %v1152
        %v1154 = vmul.f32 %v1103, %v1152
        %v1155 = vmul.f32 %v1106, %v1152
        %v1156 = vmul.f32 %v1109, %v1152
        %v1157 = vmul.f32 %v1112, %v1152
        %v1158 = vmul.f32 %v1115, %v1152
        %v1159 = vmul.f32 %v1118, %v1152
        %v1160 = vmul.f32 %v1121, %v1152
        %v1161 = vmul.f32 %v1124, %v1152
        %v1162 = vmul.f32 %v1127, %v1152
        %v1163 = vmul.f32 %v1130, %v1152
        %v1164 = vmul.f32 %v1133, %v1152
        %v1165 = vmul.f32 %v1136, %v1152
        %v1166 = vmul.f32 %v1139, %v1152
        %v1167 = vmul.f32 %v1142, %v1152
        %v1168 = vmul.f32 %v1145, %v1152
        %v1169 = vmul.f32 %v1148, %v1152
        %v1170 = vmul.f32 %v1151, %v1152
        %v1171 = vmul.f32 %v1060, %v1060
        %v1172 = vmul.f32 %v1061, %v1061
        %v1173 = vmul.f32 %v1062, %v1062
        %v1174 = vmul.f32 %v1063, %v1063
        %v1175 = vmul.f32 %v1064, %v1064
        %v1176 = vmul.f32 %v1065, %v1065
        %v1177 = vmul.f32 %v1066, %v1066
        %v1178 = vmul.f32 %v1067, %v1067
        %v1179 = vmul.f32 %v1068, %v1068
        %v1180 = vmul.f32 %v1069, %v1069
        %v1181 = vmul.f32 %v1070, %v1070
        %v1182 = vmul.f32 %v1071, %v1071
        %v1183 = vmul.f32 %v1072, %v1072
        %v1184 = vmul.f32 %v1073, %v1073
        %v1185 = vmul.f32 %v1074, %v1074
        %v1186 = vmul.f32 %v1075, %v1075
        %v1187 = vmul.f32 %v1076, %v1076
        %v1188 = vmul.f32 %v1077, %v1077
        %v1189 = vmul.f32 %v1078, %v1078
        %v1190 = vmul.f32 %v1079, %v1079
        %v1191 = vmul.f32 %v1080, %v1080
        %v1192 = vmul.f32 %v1081, %v1081
        %v1193 = vmul.f32 %v1082, %v1082
        %v1194 = vmul.f32 %v1083, %v1083
        %v1195 = vmul.f32 %v1084, %v1084
        %v1196 = vmul.f32 %v1085, %v1085
        %v1197 = vmul.f32 %v1086, %v1086
        %v1198 = vmul.f32 %v1087, %v1087
        %v1199 = vmul.f32 %v1088, %v1088
        %v1200 = vmul.f32 %v1089, %v1089
        %v1201 = vmul.f32 %v1090, %v1090
        %v1202 = vmul.f32 %v1091, %v1091
        %v1203 = vmul.f32 %v1092, %v1092
        %v1204 = vmul.f32 %v1093, %v1093
        %v1205 = vmul.f32 %v1094, %v1094
        %v1206 = vmul.f32 %v1095, %v1095
        %v1207 = vadd.f32 %v1171, %v1172
        %1208 = vadd.xlane.f32.xlu0 %v1207
        %v1209 = vpop.xlane.xlu0 %1208
        %v1210 = vadd.f32 %v1173, %v1174
        %1211 = vadd.xlane.f32.xlu0 %v1210
        %v1212 = vpop.xlane.xlu0 %1211
        %v1213 = vadd.f32 %v1175, %v1176
        %1214 = vadd.xlane.f32.xlu0 %v1213
        %v1215 = vpop.xlane.xlu0 %1214
        %v1216 = vadd.f32 %v1177, %v1178
        %1217 = vadd.xlane.f32.xlu0 %v1216
        %v1218 = vpop.xlane.xlu0 %1217
        %v1219 = vadd.f32 %v1179, %v1180
        %1220 = vadd.xlane.f32.xlu0 %v1219
        %v1221 = vpop.xlane.xlu0 %1220
        %v1222 = vadd.f32 %v1181, %v1182
        %1223 = vadd.xlane.f32.xlu0 %v1222
        %v1224 = vpop.xlane.xlu0 %1223
        %v1225 = vadd.f32 %v1183, %v1184
        %1226 = vadd.xlane.f32.xlu0 %v1225
        %v1227 = vpop.xlane.xlu0 %1226
        %v1228 = vadd.f32 %v1185, %v1186
        %1229 = vadd.xlane.f32.xlu0 %v1228
        %v1230 = vpop.xlane.xlu0 %1229
        %v1231 = vadd.f32 %v1187, %v1188
        %1232 = vadd.xlane.f32.xlu0 %v1231
        %v1233 = vpop.xlane.xlu0 %1232
        %v1234 = vadd.f32 %v1189, %v1190
        %1235 = vadd.xlane.f32.xlu0 %v1234
        %v1236 = vpop.xlane.xlu0 %1235
        %v1237 = vadd.f32 %v1191, %v1192
        %1238 = vadd.xlane.f32.xlu0 %v1237
        %v1239 = vpop.xlane.xlu0 %1238
        %v1240 = vadd.f32 %v1193, %v1194
        %1241 = vadd.xlane.f32.xlu0 %v1240
        %v1242 = vpop.xlane.xlu0 %1241
        %v1243 = vadd.f32 %v1195, %v1196
        %1244 = vadd.xlane.f32.xlu0 %v1243
        %v1245 = vpop.xlane.xlu0 %1244
        %v1246 = vadd.f32 %v1197, %v1198
        %1247 = vadd.xlane.f32.xlu0 %v1246
        %v1248 = vpop.xlane.xlu0 %1247
        %v1249 = vadd.f32 %v1199, %v1200
        %1250 = vadd.xlane.f32.xlu0 %v1249
        %v1251 = vpop.xlane.xlu0 %1250
        %v1252 = vadd.f32 %v1201, %v1202
        %1253 = vadd.xlane.f32.xlu0 %v1252
        %v1254 = vpop.xlane.xlu0 %1253
        %v1255 = vadd.f32 %v1203, %v1204
        %1256 = vadd.xlane.f32.xlu0 %v1255
        %v1257 = vpop.xlane.xlu0 %1256
        %v1258 = vadd.f32 %v1205, %v1206
        %1259 = vadd.xlane.f32.xlu0 %v1258
        %v1260 = vpop.xlane.xlu0 %1259
        %v1261 = vmul.f32 %v1209, %v1152
        %v1262 = vmul.f32 %v1212, %v1152
        %v1263 = vmul.f32 %v1215, %v1152
        %v1264 = vmul.f32 %v1218, %v1152
        %v1265 = vmul.f32 %v1221, %v1152
        %v1266 = vmul.f32 %v1224, %v1152
        %v1267 = vmul.f32 %v1227, %v1152
        %v1268 = vmul.f32 %v1230, %v1152
        %v1269 = vmul.f32 %v1233, %v1152
        %v1270 = vmul.f32 %v1236, %v1152
        %v1271 = vmul.f32 %v1239, %v1152
        %v1272 = vmul.f32 %v1242, %v1152
        %v1273 = vmul.f32 %v1245, %v1152
        %v1274 = vmul.f32 %v1248, %v1152
        %v1275 = vmul.f32 %v1251, %v1152
        %v1276 = vmul.f32 %v1254, %v1152
        %v1277 = vmul.f32 %v1257, %v1152
        %v1278 = vmul.f32 %v1260, %v1152
        %v1279 = vmul.f32 %v1153, %v1153
        %v1280 = vmul.f32 %v1154, %v1154
        %v1281 = vmul.f32 %v1155, %v1155
        %v1282 = vmul.f32 %v1156, %v1156
        %v1283 = vmul.f32 %v1157, %v1157
        %v1284 = vmul.f32 %v1158, %v1158
        %v1285 = vmul.f32 %v1159, %v1159
        %v1286 = vmul.f32 %v1160, %v1160
        %v1287 = vmul.f32 %v1161, %v1161
        %v1288 = vmul.f32 %v1162, %v1162
        %v1289 = vmul.f32 %v1163, %v1163
        %v1290 = vmul.f32 %v1164, %v1164
        %v1291 = vmul.f32 %v1165, %v1165
        %v1292 = vmul.f32 %v1166, %v1166
        %v1293 = vmul.f32 %v1167, %v1167
        %v1294 = vmul.f32 %v1168, %v1168
        %v1295 = vmul.f32 %v1169, %v1169
        %v1296 = vmul.f32 %v1170, %v1170
        %v1297 = vsub.f32 %v1261, %v1279
        %v1298 = vsub.f32 %v1262, %v1280
        %v1299 = vsub.f32 %v1263, %v1281
        %v1300 = vsub.f32 %v1264, %v1282
        %v1301 = vsub.f32 %v1265, %v1283
        %v1302 = vsub.f32 %v1266, %v1284
        %v1303 = vsub.f32 %v1267, %v1285
        %v1304 = vsub.f32 %v1268, %v1286
        %v1305 = vsub.f32 %v1269, %v1287
        %v1306 = vsub.f32 %v1270, %v1288
        %v1307 = vsub.f32 %v1271, %v1289
        %v1308 = vsub.f32 %v1272, %v1290
        %v1309 = vsub.f32 %v1273, %v1291
        %v1310 = vsub.f32 %v1274, %v1292
        %v1311 = vsub.f32 %v1275, %v1293
        %v1312 = vsub.f32 %v1276, %v1294
        %v1313 = vsub.f32 %v1277, %v1295
        %v1314 = vsub.f32 %v1278, %v1296
        %v1315 = vadd.f32 %v1297, 1e-05
        %v1316 = vadd.f32 %v1298, 1e-05
        %v1317 = vadd.f32 %v1299, 1e-05
        %v1318 = vadd.f32 %v1300, 1e-05
        %v1319 = vadd.f32 %v1301, 1e-05
        %v1320 = vadd.f32 %v1302, 1e-05
        %v1321 = vadd.f32 %v1303, 1e-05
        %v1322 = vadd.f32 %v1304, 1e-05
        %v1323 = vadd.f32 %v1305, 1e-05
        %v1324 = vadd.f32 %v1306, 1e-05
        %v1325 = vadd.f32 %v1307, 1e-05
        %v1326 = vadd.f32 %v1308, 1e-05
        %v1327 = vadd.f32 %v1309, 1e-05
        %v1328 = vadd.f32 %v1310, 1e-05
        %v1329 = vadd.f32 %v1311, 1e-05
        %v1330 = vadd.f32 %v1312, 1e-05
        %v1331 = vadd.f32 %v1313, 1e-05
        %v1332 = vadd.f32 %v1314, 1e-05
        %v1333 = vrsqrt.pop %v1315
        %v1334 = vrsqrt.pop %v1316
        %v1335 = vrsqrt.pop %v1317
        %v1336 = vrsqrt.pop %v1318
        %v1337 = vrsqrt.pop %v1319
        %v1338 = vrsqrt.pop %v1320
        %v1339 = vrsqrt.pop %v1321
        %v1340 = vrsqrt.pop %v1322
        %v1341 = vrsqrt.pop %v1323
        %v1342 = vrsqrt.pop %v1324
        %v1343 = vrsqrt.pop %v1325
        %v1344 = vrsqrt.pop %v1326
        %v1345 = vrsqrt.pop %v1327
        %v1346 = vrsqrt.pop %v1328
        %v1347 = vrsqrt.pop %v1329
        %v1348 = vrsqrt.pop %v1330
        %v1349 = vrsqrt.pop %v1331
        %v1350 = vrsqrt.pop %v1332
        %v1351 = vsub.f32 %v1060, %v1153
        %v1352 = vsub.f32 %v1061, %v1153
        %v1353 = vsub.f32 %v1062, %v1154
        %v1354 = vsub.f32 %v1063, %v1154
        %v1355 = vsub.f32 %v1064, %v1155
        %v1356 = vsub.f32 %v1065, %v1155
        %v1357 = vsub.f32 %v1066, %v1156
        %v1358 = vsub.f32 %v1067, %v1156
        %v1359 = vsub.f32 %v1068, %v1157
        %v1360 = vsub.f32 %v1069, %v1157
        %v1361 = vsub.f32 %v1070, %v1158
        %v1362 = vsub.f32 %v1071, %v1158
        %v1363 = vsub.f32 %v1072, %v1159
        %v1364 = vsub.f32 %v1073, %v1159
        %v1365 = vsub.f32 %v1074, %v1160
        %v1366 = vsub.f32 %v1075, %v1160
        %v1367 = vsub.f32 %v1076, %v1161
        %v1368 = vsub.f32 %v1077, %v1161
        %v1369 = vsub.f32 %v1078, %v1162
        %v1370 = vsub.f32 %v1079, %v1162
        %v1371 = vsub.f32 %v1080, %v1163
        %v1372 = vsub.f32 %v1081, %v1163
        %v1373 = vsub.f32 %v1082, %v1164
        %v1374 = vsub.f32 %v1083, %v1164
        %v1375 = vsub.f32 %v1084, %v1165
        %v1376 = vsub.f32 %v1085, %v1165
        %v1377 = vsub.f32 %v1086, %v1166
        %v1378 = vsub.f32 %v1087, %v1166
        %v1379 = vsub.f32 %v1088, %v1167
        %v1380 = vsub.f32 %v1089, %v1167
        %v1381 = vsub.f32 %v1090, %v1168
        %v1382 = vsub.f32 %v1091, %v1168
        %v1383 = vsub.f32 %v1092, %v1169
        %v1384 = vsub.f32 %v1093, %v1169
        %v1385 = vsub.f32 %v1094, %v1170
        %v1386 = vsub.f32 %v1095, %v1170
        %v1387 = vmul.f32 %v1351, %v1333
        %v1388 = vmul.f32 %v1352, %v1333
        %v1389 = vmul.f32 %v1353, %v1334
        %v1390 = vmul.f32 %v1354, %v1334
        %v1391 = vmul.f32 %v1355, %v1335
        %v1392 = vmul.f32 %v1356, %v1335
        %v1393 = vmul.f32 %v1357, %v1336
        %v1394 = vmul.f32 %v1358, %v1336
        %v1395 = vmul.f32 %v1359, %v1337
        %v1396 = vmul.f32 %v1360, %v1337
        %v1397 = vmul.f32 %v1361, %v1338
        %v1398 = vmul.f32 %v1362, %v1338
        %v1399 = vmul.f32 %v1363, %v1339
        %v1400 = vmul.f32 %v1364, %v1339
        %v1401 = vmul.f32 %v1365, %v1340
        %v1402 = vmul.f32 %v1366, %v1340
        %v1403 = vmul.f32 %v1367, %v1341
        %v1404 = vmul.f32 %v1368, %v1341
        %v1405 = vmul.f32 %v1369, %v1342
        %v1406 = vmul.f32 %v1370, %v1342
        %v1407 = vmul.f32 %v1371, %v1343
        %v1408 = vmul.f32 %v1372, %v1343
        %v1409 = vmul.f32 %v1373, %v1344
        %v1410 = vmul.f32 %v1374, %v1344
        %v1411 = vmul.f32 %v1375, %v1345
        %v1412 = vmul.f32 %v1376, %v1345
        %v1413 = vmul.f32 %v1377, %v1346
        %v1414 = vmul.f32 %v1378, %v1346
        %v1415 = vmul.f32 %v1379, %v1347
        %v1416 = vmul.f32 %v1380, %v1347
        %v1417 = vmul.f32 %v1381, %v1348
        %v1418 = vmul.f32 %v1382, %v1348
        %v1419 = vmul.f32 %v1383, %v1349
        %v1420 = vmul.f32 %v1384, %v1349
        %v1421 = vmul.f32 %v1385, %v1350
        %v1422 = vmul.f32 %v1386, %v1350
        %v1424 = vlaneseq
        %v1425 = vshrl.u32 %v1424, 7
        %v1426 = vsub.s32 0, %v1425
        %v1427 = vrot.slane %v1096, %v1426
        %v1428 = vlaneseq
        %v1429 = vshrl.u32 %v1428, 7
        %v1430 = vsub.s32 1, %v1429
        %v1431 = vrot.slane %v1096, %v1430
        %v1434 = vmul.f32 %v1387, %v1427
        %v1435 = vmul.f32 %v1388, %v1431
        %v1436 = vmul.f32 %v1389, %v1427
        %v1437 = vmul.f32 %v1390, %v1431
        %v1438 = vmul.f32 %v1391, %v1427
        %v1439 = vmul.f32 %v1392, %v1431
        %v1440 = vmul.f32 %v1393, %v1427
        %v1441 = vmul.f32 %v1394, %v1431
        %v1442 = vmul.f32 %v1395, %v1427
        %v1443 = vmul.f32 %v1396, %v1431
        %v1444 = vmul.f32 %v1397, %v1427
        %v1445 = vmul.f32 %v1398, %v1431
        %v1446 = vmul.f32 %v1399, %v1427
        %v1447 = vmul.f32 %v1400, %v1431
        %v1448 = vmul.f32 %v1401, %v1427
        %v1449 = vmul.f32 %v1402, %v1431
        %v1450 = vmul.f32 %v1403, %v1427
        %v1451 = vmul.f32 %v1404, %v1431
        %v1452 = vmul.f32 %v1405, %v1427
        %v1453 = vmul.f32 %v1406, %v1431
        %v1454 = vmul.f32 %v1407, %v1427
        %v1455 = vmul.f32 %v1408, %v1431
        %v1456 = vmul.f32 %v1409, %v1427
        %v1457 = vmul.f32 %v1410, %v1431
        %v1458 = vmul.f32 %v1411, %v1427
        %v1459 = vmul.f32 %v1412, %v1431
        %v1460 = vmul.f32 %v1413, %v1427
        %v1461 = vmul.f32 %v1414, %v1431
        %v1462 = vmul.f32 %v1415, %v1427
        %v1463 = vmul.f32 %v1416, %v1431
        %v1464 = vmul.f32 %v1417, %v1427
        %v1465 = vmul.f32 %v1418, %v1431
        %v1466 = vmul.f32 %v1419, %v1427
        %v1467 = vmul.f32 %v1420, %v1431
        %v1468 = vmul.f32 %v1421, %v1427
        %v1469 = vmul.f32 %v1422, %v1431
        %v1471 = vlaneseq
        %v1472 = vshrl.u32 %v1471, 7
        %v1473 = vsub.s32 0, %v1472
        %v1474 = vrot.slane %v1097, %v1473
        %v1475 = vlaneseq
        %v1476 = vshrl.u32 %v1475, 7
        %v1477 = vsub.s32 1, %v1476
        %v1478 = vrot.slane %v1097, %v1477
        %v1481 = vadd.f32 %v1434, %v1474
        %v1482 = vadd.f32 %v1435, %v1478
        %v1483 = vadd.f32 %v1436, %v1474
        %v1484 = vadd.f32 %v1437, %v1478
        %v1485 = vadd.f32 %v1438, %v1474
        %v1486 = vadd.f32 %v1439, %v1478
        %v1487 = vadd.f32 %v1440, %v1474
        %v1488 = vadd.f32 %v1441, %v1478
        %v1489 = vadd.f32 %v1442, %v1474
        %v1490 = vadd.f32 %v1443, %v1478
        %v1491 = vadd.f32 %v1444, %v1474
        %v1492 = vadd.f32 %v1445, %v1478
        %v1493 = vadd.f32 %v1446, %v1474
        %v1494 = vadd.f32 %v1447, %v1478
        %v1495 = vadd.f32 %v1448, %v1474
        %v1496 = vadd.f32 %v1449, %v1478
        %v1497 = vadd.f32 %v1450, %v1474
        %v1498 = vadd.f32 %v1451, %v1478
        %v1499 = vadd.f32 %v1452, %v1474
        %v1500 = vadd.f32 %v1453, %v1478
        %v1501 = vadd.f32 %v1454, %v1474
        %v1502 = vadd.f32 %v1455, %v1478
        %v1503 = vadd.f32 %v1456, %v1474
        %v1504 = vadd.f32 %v1457, %v1478
        %v1505 = vadd.f32 %v1458, %v1474
        %v1506 = vadd.f32 %v1459, %v1478
        %v1507 = vadd.f32 %v1460, %v1474
        %v1508 = vadd.f32 %v1461, %v1478
        %v1509 = vadd.f32 %v1462, %v1474
        %v1510 = vadd.f32 %v1463, %v1478
        %v1511 = vadd.f32 %v1464, %v1474
        %v1512 = vadd.f32 %v1465, %v1478
        %v1513 = vadd.f32 %v1466, %v1474
        %v1514 = vadd.f32 %v1467, %v1478
        %v1515 = vadd.f32 %v1468, %v1474
        %v1516 = vadd.f32 %v1469, %v1478
        %v1517 = vpack.c.bf16 %v1483, %v1481
        %v1518 = vpack.c.bf16 %v1484, %v1482
        %v1519 = vpack.c.bf16 %v1487, %v1485
        %v1520 = vpack.c.bf16 %v1488, %v1486
        %v1521 = vpack.c.bf16 %v1491, %v1489
        %v1522 = vpack.c.bf16 %v1492, %v1490
        %v1523 = vpack.c.bf16 %v1495, %v1493
        %v1524 = vpack.c.bf16 %v1496, %v1494
        %v1525 = vpack.c.bf16 %v1499, %v1497
        %v1526 = vpack.c.bf16 %v1500, %v1498
        %v1527 = vpack.c.bf16 %v1503, %v1501
        %v1528 = vpack.c.bf16 %v1504, %v1502
        %v1529 = vpack.c.bf16 %v1507, %v1505
        %v1530 = vpack.c.bf16 %v1508, %v1506
        %v1531 = vpack.c.bf16 %v1511, %v1509
        %v1532 = vpack.c.bf16 %v1512, %v1510
        %v1533 = vpack.c.bf16 %v1515, %v1513
        %v1534 = vpack.c.bf16 %v1516, %v1514
        %v1535 = vld [vmem:[%s763] sm:$0xff]
        %v1536 = vld [vmem:[%s763 + $0x8] sm:$0xff]
        %v1537 = vld [vmem:[%s763 + $0x10] sm:$0xff]
        %v1538 = vld [vmem:[%s763 + $0x18] sm:$0xff]
        %v1539 = vld [vmem:[%s763 + $0x20] sm:$0xff]
        %v1540 = vld [vmem:[%s763 + $0x28] sm:$0xff]
        %v1541 = vld [vmem:[%s763 + $0x30] sm:$0xff]
        %v1542 = vld [vmem:[%s763 + $0x38] sm:$0xff]
        %v1543 = vld [vmem:[%s763 + $0x40] sm:$0xff]
        %v1544 = vld [vmem:[%s763 + $0x48] sm:$0xff]
        %v1545 = vld [vmem:[%s763 + $0x50] sm:$0xff]
        %v1546 = vld [vmem:[%s763 + $0x58] sm:$0xff]
        %v1547 = vld [vmem:[%s763 + $0x60] sm:$0xff]
        %v1548 = vld [vmem:[%s763 + $0x68] sm:$0xff]
        %v1549 = vld [vmem:[%s763 + $0x70] sm:$0xff]
        %v1550 = vld [vmem:[%s763 + $0x78] sm:$0xff]
        %v1551 = vld [vmem:[%s763 + $0x80] sm:$0xff]
        %v1552 = vld [vmem:[%s763 + $0x88] sm:$0xff]
        %v1553 = vld [vmem:[%s763 + $0x90] sm:$0xff]
        %v1554 = vld [vmem:[%s763 + $0x98] sm:$0xff]
        %v1555 = vld [vmem:[%s763 + $0xa0] sm:$0xff]
        %v1556 = vld [vmem:[%s763 + $0xa8] sm:$0xff]
        %v1557 = vld [vmem:[%s763 + $0xb0] sm:$0xff]
        %v1558 = vld [vmem:[%s763 + $0xb8] sm:$0xff]
        %v1559 = vld [vmem:[%s763 + $0xc0] sm:$0xff]
        %v1560 = vld [vmem:[%s763 + $0xc8] sm:$0xff]
        %v1561 = vld [vmem:[%s763 + $0xd0] sm:$0xff]
        %v1562 = vld [vmem:[%s763 + $0xd8] sm:$0xff]
        %v1563 = vld [vmem:[%s763 + $0xe0] sm:$0xff]
        %v1564 = vld [vmem:[%s763 + $0xe8] sm:$0xff]
        %v1565 = vld [vmem:[%s763 + $0xf0] sm:$0xff]
        %v1566 = vld [vmem:[%s763 + $0xf8] sm:$0xff]
        %v1567 = vld [vmem:[%s763 + $0x100] sm:$0xff]
        %v1568 = vld [vmem:[%s763 + $0x108] sm:$0xff]
        %v1569 = vld [vmem:[%s763 + $0x110] sm:$0xff]
        %v1570 = vld [vmem:[%s763 + $0x118] sm:$0xff]
        %v1571 = vld [vmem:[%s763 + $0x120] sm:$0xff]
        %v1572 = vld [vmem:[%s763 + $0x128] sm:$0xff]
        %v1573 = vld [vmem:[%s763 + $0x130] sm:$0xff]
        %v1574 = vld [vmem:[%s763 + $0x138] sm:$0xff]
        %v1575 = vld [vmem:[%s763 + $0x140] sm:$0xff]
        %v1576 = vld [vmem:[%s763 + $0x148] sm:$0xff]
        %v1577 = vld [vmem:[%s763 + $0x150] sm:$0xff]
        %v1578 = vld [vmem:[%s763 + $0x158] sm:$0xff]
        %v1579 = vld [vmem:[%s763 + $0x160] sm:$0xff]
        %v1580 = vld [vmem:[%s763 + $0x168] sm:$0xff]
        %v1581 = vld [vmem:[%s763 + $0x170] sm:$0xff]
        %v1582 = vld [vmem:[%s763 + $0x178] sm:$0xff]
        %v1583 = vld [vmem:[%s763 + $0x180] sm:$0xff]
        %v1584 = vld [vmem:[%s763 + $0x188] sm:$0xff]
        %v1585 = vld [vmem:[%s763 + $0x190] sm:$0xff]
        %v1586 = vld [vmem:[%s763 + $0x198] sm:$0xff]
        %v1587 = vld [vmem:[%s763 + $0x1a0] sm:$0xff]
        %v1588 = vld [vmem:[%s763 + $0x1a8] sm:$0xff]
        %v1589 = vld [vmem:[%s763 + $0x1b0] sm:$0xff]
        %v1590 = vld [vmem:[%s763 + $0x1b8] sm:$0xff]
        %v1591 = vld [vmem:[%s763 + $0x1c0] sm:$0xff]
        %v1592 = vld [vmem:[%s763 + $0x1c8] sm:$0xff]
        %v1593 = vld [vmem:[%s763 + $0x1d0] sm:$0xff]
        %v1594 = vld [vmem:[%s763 + $0x1d8] sm:$0xff]
        %v1595 = vld [vmem:[%s763 + $0x1e0] sm:$0xff]
        %v1596 = vld [vmem:[%s763 + $0x1e8] sm:$0xff]
        %v1597 = vld [vmem:[%s763 + $0x1f0] sm:$0xff]
        %v1598 = vld [vmem:[%s763 + $0x1f8] sm:$0xff]
        %v1599 = vld [vmem:[%s763 + $0x200] sm:$0xff]
        %v1600 = vld [vmem:[%s763 + $0x208] sm:$0xff]
        %v1601 = vld [vmem:[%s763 + $0x210] sm:$0xff]
        %v1602 = vld [vmem:[%s763 + $0x218] sm:$0xff]
        %v1603 = vld [vmem:[%s763 + $0x220] sm:$0xff]
        %v1604 = vld [vmem:[%s763 + $0x228] sm:$0xff]
        %v1605 = vld [vmem:[%s763 + $0x230] sm:$0xff]
        %v1606 = vld [vmem:[%s763 + $0x238] sm:$0xff]
        %v1607 = vld [vmem:[%s763 + $0x240] sm:$0xff]
        %v1608 = vld [vmem:[%s763 + $0x248] sm:$0xff]
        %v1609 = vld [vmem:[%s763 + $0x250] sm:$0xff]
        %v1610 = vld [vmem:[%s763 + $0x258] sm:$0xff]
        %v1611 = vld [vmem:[%s763 + $0x260] sm:$0xff]
        %v1612 = vld [vmem:[%s763 + $0x268] sm:$0xff]
        %v1613 = vld [vmem:[%s763 + $0x270] sm:$0xff]
        %v1614 = vld [vmem:[%s763 + $0x278] sm:$0xff]
        %v1615 = vld [vmem:[%s763 + $0x280] sm:$0xff]
        %v1616 = vld [vmem:[%s763 + $0x288] sm:$0xff]
        %v1617 = vld [vmem:[%s763 + $0x290] sm:$0xff]
        %v1618 = vld [vmem:[%s763 + $0x298] sm:$0xff]
        %v1619 = vld [vmem:[%s763 + $0x2a0] sm:$0xff]
        %v1620 = vld [vmem:[%s763 + $0x2a8] sm:$0xff]
        %v1621 = vld [vmem:[%s763 + $0x2b0] sm:$0xff]
        %v1622 = vld [vmem:[%s763 + $0x2b8] sm:$0xff]
        %v1623 = vld [vmem:[%s763 + $0x2c0] sm:$0xff]
        %v1624 = vld [vmem:[%s763 + $0x2c8] sm:$0xff]
        %v1625 = vld [vmem:[%s763 + $0x2d0] sm:$0xff]
        %v1626 = vld [vmem:[%s763 + $0x2d8] sm:$0xff]
        %v1627 = vld [vmem:[%s763 + $0x2e0] sm:$0xff]
        %v1628 = vld [vmem:[%s763 + $0x2e8] sm:$0xff]
        %v1629 = vld [vmem:[%s763 + $0x2f0] sm:$0xff]
        %v1630 = vld [vmem:[%s763 + $0x2f8] sm:$0xff]
        %v1631 = vld [vmem:[%s767] sm:$0x3f]
        %v1633 = vlaneseq
        %v1634 = vshrl.u32 %v1633, 7
        %v1635 = vsub.s32 0, %v1634
        %v1636 = vrot.slane %v1631, %v1635
        %v1637 = vlaneseq
        %v1638 = vshrl.u32 %v1637, 7
        %v1639 = vsub.s32 1, %v1638
        %v1640 = vrot.slane %v1631, %v1639
        %v1641 = vlaneseq
        %v1642 = vshrl.u32 %v1641, 7
        %v1643 = vsub.s32 2, %v1642
        %v1644 = vrot.slane %v1631, %v1643
        %v1645 = vlaneseq
        %v1646 = vshrl.u32 %v1645, 7
        %v1647 = vsub.s32 3, %v1646
        %v1648 = vrot.slane %v1631, %v1647
        %v1649 = vlaneseq
        %v1650 = vshrl.u32 %v1649, 7
        %v1651 = vsub.s32 4, %v1650
        %v1652 = vrot.slane %v1631, %v1651
        %v1653 = vlaneseq
        %v1654 = vshrl.u32 %v1653, 7
        %v1655 = vsub.s32 5, %v1654
        %v1656 = vrot.slane %v1631, %v1655
        %v1759 = vunpack.c.l.b16 %v1535
        %v1760 = vunpack.c.h.b16 %v1535
        %v1761 = vunpack.c.l.b16 %v1536
        %v1762 = vunpack.c.h.b16 %v1536
        %v1763 = vunpack.c.l.b16 %v1537
        %v1764 = vunpack.c.h.b16 %v1537
        %v1765 = vunpack.c.l.b16 %v1538
        %v1766 = vunpack.c.h.b16 %v1538
        %v1767 = vunpack.c.l.b16 %v1539
        %v1768 = vunpack.c.h.b16 %v1539
        %v1769 = vunpack.c.l.b16 %v1540
        %v1770 = vunpack.c.h.b16 %v1540
        %v1771 = vunpack.c.l.b16 %v1541
        %v1772 = vunpack.c.h.b16 %v1541
        %v1773 = vunpack.c.l.b16 %v1542
        %v1774 = vunpack.c.h.b16 %v1542
        %v1775 = vunpack.c.l.b16 %v1543
        %v1776 = vunpack.c.h.b16 %v1543
        %v1777 = vunpack.c.l.b16 %v1544
        %v1778 = vunpack.c.h.b16 %v1544
        %v1779 = vunpack.c.l.b16 %v1545
        %v1780 = vunpack.c.h.b16 %v1545
        %v1781 = vunpack.c.l.b16 %v1546
        %v1782 = vunpack.c.h.b16 %v1546
        %v1783 = vunpack.c.l.b16 %v1547
        %v1784 = vunpack.c.h.b16 %v1547
        %v1785 = vunpack.c.l.b16 %v1548
        %v1786 = vunpack.c.h.b16 %v1548
        %v1787 = vunpack.c.l.b16 %v1549
        %v1788 = vunpack.c.h.b16 %v1549
        %v1789 = vunpack.c.l.b16 %v1550
        %v1790 = vunpack.c.h.b16 %v1550
        %v1791 = vunpack.c.l.b16 %v1551
        %v1792 = vunpack.c.h.b16 %v1551
        %v1793 = vunpack.c.l.b16 %v1552
        %v1794 = vunpack.c.h.b16 %v1552
        %v1795 = vunpack.c.l.b16 %v1553
        %v1796 = vunpack.c.h.b16 %v1553
        %v1797 = vunpack.c.l.b16 %v1554
        %v1798 = vunpack.c.h.b16 %v1554
        %v1799 = vunpack.c.l.b16 %v1555
        %v1800 = vunpack.c.h.b16 %v1555
        %v1801 = vunpack.c.l.b16 %v1556
        %v1802 = vunpack.c.h.b16 %v1556
        %v1803 = vunpack.c.l.b16 %v1557
        %v1804 = vunpack.c.h.b16 %v1557
        %v1805 = vunpack.c.l.b16 %v1558
        %v1806 = vunpack.c.h.b16 %v1558
        %v1807 = vunpack.c.l.b16 %v1559
        %v1808 = vunpack.c.h.b16 %v1559
        %v1809 = vunpack.c.l.b16 %v1560
        %v1810 = vunpack.c.h.b16 %v1560
        %v1811 = vunpack.c.l.b16 %v1561
        %v1812 = vunpack.c.h.b16 %v1561
        %v1813 = vunpack.c.l.b16 %v1562
        %v1814 = vunpack.c.h.b16 %v1562
        %v1815 = vunpack.c.l.b16 %v1563
        %v1816 = vunpack.c.h.b16 %v1563
        %v1817 = vunpack.c.l.b16 %v1564
        %v1818 = vunpack.c.h.b16 %v1564
        %v1819 = vunpack.c.l.b16 %v1565
        %v1820 = vunpack.c.h.b16 %v1565
        %v1821 = vunpack.c.l.b16 %v1566
        %v1822 = vunpack.c.h.b16 %v1566
        %v1823 = vunpack.c.l.b16 %v1567
        %v1824 = vunpack.c.h.b16 %v1567
        %v1825 = vunpack.c.l.b16 %v1568
        %v1826 = vunpack.c.h.b16 %v1568
        %v1827 = vunpack.c.l.b16 %v1569
        %v1828 = vunpack.c.h.b16 %v1569
        %v1829 = vunpack.c.l.b16 %v1570
        %v1830 = vunpack.c.h.b16 %v1570
        %v1831 = vunpack.c.l.b16 %v1571
        %v1832 = vunpack.c.h.b16 %v1571
        %v1833 = vunpack.c.l.b16 %v1572
        %v1834 = vunpack.c.h.b16 %v1572
        %v1835 = vunpack.c.l.b16 %v1573
        %v1836 = vunpack.c.h.b16 %v1573
        %v1837 = vunpack.c.l.b16 %v1574
        %v1838 = vunpack.c.h.b16 %v1574
        %v1839 = vunpack.c.l.b16 %v1575
        %v1840 = vunpack.c.h.b16 %v1575
        %v1841 = vunpack.c.l.b16 %v1576
        %v1842 = vunpack.c.h.b16 %v1576
        %v1843 = vunpack.c.l.b16 %v1577
        %v1844 = vunpack.c.h.b16 %v1577
        %v1845 = vunpack.c.l.b16 %v1578
        %v1846 = vunpack.c.h.b16 %v1578
        %v1847 = vunpack.c.l.b16 %v1579
        %v1848 = vunpack.c.h.b16 %v1579
        %v1849 = vunpack.c.l.b16 %v1580
        %v1850 = vunpack.c.h.b16 %v1580
        %v1851 = vunpack.c.l.b16 %v1581
        %v1852 = vunpack.c.h.b16 %v1581
        %v1853 = vunpack.c.l.b16 %v1582
        %v1854 = vunpack.c.h.b16 %v1582
        %v1855 = vunpack.c.l.b16 %v1583
        %v1856 = vunpack.c.h.b16 %v1583
        %v1857 = vunpack.c.l.b16 %v1584
        %v1858 = vunpack.c.h.b16 %v1584
        %v1859 = vunpack.c.l.b16 %v1585
        %v1860 = vunpack.c.h.b16 %v1585
        %v1861 = vunpack.c.l.b16 %v1586
        %v1862 = vunpack.c.h.b16 %v1586
        %v1863 = vunpack.c.l.b16 %v1587
        %v1864 = vunpack.c.h.b16 %v1587
        %v1865 = vunpack.c.l.b16 %v1588
        %v1866 = vunpack.c.h.b16 %v1588
        %v1867 = vunpack.c.l.b16 %v1589
        %v1868 = vunpack.c.h.b16 %v1589
        %v1869 = vunpack.c.l.b16 %v1590
        %v1870 = vunpack.c.h.b16 %v1590
        %v1871 = vunpack.c.l.b16 %v1591
        %v1872 = vunpack.c.h.b16 %v1591
        %v1873 = vunpack.c.l.b16 %v1592
        %v1874 = vunpack.c.h.b16 %v1592
        %v1875 = vunpack.c.l.b16 %v1593
        %v1876 = vunpack.c.h.b16 %v1593
        %v1877 = vunpack.c.l.b16 %v1594
        %v1878 = vunpack.c.h.b16 %v1594
        %v1879 = vunpack.c.l.b16 %v1595
        %v1880 = vunpack.c.h.b16 %v1595
        %v1881 = vunpack.c.l.b16 %v1596
        %v1882 = vunpack.c.h.b16 %v1596
        %v1883 = vunpack.c.l.b16 %v1597
        %v1884 = vunpack.c.h.b16 %v1597
        %v1885 = vunpack.c.l.b16 %v1598
        %v1886 = vunpack.c.h.b16 %v1598
        %v1887 = vunpack.c.l.b16 %v1599
        %v1888 = vunpack.c.h.b16 %v1599
        %v1889 = vunpack.c.l.b16 %v1600
        %v1890 = vunpack.c.h.b16 %v1600
        %v1891 = vunpack.c.l.b16 %v1601
        %v1892 = vunpack.c.h.b16 %v1601
        %v1893 = vunpack.c.l.b16 %v1602
        %v1894 = vunpack.c.h.b16 %v1602
        %v1895 = vunpack.c.l.b16 %v1603
        %v1896 = vunpack.c.h.b16 %v1603
        %v1897 = vunpack.c.l.b16 %v1604
        %v1898 = vunpack.c.h.b16 %v1604
        %v1899 = vunpack.c.l.b16 %v1605
        %v1900 = vunpack.c.h.b16 %v1605
        %v1901 = vunpack.c.l.b16 %v1606
        %v1902 = vunpack.c.h.b16 %v1606
        %v1903 = vunpack.c.l.b16 %v1607
        %v1904 = vunpack.c.h.b16 %v1607
        %v1905 = vunpack.c.l.b16 %v1608
        %v1906 = vunpack.c.h.b16 %v1608
        %v1907 = vunpack.c.l.b16 %v1609
        %v1908 = vunpack.c.h.b16 %v1609
        %v1909 = vunpack.c.l.b16 %v1610
        %v1910 = vunpack.c.h.b16 %v1610
        %v1911 = vunpack.c.l.b16 %v1611
        %v1912 = vunpack.c.h.b16 %v1611
        %v1913 = vunpack.c.l.b16 %v1612
        %v1914 = vunpack.c.h.b16 %v1612
        %v1915 = vunpack.c.l.b16 %v1613
        %v1916 = vunpack.c.h.b16 %v1613
        %v1917 = vunpack.c.l.b16 %v1614
        %v1918 = vunpack.c.h.b16 %v1614
        %v1919 = vunpack.c.l.b16 %v1615
        %v1920 = vunpack.c.h.b16 %v1615
        %v1921 = vunpack.c.l.b16 %v1616
        %v1922 = vunpack.c.h.b16 %v1616
        %v1923 = vunpack.c.l.b16 %v1617
        %v1924 = vunpack.c.h.b16 %v1617
        %v1925 = vunpack.c.l.b16 %v1618
        %v1926 = vunpack.c.h.b16 %v1618
        %v1927 = vunpack.c.l.b16 %v1619
        %v1928 = vunpack.c.h.b16 %v1619
        %v1929 = vunpack.c.l.b16 %v1620
        %v1930 = vunpack.c.h.b16 %v1620
        %v1931 = vunpack.c.l.b16 %v1621
        %v1932 = vunpack.c.h.b16 %v1621
        %v1933 = vunpack.c.l.b16 %v1622
        %v1934 = vunpack.c.h.b16 %v1622
        %v1935 = vunpack.c.l.b16 %v1623
        %v1936 = vunpack.c.h.b16 %v1623
        %v1937 = vunpack.c.l.b16 %v1624
        %v1938 = vunpack.c.h.b16 %v1624
        %v1939 = vunpack.c.l.b16 %v1625
        %v1940 = vunpack.c.h.b16 %v1625
        %v1941 = vunpack.c.l.b16 %v1626
        %v1942 = vunpack.c.h.b16 %v1626
        %v1943 = vunpack.c.l.b16 %v1627
        %v1944 = vunpack.c.h.b16 %v1627
        %v1945 = vunpack.c.l.b16 %v1628
        %v1946 = vunpack.c.h.b16 %v1628
        %v1947 = vunpack.c.l.b16 %v1629
        %v1948 = vunpack.c.h.b16 %v1629
        %v1949 = vunpack.c.l.b16 %v1630
        %v1950 = vunpack.c.h.b16 %v1630
        %v1951 = vpack.c.b16 %v1765, %v1759
        %v1952 = vpack.c.b16 %v1766, %v1760
        %v1953 = vpack.c.b16 %v1767, %v1761
        %v1954 = vpack.c.b16 %v1768, %v1762
        %v1955 = vpack.c.b16 %v1769, %v1763
        %v1956 = vpack.c.b16 %v1770, %v1764
        %v1957 = vpack.c.b16 %v1777, %v1771
        %v1958 = vpack.c.b16 %v1778, %v1772
        %v1959 = vpack.c.b16 %v1779, %v1773
        %v1960 = vpack.c.b16 %v1780, %v1774
        %v1961 = vpack.c.b16 %v1781, %v1775
        %v1962 = vpack.c.b16 %v1782, %v1776
        %v1963 = vpack.c.b16 %v1789, %v1783
        %v1964 = vpack.c.b16 %v1790, %v1784
        %v1965 = vpack.c.b16 %v1791, %v1785
        %v1966 = vpack.c.b16 %v1792, %v1786
        %v1967 = vpack.c.b16 %v1793, %v1787
        %v1968 = vpack.c.b16 %v1794, %v1788
        %v1969 = vpack.c.b16 %v1801, %v1795
        %v1970 = vpack.c.b16 %v1802, %v1796
        %v1971 = vpack.c.b16 %v1803, %v1797
        %v1972 = vpack.c.b16 %v1804, %v1798
        %v1973 = vpack.c.b16 %v1805, %v1799
        %v1974 = vpack.c.b16 %v1806, %v1800
        %v1975 = vpack.c.b16 %v1813, %v1807
        %v1976 = vpack.c.b16 %v1814, %v1808
        %v1977 = vpack.c.b16 %v1815, %v1809
        %v1978 = vpack.c.b16 %v1816, %v1810
        %v1979 = vpack.c.b16 %v1817, %v1811
        %v1980 = vpack.c.b16 %v1818, %v1812
        %v1981 = vpack.c.b16 %v1825, %v1819
        %v1982 = vpack.c.b16 %v1826, %v1820
        %v1983 = vpack.c.b16 %v1827, %v1821
        %v1984 = vpack.c.b16 %v1828, %v1822
        %v1985 = vpack.c.b16 %v1829, %v1823
        %v1986 = vpack.c.b16 %v1830, %v1824
        %v1987 = vpack.c.b16 %v1837, %v1831
        %v1988 = vpack.c.b16 %v1838, %v1832
        %v1989 = vpack.c.b16 %v1839, %v1833
        %v1990 = vpack.c.b16 %v1840, %v1834
        %v1991 = vpack.c.b16 %v1841, %v1835
        %v1992 = vpack.c.b16 %v1842, %v1836
        %v1993 = vpack.c.b16 %v1849, %v1843
        %v1994 = vpack.c.b16 %v1850, %v1844
        %v1995 = vpack.c.b16 %v1851, %v1845
        %v1996 = vpack.c.b16 %v1852, %v1846
        %v1997 = vpack.c.b16 %v1853, %v1847
        %v1998 = vpack.c.b16 %v1854, %v1848
        %v1999 = vpack.c.b16 %v1861, %v1855
        %v2000 = vpack.c.b16 %v1862, %v1856
        %v2001 = vpack.c.b16 %v1863, %v1857
        %v2002 = vpack.c.b16 %v1864, %v1858
        %v2003 = vpack.c.b16 %v1865, %v1859
        %v2004 = vpack.c.b16 %v1866, %v1860
        %v2005 = vpack.c.b16 %v1873, %v1867
        %v2006 = vpack.c.b16 %v1874, %v1868
        %v2007 = vpack.c.b16 %v1875, %v1869
        %v2008 = vpack.c.b16 %v1876, %v1870
        %v2009 = vpack.c.b16 %v1877, %v1871
        %v2010 = vpack.c.b16 %v1878, %v1872
        %v2011 = vpack.c.b16 %v1885, %v1879
        %v2012 = vpack.c.b16 %v1886, %v1880
        %v2013 = vpack.c.b16 %v1887, %v1881
        %v2014 = vpack.c.b16 %v1888, %v1882
        %v2015 = vpack.c.b16 %v1889, %v1883
        %v2016 = vpack.c.b16 %v1890, %v1884
        %v2017 = vpack.c.b16 %v1897, %v1891
        %v2018 = vpack.c.b16 %v1898, %v1892
        %v2019 = vpack.c.b16 %v1899, %v1893
        %v2020 = vpack.c.b16 %v1900, %v1894
        %v2021 = vpack.c.b16 %v1901, %v1895
        %v2022 = vpack.c.b16 %v1902, %v1896
        %v2023 = vpack.c.b16 %v1909, %v1903
        %v2024 = vpack.c.b16 %v1910, %v1904
        %v2025 = vpack.c.b16 %v1911, %v1905
        %v2026 = vpack.c.b16 %v1912, %v1906
        %v2027 = vpack.c.b16 %v1913, %v1907
        %v2028 = vpack.c.b16 %v1914, %v1908
        %v2029 = vpack.c.b16 %v1921, %v1915
        %v2030 = vpack.c.b16 %v1922, %v1916
        %v2031 = vpack.c.b16 %v1923, %v1917
        %v2032 = vpack.c.b16 %v1924, %v1918
        %v2033 = vpack.c.b16 %v1925, %v1919
        %v2034 = vpack.c.b16 %v1926, %v1920
        %v2035 = vpack.c.b16 %v1933, %v1927
        %v2036 = vpack.c.b16 %v1934, %v1928
        %v2037 = vpack.c.b16 %v1935, %v1929
        %v2038 = vpack.c.b16 %v1936, %v1930
        %v2039 = vpack.c.b16 %v1937, %v1931
        %v2040 = vpack.c.b16 %v1938, %v1932
        %v2041 = vpack.c.b16 %v1945, %v1939
        %v2042 = vpack.c.b16 %v1946, %v1940
        %v2043 = vpack.c.b16 %v1947, %v1941
        %v2044 = vpack.c.b16 %v1948, %v1942
        %v2045 = vpack.c.b16 %v1949, %v1943
        %v2046 = vpack.c.b16 %v1950, %v1944
        %2143 = vmatprep.subr.bf16.mxu0 %v1952
        %2144 = vmatpush1.bf16.msra.mxu0 %v1951
        %2145 = vmatprep.subr.bf16.mxu0 %v1958
        %2146 = vmatpush1.bf16.msra.mxu0 %v1957
        %2147 = vmatprep.subr.bf16.mxu0 %v1964
        %2148 = vmatpush1.bf16.msra.mxu0 %v1963
        %2149 = vmatprep.subr.bf16.mxu0 %v1970
        %2150 = vmatpush1.bf16.msra.mxu0 %v1969
        %2151 = vmatprep.subr.bf16.mxu0 %v1976
        %2152 = vmatpush1.bf16.msra.mxu0 %v1975
        %2153 = vmatprep.subr.bf16.mxu0 %v1982
        %2154 = vmatpush1.bf16.msra.mxu0 %v1981
        %2155 = vmatprep.subr.bf16.mxu0 %v1988
        %2156 = vmatpush1.bf16.msra.mxu0 %v1987
        %2157 = vmatprep.subr.bf16.mxu0 %v1994
        %2158 = vmatpush1.bf16.msra.mxu0 %v1993
        %2159 = vmatprep.subr.bf16.mxu0 %v2000
        %2160 = vmatpush1.bf16.msra.mxu0 %v1999
        %2161 = vmatprep.subr.bf16.mxu0 %v2006
        %2162 = vmatpush1.bf16.msra.mxu0 %v2005
        %2163 = vmatprep.subr.bf16.mxu0 %v2012
        %2164 = vmatpush1.bf16.msra.mxu0 %v2011
        %2165 = vmatprep.subr.bf16.mxu0 %v2018
        %2166 = vmatpush1.bf16.msra.mxu0 %v2017
        %2167 = vmatprep.subr.bf16.mxu0 %v2024
        %2168 = vmatpush1.bf16.msra.mxu0 %v2023
        %2169 = vmatprep.subr.bf16.mxu0 %v2030
        %2170 = vmatpush1.bf16.msra.mxu0 %v2029
        %2171 = vmatprep.subr.bf16.mxu0 %v2036
        %2172 = vmatpush1.bf16.msra.mxu0 %v2035
        %2173 = vmatprep.subr.bf16.mxu0 %v2042
        %2174 = vmatpush1.bf16.msra.mxu0 %v2041
        %2175 = vmatprep.mubr.bf16.mxu0 %v1518
        %2176 = vmatmul.mubr.bf16.gmra.mrb[0].mxu0 %v1517
        %v2177 = vpop.f32.mrb[0].mxu0
        %v2178 = vadd.f32 %v1636, %v2177
        %v2179 = vpop.f32.mrb[0].mxu0
        %v2180 = vadd.f32 %v1640, %v2179
        %v2181 = vpop.f32.mrb[0].mxu0
        %v2182 = vadd.f32 %v1636, %v2181
        %v2183 = vpop.f32.mrb[0].mxu0
        %v2184 = vadd.f32 %v1640, %v2183
        %2185 = vmatprep.mubr.bf16.mxu0 %v1520
        %2186 = vmatmul.mubr.bf16.gmra.mrb[0].mxu0 %v1519
        %v2187 = vpop.f32.mrb[0].mxu0
        %v2188 = vadd.f32 %v1636, %v2187
        %v2189 = vpop.f32.mrb[0].mxu0
        %v2190 = vadd.f32 %v1640, %v2189
        %v2191 = vpop.f32.mrb[0].mxu0
        %v2192 = vadd.f32 %v1636, %v2191
        %v2193 = vpop.f32.mrb[0].mxu0
        %v2194 = vadd.f32 %v1640, %v2193
        %2195 = vmatprep.mubr.bf16.mxu0 %v1522
        %2196 = vmatmul.mubr.bf16.gmra.mrb[0].mxu0 %v1521
        %v2197 = vpop.f32.mrb[0].mxu0
        %v2198 = vadd.f32 %v1636, %v2197
        %v2199 = vpop.f32.mrb[0].mxu0
        %v2200 = vadd.f32 %v1640, %v2199
        %v2201 = vpop.f32.mrb[0].mxu0
        %v2202 = vadd.f32 %v1636, %v2201
        %v2203 = vpop.f32.mrb[0].mxu0
        %v2204 = vadd.f32 %v1640, %v2203
        %2205 = vmatprep.mubr.bf16.mxu0 %v1524
        %2206 = vmatmul.mubr.bf16.gmra.mrb[0].mxu0 %v1523
        %v2207 = vpop.f32.mrb[0].mxu0
        %v2208 = vadd.f32 %v1636, %v2207
        %v2209 = vpop.f32.mrb[0].mxu0
        %v2210 = vadd.f32 %v1640, %v2209
        %v2211 = vpop.f32.mrb[0].mxu0
        %v2212 = vadd.f32 %v1636, %v2211
        %v2213 = vpop.f32.mrb[0].mxu0
        %v2214 = vadd.f32 %v1640, %v2213
        %2215 = vmatprep.mubr.bf16.mxu0 %v1526
        %2216 = vmatmul.mubr.bf16.gmra.mrb[0].mxu0 %v1525
        %v2217 = vpop.f32.mrb[0].mxu0
        %v2218 = vadd.f32 %v1636, %v2217
        %v2219 = vpop.f32.mrb[0].mxu0
        %v2220 = vadd.f32 %v1640, %v2219
        %v2221 = vpop.f32.mrb[0].mxu0
        %v2222 = vadd.f32 %v1636, %v2221
        %v2223 = vpop.f32.mrb[0].mxu0
        %v2224 = vadd.f32 %v1640, %v2223
        %2225 = vmatprep.mubr.bf16.mxu0 %v1528
        %2226 = vmatmul.mubr.bf16.gmra.mrb[0].mxu0 %v1527
        %v2227 = vpop.f32.mrb[0].mxu0
        %v2228 = vadd.f32 %v1636, %v2227
        %v2229 = vpop.f32.mrb[0].mxu0
        %v2230 = vadd.f32 %v1640, %v2229
        %v2231 = vpop.f32.mrb[0].mxu0
        %v2232 = vadd.f32 %v1636, %v2231
        %v2233 = vpop.f32.mrb[0].mxu0
        %v2234 = vadd.f32 %v1640, %v2233
        %2235 = vmatprep.mubr.bf16.mxu0 %v1530
        %2236 = vmatmul.mubr.bf16.gmra.mrb[0].mxu0 %v1529
        %v2237 = vpop.f32.mrb[0].mxu0
        %v2238 = vadd.f32 %v1636, %v2237
        %v2239 = vpop.f32.mrb[0].mxu0
        %v2240 = vadd.f32 %v1640, %v2239
        %v2241 = vpop.f32.mrb[0].mxu0
        %v2242 = vadd.f32 %v1636, %v2241
        %v2243 = vpop.f32.mrb[0].mxu0
        %v2244 = vadd.f32 %v1640, %v2243
        %2245 = vmatprep.mubr.bf16.mxu0 %v1532
        %2246 = vmatmul.mubr.bf16.gmra.mrb[0].mxu0 %v1531
        %v2247 = vpop.f32.mrb[0].mxu0
        %v2248 = vadd.f32 %v1636, %v2247
        %v2249 = vpop.f32.mrb[0].mxu0
        %v2250 = vadd.f32 %v1640, %v2249
        %v2251 = vpop.f32.mrb[0].mxu0
        %v2252 = vadd.f32 %v1636, %v2251
        %v2253 = vpop.f32.mrb[0].mxu0
        %v2254 = vadd.f32 %v1640, %v2253
        %2255 = vmatprep.mubr.bf16.mxu0 %v1534
        %2256 = vmatmul.mubr.bf16.gmra.mrb[0].mxu0 %v1533
        %v2257 = vpop.f32.mrb[0].mxu0
        %v2258 = vadd.f32 %v1636, %v2257
        %v2259 = vpop.f32.mrb[0].mxu0
        %v2260 = vadd.f32 %v1640, %v2259
        %v2261 = vpop.f32.mrb[0].mxu0
        %v2262 = vadd.f32 %v1636, %v2261
        %v2263 = vpop.f32.mrb[0].mxu0
        %v2264 = vadd.f32 %v1640, %v2263
        %2265 = vdwg.mxu0
        %2266 = vmatprep.subr.bf16.mxu0 %v1954
        %2267 = vmatpush1.bf16.msra.mxu0 %v1953
        %2268 = vmatprep.subr.bf16.mxu0 %v1960
        %2269 = vmatpush1.bf16.msra.mxu0 %v1959
        %2270 = vmatprep.subr.bf16.mxu0 %v1966
        %2271 = vmatpush1.bf16.msra.mxu0 %v1965
        %2272 = vmatprep.subr.bf16.mxu0 %v1972
        %2273 = vmatpush1.bf16.msra.mxu0 %v1971
        %2274 = vmatprep.subr.bf16.mxu0 %v1978
        %2275 = vmatpush1.bf16.msra.mxu0 %v1977
        %2276 = vmatprep.subr.bf16.mxu0 %v1984
        %2277 = vmatpush1.bf16.msra.mxu0 %v1983
        %2278 = vmatprep.subr.bf16.mxu0 %v1990
        %2279 = vmatpush1.bf16.msra.mxu0 %v1989
        %2280 = vmatprep.subr.bf16.mxu0 %v1996
        %2281 = vmatpush1.bf16.msra.mxu0 %v1995
        %2282 = vmatprep.subr.bf16.mxu0 %v2002
        %2283 = vmatpush1.bf16.msra.mxu0 %v2001
        %2284 = vmatprep.subr.bf16.mxu0 %v2008
        %2285 = vmatpush1.bf16.msra.mxu0 %v2007
        %2286 = vmatprep.subr.bf16.mxu0 %v2014
        %2287 = vmatpush1.bf16.msra.mxu0 %v2013
        %2288 = vmatprep.subr.bf16.mxu0 %v2020
        %2289 = vmatpush1.bf16.msra.mxu0 %v2019
        %2290 = vmatprep.subr.bf16.mxu0 %v2026
        %2291 = vmatpush1.bf16.msra.mxu0 %v2025
        %2292 = vmatprep.subr.bf16.mxu0 %v2032
        %2293 = vmatpush1.bf16.msra.mxu0 %v2031
        %2294 = vmatprep.subr.bf16.mxu0 %v2038
        %2295 = vmatpush1.bf16.msra.mxu0 %v2037
        %2296 = vmatprep.subr.bf16.mxu0 %v2044
        %2297 = vmatpush1.bf16.msra.mxu0 %v2043
        %2298 = vmatprep.mubr.bf16.mxu0 %v1518
        %2299 = vmatmul.mubr.bf16.gmra.mrb[0].mxu0 %v1517
        %v2300 = vpop.f32.mrb[0].mxu0
        %v2301 = vadd.f32 %v1644, %v2300
        %v2302 = vpop.f32.mrb[0].mxu0
        %v2303 = vadd.f32 %v1648, %v2302
        %v2304 = vpop.f32.mrb[0].mxu0
        %v2305 = vadd.f32 %v1644, %v2304
        %v2306 = vpop.f32.mrb[0].mxu0
        %v2307 = vadd.f32 %v1648, %v2306
        %2308 = vmatprep.mubr.bf16.mxu0 %v1520
        %2309 = vmatmul.mubr.bf16.gmra.mrb[0].mxu0 %v1519
        %v2310 = vpop.f32.mrb[0].mxu0
        %v2311 = vadd.f32 %v1644, %v2310
        %v2312 = vpop.f32.mrb[0].mxu0
        %v2313 = vadd.f32 %v1648, %v2312
        %v2314 = vpop.f32.mrb[0].mxu0
        %v2315 = vadd.f32 %v1644, %v2314
        %v2316 = vpop.f32.mrb[0].mxu0
        %v2317 = vadd.f32 %v1648, %v2316
        %2318 = vmatprep.mubr.bf16.mxu0 %v1522
        %2319 = vmatmul.mubr.bf16.gmra.mrb[0].mxu0 %v1521
        %v2320 = vpop.f32.mrb[0].mxu0
        %v2321 = vadd.f32 %v1644, %v2320
        %v2322 = vpop.f32.mrb[0].mxu0
        %v2323 = vadd.f32 %v1648, %v2322
        %v2324 = vpop.f32.mrb[0].mxu0
        %v2325 = vadd.f32 %v1644, %v2324
        %v2326 = vpop.f32.mrb[0].mxu0
        %v2327 = vadd.f32 %v1648, %v2326
        %2328 = vmatprep.mubr.bf16.mxu0 %v1524
        %2329 = vmatmul.mubr.bf16.gmra.mrb[0].mxu0 %v1523
        %v2330 = vpop.f32.mrb[0].mxu0
        %v2331 = vadd.f32 %v1644, %v2330
        %v2332 = vpop.f32.mrb[0].mxu0
        %v2333 = vadd.f32 %v1648, %v2332
        %v2334 = vpop.f32.mrb[0].mxu0
        %v2335 = vadd.f32 %v1644, %v2334
        %v2336 = vpop.f32.mrb[0].mxu0
        %v2337 = vadd.f32 %v1648, %v2336
        %2338 = vmatprep.mubr.bf16.mxu0 %v1526
        %2339 = vmatmul.mubr.bf16.gmra.mrb[0].mxu0 %v1525
        %v2340 = vpop.f32.mrb[0].mxu0
        %v2341 = vadd.f32 %v1644, %v2340
        %v2342 = vpop.f32.mrb[0].mxu0
        %v2343 = vadd.f32 %v1648, %v2342
        %v2344 = vpop.f32.mrb[0].mxu0
        %v2345 = vadd.f32 %v1644, %v2344
        %v2346 = vpop.f32.mrb[0].mxu0
        %v2347 = vadd.f32 %v1648, %v2346
        %2348 = vmatprep.mubr.bf16.mxu0 %v1528
        %2349 = vmatmul.mubr.bf16.gmra.mrb[0].mxu0 %v1527
        %v2350 = vpop.f32.mrb[0].mxu0
        %v2351 = vadd.f32 %v1644, %v2350
        %v2352 = vpop.f32.mrb[0].mxu0
        %v2353 = vadd.f32 %v1648, %v2352
        %v2354 = vpop.f32.mrb[0].mxu0
        %v2355 = vadd.f32 %v1644, %v2354
        %v2356 = vpop.f32.mrb[0].mxu0
        %v2357 = vadd.f32 %v1648, %v2356
        %2358 = vmatprep.mubr.bf16.mxu0 %v1530
        %2359 = vmatmul.mubr.bf16.gmra.mrb[0].mxu0 %v1529
        %v2360 = vpop.f32.mrb[0].mxu0
        %v2361 = vadd.f32 %v1644, %v2360
        %v2362 = vpop.f32.mrb[0].mxu0
        %v2363 = vadd.f32 %v1648, %v2362
        %v2364 = vpop.f32.mrb[0].mxu0
        %v2365 = vadd.f32 %v1644, %v2364
        %v2366 = vpop.f32.mrb[0].mxu0
        %v2367 = vadd.f32 %v1648, %v2366
        %2368 = vmatprep.mubr.bf16.mxu0 %v1532
        %2369 = vmatmul.mubr.bf16.gmra.mrb[0].mxu0 %v1531
        %v2370 = vpop.f32.mrb[0].mxu0
        %v2371 = vadd.f32 %v1644, %v2370
        %v2372 = vpop.f32.mrb[0].mxu0
        %v2373 = vadd.f32 %v1648, %v2372
        %v2374 = vpop.f32.mrb[0].mxu0
        %v2375 = vadd.f32 %v1644, %v2374
        %v2376 = vpop.f32.mrb[0].mxu0
        %v2377 = vadd.f32 %v1648, %v2376
        %2378 = vmatprep.mubr.bf16.mxu0 %v1534
        %2379 = vmatmul.mubr.bf16.gmra.mrb[0].mxu0 %v1533
        %v2380 = vpop.f32.mrb[0].mxu0
        %v2381 = vadd.f32 %v1644, %v2380
        %v2382 = vpop.f32.mrb[0].mxu0
        %v2383 = vadd.f32 %v1648, %v2382
        %v2384 = vpop.f32.mrb[0].mxu0
        %v2385 = vadd.f32 %v1644, %v2384
        %v2386 = vpop.f32.mrb[0].mxu0
        %v2387 = vadd.f32 %v1648, %v2386
        %2388 = vdwg.mxu0
        %2389 = vmatprep.subr.bf16.mxu0 %v1956
        %2390 = vmatpush1.bf16.msra.mxu0 %v1955
        %2391 = vmatprep.subr.bf16.mxu0 %v1962
        %2392 = vmatpush1.bf16.msra.mxu0 %v1961
        %2393 = vmatprep.subr.bf16.mxu0 %v1968
        %2394 = vmatpush1.bf16.msra.mxu0 %v1967
        %2395 = vmatprep.subr.bf16.mxu0 %v1974
        %2396 = vmatpush1.bf16.msra.mxu0 %v1973
        %2397 = vmatprep.subr.bf16.mxu0 %v1980
        %2398 = vmatpush1.bf16.msra.mxu0 %v1979
        %2399 = vmatprep.subr.bf16.mxu0 %v1986
        %2400 = vmatpush1.bf16.msra.mxu0 %v1985
        %2401 = vmatprep.subr.bf16.mxu0 %v1992
        %2402 = vmatpush1.bf16.msra.mxu0 %v1991
        %2403 = vmatprep.subr.bf16.mxu0 %v1998
        %2404 = vmatpush1.bf16.msra.mxu0 %v1997
        %2405 = vmatprep.subr.bf16.mxu0 %v2004
        %2406 = vmatpush1.bf16.msra.mxu0 %v2003
        %2407 = vmatprep.subr.bf16.mxu0 %v2010
        %2408 = vmatpush1.bf16.msra.mxu0 %v2009
        %2409 = vmatprep.subr.bf16.mxu0 %v2016
        %2410 = vmatpush1.bf16.msra.mxu0 %v2015
        %2411 = vmatprep.subr.bf16.mxu0 %v2022
        %2412 = vmatpush1.bf16.msra.mxu0 %v2021
        %2413 = vmatprep.subr.bf16.mxu0 %v2028
        %2414 = vmatpush1.bf16.msra.mxu0 %v2027
        %2415 = vmatprep.subr.bf16.mxu0 %v2034
        %2416 = vmatpush1.bf16.msra.mxu0 %v2033
        %2417 = vmatprep.subr.bf16.mxu0 %v2040
        %2418 = vmatpush1.bf16.msra.mxu0 %v2039
        %2419 = vmatprep.subr.bf16.mxu0 %v2046
        %2420 = vmatpush1.bf16.msra.mxu0 %v2045
        %2421 = vmatprep.mubr.bf16.mxu0 %v1518
        %2422 = vmatmul.mubr.bf16.gmra.mrb[0].mxu0 %v1517
        %v2423 = vpop.f32.mrb[0].mxu0
        %v2424 = vadd.f32 %v1652, %v2423
        %v2425 = vpop.f32.mrb[0].mxu0
        %v2426 = vadd.f32 %v1656, %v2425
        %v2427 = vpop.f32.mrb[0].mxu0
        %v2428 = vadd.f32 %v1652, %v2427
        %v2429 = vpop.f32.mrb[0].mxu0
        %v2430 = vadd.f32 %v1656, %v2429
        %2431 = vmatprep.mubr.bf16.mxu0 %v1520
        %2432 = vmatmul.mubr.bf16.gmra.mrb[0].mxu0 %v1519
        %v2433 = vpop.f32.mrb[0].mxu0
        %v2434 = vadd.f32 %v1652, %v2433
        %v2435 = vpop.f32.mrb[0].mxu0
        %v2436 = vadd.f32 %v1656, %v2435
        %v2437 = vpop.f32.mrb[0].mxu0
        %v2438 = vadd.f32 %v1652, %v2437
        %v2439 = vpop.f32.mrb[0].mxu0
        %v2440 = vadd.f32 %v1656, %v2439
        %2441 = vmatprep.mubr.bf16.mxu0 %v1522
        %2442 = vmatmul.mubr.bf16.gmra.mrb[0].mxu0 %v1521
        %v2443 = vpop.f32.mrb[0].mxu0
        %v2444 = vadd.f32 %v1652, %v2443
        %v2445 = vpop.f32.mrb[0].mxu0
        %v2446 = vadd.f32 %v1656, %v2445
        %v2447 = vpop.f32.mrb[0].mxu0
        %v2448 = vadd.f32 %v1652, %v2447
        %v2449 = vpop.f32.mrb[0].mxu0
        %v2450 = vadd.f32 %v1656, %v2449
        %2451 = vmatprep.mubr.bf16.mxu0 %v1524
        %2452 = vmatmul.mubr.bf16.gmra.mrb[0].mxu0 %v1523
        %v2453 = vpop.f32.mrb[0].mxu0
        %v2454 = vadd.f32 %v1652, %v2453
        %v2455 = vpop.f32.mrb[0].mxu0
        %v2456 = vadd.f32 %v1656, %v2455
        %v2457 = vpop.f32.mrb[0].mxu0
        %v2458 = vadd.f32 %v1652, %v2457
        %v2459 = vpop.f32.mrb[0].mxu0
        %v2460 = vadd.f32 %v1656, %v2459
        %2461 = vmatprep.mubr.bf16.mxu0 %v1526
        %2462 = vmatmul.mubr.bf16.gmra.mrb[0].mxu0 %v1525
        %v2463 = vpop.f32.mrb[0].mxu0
        %v2464 = vadd.f32 %v1652, %v2463
        %v2465 = vpop.f32.mrb[0].mxu0
        %v2466 = vadd.f32 %v1656, %v2465
        %v2467 = vpop.f32.mrb[0].mxu0
        %v2468 = vadd.f32 %v1652, %v2467
        %v2469 = vpop.f32.mrb[0].mxu0
        %v2470 = vadd.f32 %v1656, %v2469
        %2471 = vmatprep.mubr.bf16.mxu0 %v1528
        %2472 = vmatmul.mubr.bf16.gmra.mrb[0].mxu0 %v1527
        %v2473 = vpop.f32.mrb[0].mxu0
        %v2474 = vadd.f32 %v1652, %v2473
        %v2475 = vpop.f32.mrb[0].mxu0
        %v2476 = vadd.f32 %v1656, %v2475
        %v2477 = vpop.f32.mrb[0].mxu0
        %v2478 = vadd.f32 %v1652, %v2477
        %v2479 = vpop.f32.mrb[0].mxu0
        %v2480 = vadd.f32 %v1656, %v2479
        %2481 = vmatprep.mubr.bf16.mxu0 %v1530
        %2482 = vmatmul.mubr.bf16.gmra.mrb[0].mxu0 %v1529
        %v2483 = vpop.f32.mrb[0].mxu0
        %v2484 = vadd.f32 %v1652, %v2483
        %v2485 = vpop.f32.mrb[0].mxu0
        %v2486 = vadd.f32 %v1656, %v2485
        %v2487 = vpop.f32.mrb[0].mxu0
        %v2488 = vadd.f32 %v1652, %v2487
        %v2489 = vpop.f32.mrb[0].mxu0
        %v2490 = vadd.f32 %v1656, %v2489
        %2491 = vmatprep.mubr.bf16.mxu0 %v1532
        %2492 = vmatmul.mubr.bf16.gmra.mrb[0].mxu0 %v1531
        %v2493 = vpop.f32.mrb[0].mxu0
        %v2494 = vadd.f32 %v1652, %v2493
        %v2495 = vpop.f32.mrb[0].mxu0
        %v2496 = vadd.f32 %v1656, %v2495
        %v2497 = vpop.f32.mrb[0].mxu0
        %v2498 = vadd.f32 %v1652, %v2497
        %v2499 = vpop.f32.mrb[0].mxu0
        %v2500 = vadd.f32 %v1656, %v2499
        %2501 = vmatprep.mubr.bf16.mxu0 %v1534
        %2502 = vmatmul.mubr.bf16.gmra.mrb[0].mxu0 %v1533
        %v2503 = vpop.f32.mrb[0].mxu0
        %v2504 = vadd.f32 %v1652, %v2503
        %v2505 = vpop.f32.mrb[0].mxu0
        %v2506 = vadd.f32 %v1656, %v2505
        %v2507 = vpop.f32.mrb[0].mxu0
        %v2508 = vadd.f32 %v1652, %v2507
        %v2509 = vpop.f32.mrb[0].mxu0
        %v2510 = vadd.f32 %v1656, %v2509
        %2511 = vdwg.mxu0
        %v2512 = vlaneseq
        %v2513 = vand.u32 %v2512, 127
        %vm2514 = vcmp.lt.s32.totalorder %v2513, 65
        %v2515 = vpack.c.bf16 %v2182, %v2178
        %v2516 = vpack.c.bf16 %v2184, %v2180
        %v2517 = vpack.c.bf16 %v2192, %v2188
        %v2518 = vpack.c.bf16 %v2194, %v2190
        %v2519 = vpack.c.bf16 %v2202, %v2198
        %v2520 = vpack.c.bf16 %v2204, %v2200
        %v2521 = vpack.c.bf16 %v2212, %v2208
        %v2522 = vpack.c.bf16 %v2214, %v2210
        %v2523 = vpack.c.bf16 %v2218, %v2218
        %v2524 = vpack.c.bf16 %v2220, %v2220
        %v2525 = vpack.c.bf16 %v2305, %v2301
        %v2526 = vpack.c.bf16 %v2307, %v2303
        %v2527 = vpack.c.bf16 %v2315, %v2311
        %v2528 = vpack.c.bf16 %v2317, %v2313
        %v2529 = vpack.c.bf16 %v2325, %v2321
        %v2530 = vpack.c.bf16 %v2327, %v2323
        %v2531 = vpack.c.bf16 %v2335, %v2331
        %v2532 = vpack.c.bf16 %v2337, %v2333
        %v2533 = vpack.c.bf16 %v2341, %v2341
        %v2534 = vpack.c.bf16 %v2343, %v2343
        %v2535 = vpack.c.bf16 %v2428, %v2424
        %v2536 = vpack.c.bf16 %v2430, %v2426
        %v2537 = vpack.c.bf16 %v2438, %v2434
        %v2538 = vpack.c.bf16 %v2440, %v2436
        %v2539 = vpack.c.bf16 %v2448, %v2444
        %v2540 = vpack.c.bf16 %v2450, %v2446
        %v2541 = vpack.c.bf16 %v2458, %v2454
        %v2542 = vpack.c.bf16 %v2460, %v2456
        %v2543 = vpack.c.bf16 %v2464, %v2464
        %v2544 = vpack.c.bf16 %v2466, %v2466
        %2545 = vmatprep.subr.bf16.mxu0 %v2526
        %2546 = vmatpush1.bf16.xpose.msra.mxu0 %v2525
        %2547 = vmatprep.subr.bf16.mxu0 %v2528
        %2548 = vmatpush1.bf16.xpose.msra.mxu0 %v2527
        %2549 = vmatprep.subr.bf16.mxu0 %v2530
        %2550 = vmatpush1.bf16.xpose.msra.mxu0 %v2529
        %2551 = vmatprep.subr.bf16.mxu0 %v2532
        %2552 = vmatpush1.bf16.xpose.msra.mxu0 %v2531
        %2553 = vmatprep.subr.bf16.mxu0 %v2534
        %2554 = vmatpush1.bf16.xpose.msra.mxu0 %v2533
        %2555 = vmatprep.subr.bf16.mxu0 0
        %2556 = vmatpush1.bf16.xpose.msra.mxu0 0
        %2557 = vmatprep.subr.bf16.mxu0 0
        %2558 = vmatpush1.bf16.xpose.msra.mxu0 0
        %2559 = vmatprep.subr.bf16.mxu0 0
        %2560 = vmatpush1.bf16.xpose.msra.mxu0 0
        %2561 = vmatprep.subr.bf16.mxu0 0
        %2562 = vmatpush1.bf16.xpose.msra.mxu0 0
        %2563 = vmatprep.subr.bf16.mxu0 0
        %2564 = vmatpush1.bf16.xpose.msra.mxu0 0
        %2565 = vmatprep.subr.bf16.mxu0 0
        %2566 = vmatpush1.bf16.xpose.msra.mxu0 0
        %2567 = vmatprep.subr.bf16.mxu0 0
        %2568 = vmatpush1.bf16.xpose.msra.mxu0 0
        %2569 = vmatprep.subr.bf16.mxu0 0
        %2570 = vmatpush1.bf16.xpose.msra.mxu0 0
        %2571 = vmatprep.subr.bf16.mxu0 0
        %2572 = vmatpush1.bf16.xpose.msra.mxu0 0
        %2573 = vmatprep.subr.bf16.mxu0 0
        %2574 = vmatpush1.bf16.xpose.msra.mxu0 0
        %2575 = vmatprep.subr.bf16.mxu0 0
        %2576 = vmatpush1.bf16.xpose.msra.mxu0 0
        %2577 = vmatprep.mubr.bf16.mxu0 %v2516
        %2578 = vmatmul.mubr.bf16.gmra.mrb[0].mxu0 %v2515
        %v2579 = vpop.f32.mrb[0].mxu0
        %v2580 = vadd.f32 0.0, %v2579
        %v2581 = vpop.f32.mrb[0].mxu0
        %v2582 = vpop.f32.mrb[0].mxu0
        %v2583 = vadd.f32 0.0, %v2582
        %v2584 = vpop.f32.mrb[0].mxu0
        %2585 = vmatprep.mubr.bf16.mxu0 %v2518
        %2586 = vmatmul.mubr.bf16.gmra.mrb[0].mxu0 %v2517
        %v2587 = vpop.f32.mrb[0].mxu0
        %v2588 = vadd.f32 0.0, %v2587
        %v2589 = vpop.f32.mrb[0].mxu0
        %v2590 = vpop.f32.mrb[0].mxu0
        %v2591 = vadd.f32 0.0, %v2590
        %v2592 = vpop.f32.mrb[0].mxu0
        %2593 = vmatprep.mubr.bf16.mxu0 %v2520
        %2594 = vmatmul.mubr.bf16.gmra.mrb[0].mxu0 %v2519
        %v2595 = vpop.f32.mrb[0].mxu0
        %v2596 = vadd.f32 0.0, %v2595
        %v2597 = vpop.f32.mrb[0].mxu0
        %v2598 = vpop.f32.mrb[0].mxu0
        %v2599 = vadd.f32 0.0, %v2598
        %v2600 = vpop.f32.mrb[0].mxu0
        %2601 = vmatprep.mubr.bf16.mxu0 %v2522
        %2602 = vmatmul.mubr.bf16.gmra.mrb[0].mxu0 %v2521
        %v2603 = vpop.f32.mrb[0].mxu0
        %v2604 = vadd.f32 0.0, %v2603
        %v2605 = vpop.f32.mrb[0].mxu0
        %v2606 = vpop.f32.mrb[0].mxu0
        %v2607 = vadd.f32 0.0, %v2606
        %v2608 = vpop.f32.mrb[0].mxu0
        %2609 = vmatprep.mubr.bf16.mxu0 %v2524
        %2610 = vmatmul.mubr.bf16.gmra.mrb[0].mxu0 %v2523
        %v2611 = vpop.f32.mrb[0].mxu0
        %v2612 = vadd.f32 0.0, %v2611
        %v2613 = vpop.f32.mrb[0].mxu0
        %v2614 = vpop.f32.mrb[0].mxu0
        %v2615 = vpop.f32.mrb[0].mxu0
        %2616 = vdwg.mxu0
        %v2617 = vsel %vm2514, %v2580, -1e+30
        %v2618 = vsel %vm2514, %v2583, -1e+30
        %v2619 = vsel %vm2514, %v2588, -1e+30
        %v2620 = vsel %vm2514, %v2591, -1e+30
        %v2621 = vsel %vm2514, %v2596, -1e+30
        %v2622 = vsel %vm2514, %v2599, -1e+30
        %v2623 = vsel %vm2514, %v2604, -1e+30
        %v2624 = vsel %vm2514, %v2607, -1e+30
        %v2625 = vsel %vm2514, %v2612, -1e+30
        %vm2626 = vcmask 588800
        %v2627 = vsel %vm2626, %v2617, -inf
        %2628 = vmax.xlane.f32.xlu0 %v2627
        %v2629 = vpop.xlane.xlu0 %2628
        %v2630 = vsel %vm2626, %v2618, -inf
        %2631 = vmax.xlane.f32.xlu0 %v2630
        %v2632 = vpop.xlane.xlu0 %2631
        %v2633 = vsel %vm2626, %v2619, -inf
        %2634 = vmax.xlane.f32.xlu0 %v2633
        %v2635 = vpop.xlane.xlu0 %2634
        %v2636 = vsel %vm2626, %v2620, -inf
        %2637 = vmax.xlane.f32.xlu0 %v2636
        %v2638 = vpop.xlane.xlu0 %2637
        %v2639 = vsel %vm2626, %v2621, -inf
        %2640 = vmax.xlane.f32.xlu0 %v2639
        %v2641 = vpop.xlane.xlu0 %2640
        %v2642 = vsel %vm2626, %v2622, -inf
        %2643 = vmax.xlane.f32.xlu0 %v2642
        %v2644 = vpop.xlane.xlu0 %2643
        %v2645 = vsel %vm2626, %v2623, -inf
        %2646 = vmax.xlane.f32.xlu0 %v2645
        %v2647 = vpop.xlane.xlu0 %2646
        %v2648 = vsel %vm2626, %v2624, -inf
        %2649 = vmax.xlane.f32.xlu0 %v2648
        %v2650 = vpop.xlane.xlu0 %2649
        %v2651 = vsel %vm2626, %v2625, -inf
        %2652 = vmax.xlane.f32.xlu0 %v2651
        %v2653 = vpop.xlane.xlu0 %2652
        %v2654 = vsub.f32 %v2617, %v2629
        %v2655 = vsub.f32 %v2618, %v2632
        %v2656 = vsub.f32 %v2619, %v2635
        %v2657 = vsub.f32 %v2620, %v2638
        %v2658 = vsub.f32 %v2621, %v2641
        %v2659 = vsub.f32 %v2622, %v2644
        %v2660 = vsub.f32 %v2623, %v2647
        %v2661 = vsub.f32 %v2624, %v2650
        %v2662 = vsub.f32 %v2625, %v2653
        %v2663 = vmul.f32 %v2654, 1.442695
        %v2664 = vpow.pop %v2663
        %v2665 = vmul.f32 %v2655, 1.442695
        %v2666 = vpow.pop %v2665
        %v2667 = vmul.f32 %v2656, 1.442695
        %v2668 = vpow.pop %v2667
        %v2669 = vmul.f32 %v2657, 1.442695
        %v2670 = vpow.pop %v2669
        %v2671 = vmul.f32 %v2658, 1.442695
        %v2672 = vpow.pop %v2671
        %v2673 = vmul.f32 %v2659, 1.442695
        %v2674 = vpow.pop %v2673
        %v2675 = vmul.f32 %v2660, 1.442695
        %v2676 = vpow.pop %v2675
        %v2677 = vmul.f32 %v2661, 1.442695
        %v2678 = vpow.pop %v2677
        %v2679 = vmul.f32 %v2662, 1.442695
        %v2680 = vpow.pop %v2679
        %v2681 = vsel %vm2626, %v2664, 0.0
        %2682 = vadd.xlane.f32.xlu0 %v2681
        %v2683 = vpop.xlane.xlu0 %2682
        %v2684 = vsel %vm2626, %v2666, 0.0
        %2685 = vadd.xlane.f32.xlu0 %v2684
        %v2686 = vpop.xlane.xlu0 %2685
        %v2687 = vsel %vm2626, %v2668, 0.0
        %2688 = vadd.xlane.f32.xlu0 %v2687
        %v2689 = vpop.xlane.xlu0 %2688
        %v2690 = vsel %vm2626, %v2670, 0.0
        %2691 = vadd.xlane.f32.xlu0 %v2690
        %v2692 = vpop.xlane.xlu0 %2691
        %v2693 = vsel %vm2626, %v2672, 0.0
        %2694 = vadd.xlane.f32.xlu0 %v2693
        %v2695 = vpop.xlane.xlu0 %2694
        %v2696 = vsel %vm2626, %v2674, 0.0
        %2697 = vadd.xlane.f32.xlu0 %v2696
        %v2698 = vpop.xlane.xlu0 %2697
        %v2699 = vsel %vm2626, %v2676, 0.0
        %2700 = vadd.xlane.f32.xlu0 %v2699
        %v2701 = vpop.xlane.xlu0 %2700
        %v2702 = vsel %vm2626, %v2678, 0.0
        %2703 = vadd.xlane.f32.xlu0 %v2702
        %v2704 = vpop.xlane.xlu0 %2703
        %v2705 = vsel %vm2626, %v2680, 0.0
        %2706 = vadd.xlane.f32.xlu0 %v2705
        %v2707 = vpop.xlane.xlu0 %2706
        %v2708 = vrcp.pop %v2683
        %v2709 = vrcp.pop %v2686
        %v2710 = vrcp.pop %v2689
        %v2711 = vrcp.pop %v2692
        %v2712 = vrcp.pop %v2695
        %v2713 = vrcp.pop %v2698
        %v2714 = vrcp.pop %v2701
        %v2715 = vrcp.pop %v2704
        %v2716 = vrcp.pop %v2707
        %v2717 = vmul.f32 %v2664, %v2708
        %v2718 = vmul.f32 %v2666, %v2709
        %v2719 = vmul.f32 %v2668, %v2710
        %v2720 = vmul.f32 %v2670, %v2711
        %v2721 = vmul.f32 %v2672, %v2712
        %v2722 = vmul.f32 %v2674, %v2713
        %v2723 = vmul.f32 %v2676, %v2714
        %v2724 = vmul.f32 %v2678, %v2715
        %v2725 = vmul.f32 %v2680, %v2716
        %v2726 = vpack.c.bf16 %v2718, %v2717
        %v2727 = vpack.c.bf16 %v2720, %v2719
        %v2728 = vpack.c.bf16 %v2722, %v2721
        %v2729 = vpack.c.bf16 %v2724, %v2723
        %v2730 = vpack.c.bf16 %v2725, %v2725
        %v2732 = vsel %vm2626, %v2726, 0
        %v2735 = vsel %vm2626, %v2727, 0
        %v2738 = vsel %vm2626, %v2728, 0
        %v2741 = vsel %vm2626, %v2729, 0
        %v2744 = vsel %vm2626, %v2730, 0
        %vm2746 = vcmask 1043456
        %v2748 = vsel %vm2746, %v2543, 0
        %v2751 = vsel %vm2746, %v2544, 0
        %2753 = vmatprep.subr.bf16.mxu0 %v2536
        %2754 = vmatpush1.bf16.msra.mxu0 %v2535
        %2755 = vmatprep.subr.bf16.mxu0 %v2538
        %2756 = vmatpush1.bf16.msra.mxu0 %v2537
        %2757 = vmatprep.subr.bf16.mxu0 %v2540
        %2758 = vmatpush1.bf16.msra.mxu0 %v2539
        %2759 = vmatprep.subr.bf16.mxu0 %v2542
        %2760 = vmatpush1.bf16.msra.mxu0 %v2541
        %2761 = vmatprep.subr.bf16.mxu0 %v2751
        %2762 = vmatpush1.bf16.msra.mxu0 %v2748
        %2763 = vmatprep.subr.bf16.mxu0 0
        %2764 = vmatpush1.bf16.msra.mxu0 0
        %2765 = vmatprep.subr.bf16.mxu0 0
        %2766 = vmatpush1.bf16.msra.mxu0 0
        %2767 = vmatprep.subr.bf16.mxu0 0
        %2768 = vmatpush1.bf16.msra.mxu0 0
        %2769 = vmatprep.subr.bf16.mxu0 0
        %2770 = vmatpush1.bf16.msra.mxu0 0
        %2771 = vmatprep.subr.bf16.mxu0 0
        %2772 = vmatpush1.bf16.msra.mxu0 0
        %2773 = vmatprep.subr.bf16.mxu0 0
        %2774 = vmatpush1.bf16.msra.mxu0 0
        %2775 = vmatprep.subr.bf16.mxu0 0
        %2776 = vmatpush1.bf16.msra.mxu0 0
        %2777 = vmatprep.subr.bf16.mxu0 0
        %2778 = vmatpush1.bf16.msra.mxu0 0
        %2779 = vmatprep.subr.bf16.mxu0 0
        %2780 = vmatpush1.bf16.msra.mxu0 0
        %2781 = vmatprep.subr.bf16.mxu0 0
        %2782 = vmatpush1.bf16.msra.mxu0 0
        %2783 = vmatprep.subr.bf16.mxu0 0
        %2784 = vmatpush1.bf16.msra.mxu0 0
        %2785 = vmatprep.mubr.bf16.mxu0 0
        %2786 = vmatmul.mubr.bf16.gmra.mrb[0].mxu0 %v2732
        %v2787 = vpop.f32.mrb[0].mxu0
        %v2788 = vadd.f32 0.0, %v2787
        %v2789 = vpop.f32.mrb[0].mxu0
        %v2790 = vadd.f32 0.0, %v2789
        %v2791 = vpop.f32.mrb[0].mxu0
        %v2792 = vadd.f32 0.0, %v2791
        %v2793 = vpop.f32.mrb[0].mxu0
        %v2794 = vadd.f32 0.0, %v2793
        %2795 = vmatprep.mubr.bf16.mxu0 0
        %2796 = vmatmul.mubr.bf16.gmra.mrb[0].mxu0 %v2735
        %v2797 = vpop.f32.mrb[0].mxu0
        %v2798 = vadd.f32 0.0, %v2797
        %v2799 = vpop.f32.mrb[0].mxu0
        %v2800 = vadd.f32 0.0, %v2799
        %v2801 = vpop.f32.mrb[0].mxu0
        %v2802 = vadd.f32 0.0, %v2801
        %v2803 = vpop.f32.mrb[0].mxu0
        %v2804 = vadd.f32 0.0, %v2803
        %2805 = vmatprep.mubr.bf16.mxu0 0
        %2806 = vmatmul.mubr.bf16.gmra.mrb[0].mxu0 %v2738
        %v2807 = vpop.f32.mrb[0].mxu0
        %v2808 = vadd.f32 0.0, %v2807
        %v2809 = vpop.f32.mrb[0].mxu0
        %v2810 = vadd.f32 0.0, %v2809
        %v2811 = vpop.f32.mrb[0].mxu0
        %v2812 = vadd.f32 0.0, %v2811
        %v2813 = vpop.f32.mrb[0].mxu0
        %v2814 = vadd.f32 0.0, %v2813
        %2815 = vmatprep.mubr.bf16.mxu0 0
        %2816 = vmatmul.mubr.bf16.gmra.mrb[0].mxu0 %v2741
        %v2817 = vpop.f32.mrb[0].mxu0
        %v2818 = vadd.f32 0.0, %v2817
        %v2819 = vpop.f32.mrb[0].mxu0
        %v2820 = vadd.f32 0.0, %v2819
        %v2821 = vpop.f32.mrb[0].mxu0
        %v2822 = vadd.f32 0.0, %v2821
        %v2823 = vpop.f32.mrb[0].mxu0
        %v2824 = vadd.f32 0.0, %v2823
        %2825 = vmatprep.mubr.bf16.mxu0 0
        %2826 = vmatmul.mubr.bf16.gmra.mrb[0].mxu0 %v2744
        %v2827 = vpop.f32.mrb[0].mxu0
        %v2828 = vadd.f32 0.0, %v2827
        %v2829 = vpop.f32.mrb[0].mxu0
        %v2830 = vadd.f32 0.0, %v2829
        %v2831 = vpop.f32.mrb[0].mxu0
        %v2832 = vpop.f32.mrb[0].mxu0
        %2833 = vdwg.mxu0
        %v2834 = vpack.c.bf16 %v2228, %v2222
        %v2835 = vpack.c.bf16 %v2230, %v2224
        %v2836 = vpack.c.bf16 %v2238, %v2232
        %v2837 = vpack.c.bf16 %v2240, %v2234
        %v2838 = vpack.c.bf16 %v2248, %v2242
        %v2839 = vpack.c.bf16 %v2250, %v2244
        %v2840 = vpack.c.bf16 %v2258, %v2252
        %v2841 = vpack.c.bf16 %v2260, %v2254
        %v2842 = vpack.c.bf16 %v2262, %v2262
        %v2843 = vpack.c.bf16 %v2264, %v2264
        %v2844 = vpack.c.bf16 %v2351, %v2345
        %v2845 = vpack.c.bf16 %v2353, %v2347
        %v2846 = vpack.c.bf16 %v2361, %v2355
        %v2847 = vpack.c.bf16 %v2363, %v2357
        %v2848 = vpack.c.bf16 %v2371, %v2365
        %v2849 = vpack.c.bf16 %v2373, %v2367
        %v2850 = vpack.c.bf16 %v2381, %v2375
        %v2851 = vpack.c.bf16 %v2383, %v2377
        %v2852 = vpack.c.bf16 %v2385, %v2385
        %v2853 = vpack.c.bf16 %v2387, %v2387
        %v2854 = vpack.c.bf16 %v2474, %v2468
        %v2855 = vpack.c.bf16 %v2476, %v2470
        %v2856 = vpack.c.bf16 %v2484, %v2478
        %v2857 = vpack.c.bf16 %v2486, %v2480
        %v2858 = vpack.c.bf16 %v2494, %v2488
        %v2859 = vpack.c.bf16 %v2496, %v2490
        %v2860 = vpack.c.bf16 %v2504, %v2498
        %v2861 = vpack.c.bf16 %v2506, %v2500
        %v2862 = vpack.c.bf16 %v2508, %v2508
        %v2863 = vpack.c.bf16 %v2510, %v2510
        %2864 = vmatprep.subr.bf16.mxu0 %v2845
        %2865 = vmatpush1.bf16.xpose.msra.mxu0 %v2844
        %2866 = vmatprep.subr.bf16.mxu0 %v2847
        %2867 = vmatpush1.bf16.xpose.msra.mxu0 %v2846
        %2868 = vmatprep.subr.bf16.mxu0 %v2849
        %2869 = vmatpush1.bf16.xpose.msra.mxu0 %v2848
        %2870 = vmatprep.subr.bf16.mxu0 %v2851
        %2871 = vmatpush1.bf16.xpose.msra.mxu0 %v2850
        %2872 = vmatprep.subr.bf16.mxu0 %v2853
        %2873 = vmatpush1.bf16.xpose.msra.mxu0 %v2852
        %2874 = vmatprep.subr.bf16.mxu0 0
        %2875 = vmatpush1.bf16.xpose.msra.mxu0 0
        %2876 = vmatprep.subr.bf16.mxu0 0
        %2877 = vmatpush1.bf16.xpose.msra.mxu0 0
        %2878 = vmatprep.subr.bf16.mxu0 0
        %2879 = vmatpush1.bf16.xpose.msra.mxu0 0
        %2880 = vmatprep.subr.bf16.mxu0 0
        %2881 = vmatpush1.bf16.xpose.msra.mxu0 0
        %2882 = vmatprep.subr.bf16.mxu0 0
        %2883 = vmatpush1.bf16.xpose.msra.mxu0 0
        %2884 = vmatprep.subr.bf16.mxu0 0
        %2885 = vmatpush1.bf16.xpose.msra.mxu0 0
        %2886 = vmatprep.subr.bf16.mxu0 0
        %2887 = vmatpush1.bf16.xpose.msra.mxu0 0
        %2888 = vmatprep.subr.bf16.mxu0 0
        %2889 = vmatpush1.bf16.xpose.msra.mxu0 0
        %2890 = vmatprep.subr.bf16.mxu0 0
        %2891 = vmatpush1.bf16.xpose.msra.mxu0 0
        %2892 = vmatprep.subr.bf16.mxu0 0
        %2893 = vmatpush1.bf16.xpose.msra.mxu0 0
        %2894 = vmatprep.subr.bf16.mxu0 0
        %2895 = vmatpush1.bf16.xpose.msra.mxu0 0
        %2896 = vmatprep.mubr.bf16.mxu0 %v2835
        %2897 = vmatmul.mubr.bf16.gmra.mrb[0].mxu0 %v2834
        %v2898 = vpop.f32.mrb[0].mxu0
        %v2899 = vadd.f32 0.0, %v2898
        %v2900 = vpop.f32.mrb[0].mxu0
        %v2901 = vpop.f32.mrb[0].mxu0
        %v2902 = vadd.f32 0.0, %v2901
        %v2903 = vpop.f32.mrb[0].mxu0
        %2904 = vmatprep.mubr.bf16.mxu0 %v2837
        %2905 = vmatmul.mubr.bf16.gmra.mrb[0].mxu0 %v2836
        %v2906 = vpop.f32.mrb[0].mxu0
        %v2907 = vadd.f32 0.0, %v2906
        %v2908 = vpop.f32.mrb[0].mxu0
        %v2909 = vpop.f32.mrb[0].mxu0
        %v2910 = vadd.f32 0.0, %v2909
        %v2911 = vpop.f32.mrb[0].mxu0
        %2912 = vmatprep.mubr.bf16.mxu0 %v2839
        %2913 = vmatmul.mubr.bf16.gmra.mrb[0].mxu0 %v2838
        %v2914 = vpop.f32.mrb[0].mxu0
        %v2915 = vadd.f32 0.0, %v2914
        %v2916 = vpop.f32.mrb[0].mxu0
        %v2917 = vpop.f32.mrb[0].mxu0
        %v2918 = vadd.f32 0.0, %v2917
        %v2919 = vpop.f32.mrb[0].mxu0
        %2920 = vmatprep.mubr.bf16.mxu0 %v2841
        %2921 = vmatmul.mubr.bf16.gmra.mrb[0].mxu0 %v2840
        %v2922 = vpop.f32.mrb[0].mxu0
        %v2923 = vadd.f32 0.0, %v2922
        %v2924 = vpop.f32.mrb[0].mxu0
        %v2925 = vpop.f32.mrb[0].mxu0
        %v2926 = vadd.f32 0.0, %v2925
        %v2927 = vpop.f32.mrb[0].mxu0
        %2928 = vmatprep.mubr.bf16.mxu0 %v2843
        %2929 = vmatmul.mubr.bf16.gmra.mrb[0].mxu0 %v2842
        %v2930 = vpop.f32.mrb[0].mxu0
        %v2931 = vadd.f32 0.0, %v2930
        %v2932 = vpop.f32.mrb[0].mxu0
        %v2933 = vpop.f32.mrb[0].mxu0
        %v2934 = vpop.f32.mrb[0].mxu0
        %2935 = vdwg.mxu0
        %v2936 = vsel %vm2514, %v2899, -1e+30
        %v2937 = vsel %vm2514, %v2902, -1e+30
        %v2938 = vsel %vm2514, %v2907, -1e+30
        %v2939 = vsel %vm2514, %v2910, -1e+30
        %v2940 = vsel %vm2514, %v2915, -1e+30
        %v2941 = vsel %vm2514, %v2918, -1e+30
        %v2942 = vsel %vm2514, %v2923, -1e+30
        %v2943 = vsel %vm2514, %v2926, -1e+30
        %v2944 = vsel %vm2514, %v2931, -1e+30
        %v2945 = vsel %vm2626, %v2936, -inf
        %2946 = vmax.xlane.f32.xlu0 %v2945
        %v2947 = vpop.xlane.xlu0 %2946
        %v2948 = vsel %vm2626, %v2937, -inf
        %2949 = vmax.xlane.f32.xlu0 %v2948
        %v2950 = vpop.xlane.xlu0 %2949
        %v2951 = vsel %vm2626, %v2938, -inf
        %2952 = vmax.xlane.f32.xlu0 %v2951
        %v2953 = vpop.xlane.xlu0 %2952
        %v2954 = vsel %vm2626, %v2939, -inf
        %2955 = vmax.xlane.f32.xlu0 %v2954
        %v2956 = vpop.xlane.xlu0 %2955
        %v2957 = vsel %vm2626, %v2940, -inf
        %2958 = vmax.xlane.f32.xlu0 %v2957
        %v2959 = vpop.xlane.xlu0 %2958
        %v2960 = vsel %vm2626, %v2941, -inf
        %2961 = vmax.xlane.f32.xlu0 %v2960
        %v2962 = vpop.xlane.xlu0 %2961
        %v2963 = vsel %vm2626, %v2942, -inf
        %2964 = vmax.xlane.f32.xlu0 %v2963
        %v2965 = vpop.xlane.xlu0 %2964
        %v2966 = vsel %vm2626, %v2943, -inf
        %2967 = vmax.xlane.f32.xlu0 %v2966
        %v2968 = vpop.xlane.xlu0 %2967
        %v2969 = vsel %vm2626, %v2944, -inf
        %2970 = vmax.xlane.f32.xlu0 %v2969
        %v2971 = vpop.xlane.xlu0 %2970
        %v2972 = vsub.f32 %v2936, %v2947
        %v2973 = vsub.f32 %v2937, %v2950
        %v2974 = vsub.f32 %v2938, %v2953
        %v2975 = vsub.f32 %v2939, %v2956
        %v2976 = vsub.f32 %v2940, %v2959
        %v2977 = vsub.f32 %v2941, %v2962
        %v2978 = vsub.f32 %v2942, %v2965
        %v2979 = vsub.f32 %v2943, %v2968
        %v2980 = vsub.f32 %v2944, %v2971
        %v2981 = vmul.f32 %v2972, 1.442695
        %v2982 = vpow.pop %v2981
        %v2983 = vmul.f32 %v2973, 1.442695
        %v2984 = vpow.pop %v2983
        %v2985 = vmul.f32 %v2974, 1.442695
        %v2986 = vpow.pop %v2985
        %v2987 = vmul.f32 %v2975, 1.442695
        %v2988 = vpow.pop %v2987
        %v2989 = vmul.f32 %v2976, 1.442695
        %v2990 = vpow.pop %v2989
        %v2991 = vmul.f32 %v2977, 1.442695
        %v2992 = vpow.pop %v2991
        %v2993 = vmul.f32 %v2978, 1.442695
        %v2994 = vpow.pop %v2993
        %v2995 = vmul.f32 %v2979, 1.442695
        %v2996 = vpow.pop %v2995
        %v2997 = vmul.f32 %v2980, 1.442695
        %v2998 = vpow.pop %v2997
        %v2999 = vsel %vm2626, %v2982, 0.0
        %3000 = vadd.xlane.f32.xlu0 %v2999
        %v3001 = vpop.xlane.xlu0 %3000
        %v3002 = vsel %vm2626, %v2984, 0.0
        %3003 = vadd.xlane.f32.xlu0 %v3002
        %v3004 = vpop.xlane.xlu0 %3003
        %v3005 = vsel %vm2626, %v2986, 0.0
        %3006 = vadd.xlane.f32.xlu0 %v3005
        %v3007 = vpop.xlane.xlu0 %3006
        %v3008 = vsel %vm2626, %v2988, 0.0
        %3009 = vadd.xlane.f32.xlu0 %v3008
        %v3010 = vpop.xlane.xlu0 %3009
        %v3011 = vsel %vm2626, %v2990, 0.0
        %3012 = vadd.xlane.f32.xlu0 %v3011
        %v3013 = vpop.xlane.xlu0 %3012
        %v3014 = vsel %vm2626, %v2992, 0.0
        %3015 = vadd.xlane.f32.xlu0 %v3014
        %v3016 = vpop.xlane.xlu0 %3015
        %v3017 = vsel %vm2626, %v2994, 0.0
        %3018 = vadd.xlane.f32.xlu0 %v3017
        %v3019 = vpop.xlane.xlu0 %3018
        %v3020 = vsel %vm2626, %v2996, 0.0
        %3021 = vadd.xlane.f32.xlu0 %v3020
        %v3022 = vpop.xlane.xlu0 %3021
        %v3023 = vsel %vm2626, %v2998, 0.0
        %3024 = vadd.xlane.f32.xlu0 %v3023
        %v3025 = vpop.xlane.xlu0 %3024
        %v3026 = vrcp.pop %v3001
        %v3027 = vrcp.pop %v3004
        %v3028 = vrcp.pop %v3007
        %v3029 = vrcp.pop %v3010
        %v3030 = vrcp.pop %v3013
        %v3031 = vrcp.pop %v3016
        %v3032 = vrcp.pop %v3019
        %v3033 = vrcp.pop %v3022
        %v3034 = vrcp.pop %v3025
        %v3035 = vmul.f32 %v2982, %v3026
        %v3036 = vmul.f32 %v2984, %v3027
        %v3037 = vmul.f32 %v2986, %v3028
        %v3038 = vmul.f32 %v2988, %v3029
        %v3039 = vmul.f32 %v2990, %v3030
        %v3040 = vmul.f32 %v2992, %v3031
        %v3041 = vmul.f32 %v2994, %v3032
        %v3042 = vmul.f32 %v2996, %v3033
        %v3043 = vmul.f32 %v2998, %v3034
        %v3044 = vpack.c.bf16 %v3036, %v3035
        %v3045 = vpack.c.bf16 %v3038, %v3037
        %v3046 = vpack.c.bf16 %v3040, %v3039
        %v3047 = vpack.c.bf16 %v3042, %v3041
        %v3048 = vpack.c.bf16 %v3043, %v3043
        %v3050 = vsel %vm2626, %v3044, 0
        %v3053 = vsel %vm2626, %v3045, 0
        %v3056 = vsel %vm2626, %v3046, 0
        %v3059 = vsel %vm2626, %v3047, 0
        %v3062 = vsel %vm2626, %v3048, 0
        %v3065 = vsel %vm2746, %v2862, 0
        %v3068 = vsel %vm2746, %v2863, 0
        %3070 = vmatprep.subr.bf16.mxu0 %v2855
        %3071 = vmatpush1.bf16.msra.mxu0 %v2854
        %3072 = vmatprep.subr.bf16.mxu0 %v2857
        %3073 = vmatpush1.bf16.msra.mxu0 %v2856
        %3074 = vmatprep.subr.bf16.mxu0 %v2859
        %3075 = vmatpush1.bf16.msra.mxu0 %v2858
        %3076 = vmatprep.subr.bf16.mxu0 %v2861
        %3077 = vmatpush1.bf16.msra.mxu0 %v2860
        %3078 = vmatprep.subr.bf16.mxu0 %v3068
        %3079 = vmatpush1.bf16.msra.mxu0 %v3065
        %3080 = vmatprep.subr.bf16.mxu0 0
        %3081 = vmatpush1.bf16.msra.mxu0 0
        %3082 = vmatprep.subr.bf16.mxu0 0
        %3083 = vmatpush1.bf16.msra.mxu0 0
        %3084 = vmatprep.subr.bf16.mxu0 0
        %3085 = vmatpush1.bf16.msra.mxu0 0
        %3086 = vmatprep.subr.bf16.mxu0 0
        %3087 = vmatpush1.bf16.msra.mxu0 0
        %3088 = vmatprep.subr.bf16.mxu0 0
        %3089 = vmatpush1.bf16.msra.mxu0 0
        %3090 = vmatprep.subr.bf16.mxu0 0
        %3091 = vmatpush1.bf16.msra.mxu0 0
        %3092 = vmatprep.subr.bf16.mxu0 0
        %3093 = vmatpush1.bf16.msra.mxu0 0
        %3094 = vmatprep.subr.bf16.mxu0 0
        %3095 = vmatpush1.bf16.msra.mxu0 0
        %3096 = vmatprep.subr.bf16.mxu0 0
        %3097 = vmatpush1.bf16.msra.mxu0 0
        %3098 = vmatprep.subr.bf16.mxu0 0
        %3099 = vmatpush1.bf16.msra.mxu0 0
        %3100 = vmatprep.subr.bf16.mxu0 0
        %3101 = vmatpush1.bf16.msra.mxu0 0
        %3102 = vmatprep.mubr.bf16.mxu0 0
        %3103 = vmatmul.mubr.bf16.gmra.mrb[0].mxu0 %v3050
        %v3104 = vpop.f32.mrb[0].mxu0
        %v3105 = vadd.f32 0.0, %v3104
        %v3106 = vpop.f32.mrb[0].mxu0
        %v3107 = vadd.f32 0.0, %v3106
        %v3108 = vpop.f32.mrb[0].mxu0
        %v3109 = vadd.f32 0.0, %v3108
        %v3110 = vpop.f32.mrb[0].mxu0
        %v3111 = vadd.f32 0.0, %v3110
        %3112 = vmatprep.mubr.bf16.mxu0 0
        %3113 = vmatmul.mubr.bf16.gmra.mrb[0].mxu0 %v3053
        %v3114 = vpop.f32.mrb[0].mxu0
        %v3115 = vadd.f32 0.0, %v3114
        %v3116 = vpop.f32.mrb[0].mxu0
        %v3117 = vadd.f32 0.0, %v3116
        %v3118 = vpop.f32.mrb[0].mxu0
        %v3119 = vadd.f32 0.0, %v3118
        %v3120 = vpop.f32.mrb[0].mxu0
        %v3121 = vadd.f32 0.0, %v3120
        %3122 = vmatprep.mubr.bf16.mxu0 0
        %3123 = vmatmul.mubr.bf16.gmra.mrb[0].mxu0 %v3056
        %v3124 = vpop.f32.mrb[0].mxu0
        %v3125 = vadd.f32 0.0, %v3124
        %v3126 = vpop.f32.mrb[0].mxu0
        %v3127 = vadd.f32 0.0, %v3126
        %v3128 = vpop.f32.mrb[0].mxu0
        %v3129 = vadd.f32 0.0, %v3128
        %v3130 = vpop.f32.mrb[0].mxu0
        %v3131 = vadd.f32 0.0, %v3130
        %3132 = vmatprep.mubr.bf16.mxu0 0
        %3133 = vmatmul.mubr.bf16.gmra.mrb[0].mxu0 %v3059
        %v3134 = vpop.f32.mrb[0].mxu0
        %v3135 = vadd.f32 0.0, %v3134
        %v3136 = vpop.f32.mrb[0].mxu0
        %v3137 = vadd.f32 0.0, %v3136
        %v3138 = vpop.f32.mrb[0].mxu0
        %v3139 = vadd.f32 0.0, %v3138
        %v3140 = vpop.f32.mrb[0].mxu0
        %v3141 = vadd.f32 0.0, %v3140
        %3142 = vmatprep.mubr.bf16.mxu0 0
        %3143 = vmatmul.mubr.bf16.gmra.mrb[0].mxu0 %v3062
        %v3144 = vpop.f32.mrb[0].mxu0
        %v3145 = vadd.f32 0.0, %v3144
        %v3146 = vpop.f32.mrb[0].mxu0
        %v3147 = vadd.f32 0.0, %v3146
        %v3148 = vpop.f32.mrb[0].mxu0
        %v3149 = vpop.f32.mrb[0].mxu0
        %3150 = vdwg.mxu0
        %v3151 = vpack.c.bf16 %v2792, %v2788
        %v3152 = vpack.c.bf16 %v2794, %v2790
        %v3153 = vpack.c.bf16 %v2802, %v2798
        %v3154 = vpack.c.bf16 %v2804, %v2800
        %v3155 = vpack.c.bf16 %v2812, %v2808
        %v3156 = vpack.c.bf16 %v2814, %v2810
        %v3157 = vpack.c.bf16 %v2822, %v2818
        %v3158 = vpack.c.bf16 %v2824, %v2820
        %v3159 = vpack.c.bf16 %v3105, %v2828
        %v3160 = vpack.c.bf16 %v3107, %v2830
        %v3161 = vpack.c.bf16 %v3115, %v3109
        %v3162 = vpack.c.bf16 %v3117, %v3111
        %v3163 = vpack.c.bf16 %v3125, %v3119
        %v3164 = vpack.c.bf16 %v3127, %v3121
        %v3165 = vpack.c.bf16 %v3135, %v3129
        %v3166 = vpack.c.bf16 %v3137, %v3131
        %v3167 = vpack.c.bf16 %v3145, %v3139
        %v3168 = vpack.c.bf16 %v3147, %v3141
        %v3169 = vld [vmem:[%s640] sm:$0xff]
        %v3170 = vld [vmem:[%s640 + $0x8] sm:$0xff]
        %v3171 = vld [vmem:[%s640 + $0x10] sm:$0xff]
        %v3172 = vld [vmem:[%s640 + $0x18] sm:$0xff]
        %v3173 = vld [vmem:[%s640 + $0x20] sm:$0xff]
        %v3174 = vld [vmem:[%s640 + $0x28] sm:$0xff]
        %v3175 = vld [vmem:[%s640 + $0x30] sm:$0xff]
        %v3176 = vld [vmem:[%s640 + $0x38] sm:$0xff]
        %v3177 = vld [vmem:[%s640 + $0x40] sm:$0xff]
        %v3178 = vld [vmem:[%s640 + $0x48] sm:$0xff]
        %v3179 = vld [vmem:[%s640 + $0x50] sm:$0xff]
        %v3180 = vld [vmem:[%s640 + $0x58] sm:$0xff]
        %v3181 = vld [vmem:[%s640 + $0x60] sm:$0xff]
        %v3182 = vld [vmem:[%s640 + $0x68] sm:$0xff]
        %v3183 = vld [vmem:[%s640 + $0x70] sm:$0xff]
        %v3184 = vld [vmem:[%s640 + $0x78] sm:$0xff]
        %v3185 = vld [vmem:[%s640 + $0x80] sm:$0xff]
        %v3186 = vld [vmem:[%s640 + $0x88] sm:$0xff]
        %v3187 = vld [vmem:[%s640 + $0x90] sm:$0xff]
        %v3188 = vld [vmem:[%s640 + $0x98] sm:$0xff]
        %v3189 = vld [vmem:[%s640 + $0xa0] sm:$0xff]
        %v3190 = vld [vmem:[%s640 + $0xa8] sm:$0xff]
        %v3191 = vld [vmem:[%s640 + $0xb0] sm:$0xff]
        %v3192 = vld [vmem:[%s640 + $0xb8] sm:$0xff]
        %v3193 = vld [vmem:[%s640 + $0xc0] sm:$0xff]
        %v3194 = vld [vmem:[%s640 + $0xc8] sm:$0xff]
        %v3195 = vld [vmem:[%s640 + $0xd0] sm:$0xff]
        %v3196 = vld [vmem:[%s640 + $0xd8] sm:$0xff]
        %v3197 = vld [vmem:[%s640 + $0xe0] sm:$0xff]
        %v3198 = vld [vmem:[%s640 + $0xe8] sm:$0xff]
        %v3199 = vld [vmem:[%s640 + $0xf0] sm:$0xff]
        %v3200 = vld [vmem:[%s640 + $0xf8] sm:$0xff]
        %v3201 = vld [vmem:[%s771] sm:$0x3]
        %v3203 = vlaneseq
        %v3204 = vshrl.u32 %v3203, 7
        %v3205 = vsub.s32 0, %v3204
        %v3206 = vrot.slane %v3201, %v3205
        %v3207 = vlaneseq
        %v3208 = vshrl.u32 %v3207, 7
        %v3209 = vsub.s32 1, %v3208
        %v3210 = vrot.slane %v3201, %v3209
        %v3245 = vunpack.c.l.b16 %v3169
        %v3246 = vunpack.c.h.b16 %v3169
        %v3247 = vunpack.c.l.b16 %v3170
        %v3248 = vunpack.c.h.b16 %v3170
        %v3249 = vunpack.c.l.b16 %v3171
        %v3250 = vunpack.c.h.b16 %v3171
        %v3251 = vunpack.c.l.b16 %v3172
        %v3252 = vunpack.c.h.b16 %v3172
        %v3253 = vunpack.c.l.b16 %v3173
        %v3254 = vunpack.c.h.b16 %v3173
        %v3255 = vunpack.c.l.b16 %v3174
        %v3256 = vunpack.c.h.b16 %v3174
        %v3257 = vunpack.c.l.b16 %v3175
        %v3258 = vunpack.c.h.b16 %v3175
        %v3259 = vunpack.c.l.b16 %v3176
        %v3260 = vunpack.c.h.b16 %v3176
        %v3261 = vunpack.c.l.b16 %v3177
        %v3262 = vunpack.c.h.b16 %v3177
        %v3263 = vunpack.c.l.b16 %v3178
        %v3264 = vunpack.c.h.b16 %v3178
        %v3265 = vunpack.c.l.b16 %v3179
        %v3266 = vunpack.c.h.b16 %v3179
        %v3267 = vunpack.c.l.b16 %v3180
        %v3268 = vunpack.c.h.b16 %v3180
        %v3269 = vunpack.c.l.b16 %v3181
        %v3270 = vunpack.c.h.b16 %v3181
        %v3271 = vunpack.c.l.b16 %v3182
        %v3272 = vunpack.c.h.b16 %v3182
        %v3273 = vunpack.c.l.b16 %v3183
        %v3274 = vunpack.c.h.b16 %v3183
        %v3275 = vunpack.c.l.b16 %v3184
        %v3276 = vunpack.c.h.b16 %v3184
        %v3277 = vunpack.c.l.b16 %v3185
        %v3278 = vunpack.c.h.b16 %v3185
        %v3279 = vunpack.c.l.b16 %v3186
        %v3280 = vunpack.c.h.b16 %v3186
        %v3281 = vunpack.c.l.b16 %v3187
        %v3282 = vunpack.c.h.b16 %v3187
        %v3283 = vunpack.c.l.b16 %v3188
        %v3284 = vunpack.c.h.b16 %v3188
        %v3285 = vunpack.c.l.b16 %v3189
        %v3286 = vunpack.c.h.b16 %v3189
        %v3287 = vunpack.c.l.b16 %v3190
        %v3288 = vunpack.c.h.b16 %v3190
        %v3289 = vunpack.c.l.b16 %v3191
        %v3290 = vunpack.c.h.b16 %v3191
        %v3291 = vunpack.c.l.b16 %v3192
        %v3292 = vunpack.c.h.b16 %v3192
        %v3293 = vunpack.c.l.b16 %v3193
        %v3294 = vunpack.c.h.b16 %v3193
        %v3295 = vunpack.c.l.b16 %v3194
        %v3296 = vunpack.c.h.b16 %v3194
        %v3297 = vunpack.c.l.b16 %v3195
        %v3298 = vunpack.c.h.b16 %v3195
        %v3299 = vunpack.c.l.b16 %v3196
        %v3300 = vunpack.c.h.b16 %v3196
        %v3301 = vunpack.c.l.b16 %v3197
        %v3302 = vunpack.c.h.b16 %v3197
        %v3303 = vunpack.c.l.b16 %v3198
        %v3304 = vunpack.c.h.b16 %v3198
        %v3305 = vunpack.c.l.b16 %v3199
        %v3306 = vunpack.c.h.b16 %v3199
        %v3307 = vunpack.c.l.b16 %v3200
        %v3308 = vunpack.c.h.b16 %v3200
        %v3309 = vpack.c.b16 %v3247, %v3245
        %v3310 = vpack.c.b16 %v3248, %v3246
        %v3311 = vpack.c.b16 %v3251, %v3249
        %v3312 = vpack.c.b16 %v3252, %v3250
        %v3313 = vpack.c.b16 %v3255, %v3253
        %v3314 = vpack.c.b16 %v3256, %v3254
        %v3315 = vpack.c.b16 %v3259, %v3257
        %v3316 = vpack.c.b16 %v3260, %v3258
        %v3317 = vpack.c.b16 %v3263, %v3261
        %v3318 = vpack.c.b16 %v3264, %v3262
        %v3319 = vpack.c.b16 %v3267, %v3265
        %v3320 = vpack.c.b16 %v3268, %v3266
        %v3321 = vpack.c.b16 %v3271, %v3269
        %v3322 = vpack.c.b16 %v3272, %v3270
        %v3323 = vpack.c.b16 %v3275, %v3273
        %v3324 = vpack.c.b16 %v3276, %v3274
        %v3325 = vpack.c.b16 %v3279, %v3277
        %v3326 = vpack.c.b16 %v3280, %v3278
        %v3327 = vpack.c.b16 %v3283, %v3281
        %v3328 = vpack.c.b16 %v3284, %v3282
        %v3329 = vpack.c.b16 %v3287, %v3285
        %v3330 = vpack.c.b16 %v3288, %v3286
        %v3331 = vpack.c.b16 %v3291, %v3289
        %v3332 = vpack.c.b16 %v3292, %v3290
        %v3333 = vpack.c.b16 %v3295, %v3293
        %v3334 = vpack.c.b16 %v3296, %v3294
        %v3335 = vpack.c.b16 %v3299, %v3297
        %v3336 = vpack.c.b16 %v3300, %v3298
        %v3337 = vpack.c.b16 %v3303, %v3301
        %v3338 = vpack.c.b16 %v3304, %v3302
        %v3339 = vpack.c.b16 %v3307, %v3305
        %v3340 = vpack.c.b16 %v3308, %v3306
        %3373 = vmatprep.subr.bf16.mxu0 %v3310
        %3374 = vmatpush1.bf16.msra.mxu0 %v3309
        %3375 = vmatprep.subr.bf16.mxu0 %v3312
        %3376 = vmatpush1.bf16.msra.mxu0 %v3311
        %3377 = vmatprep.subr.bf16.mxu0 %v3314
        %3378 = vmatpush1.bf16.msra.mxu0 %v3313
        %3379 = vmatprep.subr.bf16.mxu0 %v3316
        %3380 = vmatpush1.bf16.msra.mxu0 %v3315
        %3381 = vmatprep.subr.bf16.mxu0 %v3318
        %3382 = vmatpush1.bf16.msra.mxu0 %v3317
        %3383 = vmatprep.subr.bf16.mxu0 %v3320
        %3384 = vmatpush1.bf16.msra.mxu0 %v3319
        %3385 = vmatprep.subr.bf16.mxu0 %v3322
        %3386 = vmatpush1.bf16.msra.mxu0 %v3321
        %3387 = vmatprep.subr.bf16.mxu0 %v3324
        %3388 = vmatpush1.bf16.msra.mxu0 %v3323
        %3389 = vmatprep.subr.bf16.mxu0 %v3326
        %3390 = vmatpush1.bf16.msra.mxu0 %v3325
        %3391 = vmatprep.subr.bf16.mxu0 %v3328
        %3392 = vmatpush1.bf16.msra.mxu0 %v3327
        %3393 = vmatprep.subr.bf16.mxu0 %v3330
        %3394 = vmatpush1.bf16.msra.mxu0 %v3329
        %3395 = vmatprep.subr.bf16.mxu0 %v3332
        %3396 = vmatpush1.bf16.msra.mxu0 %v3331
        %3397 = vmatprep.subr.bf16.mxu0 %v3334
        %3398 = vmatpush1.bf16.msra.mxu0 %v3333
        %3399 = vmatprep.subr.bf16.mxu0 %v3336
        %3400 = vmatpush1.bf16.msra.mxu0 %v3335
        %3401 = vmatprep.subr.bf16.mxu0 %v3338
        %3402 = vmatpush1.bf16.msra.mxu0 %v3337
        %3403 = vmatprep.subr.bf16.mxu0 %v3340
        %3404 = vmatpush1.bf16.msra.mxu0 %v3339
        %3405 = vmatprep.mubr.bf16.mxu0 %v3152
        %3406 = vmatmul.mubr.bf16.gmra.mrb[0].mxu0 %v3151
        %v3407 = vpop.f32.mrb[0].mxu0
        %v3408 = vadd.f32 %v3206, %v3407
        %v3409 = vpop.f32.mrb[0].mxu0
        %v3410 = vadd.f32 %v3210, %v3409
        %v3411 = vpop.f32.mrb[0].mxu0
        %v3412 = vadd.f32 %v3206, %v3411
        %v3413 = vpop.f32.mrb[0].mxu0
        %v3414 = vadd.f32 %v3210, %v3413
        %3415 = vmatprep.mubr.bf16.mxu0 %v3154
        %3416 = vmatmul.mubr.bf16.gmra.mrb[0].mxu0 %v3153
        %v3417 = vpop.f32.mrb[0].mxu0
        %v3418 = vadd.f32 %v3206, %v3417
        %v3419 = vpop.f32.mrb[0].mxu0
        %v3420 = vadd.f32 %v3210, %v3419
        %v3421 = vpop.f32.mrb[0].mxu0
        %v3422 = vadd.f32 %v3206, %v3421
        %v3423 = vpop.f32.mrb[0].mxu0
        %v3424 = vadd.f32 %v3210, %v3423
        %3425 = vmatprep.mubr.bf16.mxu0 %v3156
        %3426 = vmatmul.mubr.bf16.gmra.mrb[0].mxu0 %v3155
        %v3427 = vpop.f32.mrb[0].mxu0
        %v3428 = vadd.f32 %v3206, %v3427
        %v3429 = vpop.f32.mrb[0].mxu0
        %v3430 = vadd.f32 %v3210, %v3429
        %v3431 = vpop.f32.mrb[0].mxu0
        %v3432 = vadd.f32 %v3206, %v3431
        %v3433 = vpop.f32.mrb[0].mxu0
        %v3434 = vadd.f32 %v3210, %v3433
        %3435 = vmatprep.mubr.bf16.mxu0 %v3158
        %3436 = vmatmul.mubr.bf16.gmra.mrb[0].mxu0 %v3157
        %v3437 = vpop.f32.mrb[0].mxu0
        %v3438 = vadd.f32 %v3206, %v3437
        %v3439 = vpop.f32.mrb[0].mxu0
        %v3440 = vadd.f32 %v3210, %v3439
        %v3441 = vpop.f32.mrb[0].mxu0
        %v3442 = vadd.f32 %v3206, %v3441
        %v3443 = vpop.f32.mrb[0].mxu0
        %v3444 = vadd.f32 %v3210, %v3443
        %3445 = vmatprep.mubr.bf16.mxu0 %v3160
        %3446 = vmatmul.mubr.bf16.gmra.mrb[0].mxu0 %v3159
        %v3447 = vpop.f32.mrb[0].mxu0
        %v3448 = vadd.f32 %v3206, %v3447
        %v3449 = vpop.f32.mrb[0].mxu0
        %v3450 = vadd.f32 %v3210, %v3449
        %v3451 = vpop.f32.mrb[0].mxu0
        %v3452 = vadd.f32 %v3206, %v3451
        %v3453 = vpop.f32.mrb[0].mxu0
        %v3454 = vadd.f32 %v3210, %v3453
        %3455 = vmatprep.mubr.bf16.mxu0 %v3162
        %3456 = vmatmul.mubr.bf16.gmra.mrb[0].mxu0 %v3161
        %v3457 = vpop.f32.mrb[0].mxu0
        %v3458 = vadd.f32 %v3206, %v3457
        %v3459 = vpop.f32.mrb[0].mxu0
        %v3460 = vadd.f32 %v3210, %v3459
        %v3461 = vpop.f32.mrb[0].mxu0
        %v3462 = vadd.f32 %v3206, %v3461
        %v3463 = vpop.f32.mrb[0].mxu0
        %v3464 = vadd.f32 %v3210, %v3463
        %3465 = vmatprep.mubr.bf16.mxu0 %v3164
        %3466 = vmatmul.mubr.bf16.gmra.mrb[0].mxu0 %v3163
        %v3467 = vpop.f32.mrb[0].mxu0
        %v3468 = vadd.f32 %v3206, %v3467
        %v3469 = vpop.f32.mrb[0].mxu0
        %v3470 = vadd.f32 %v3210, %v3469
        %v3471 = vpop.f32.mrb[0].mxu0
        %v3472 = vadd.f32 %v3206, %v3471
        %v3473 = vpop.f32.mrb[0].mxu0
        %v3474 = vadd.f32 %v3210, %v3473
        %3475 = vmatprep.mubr.bf16.mxu0 %v3166
        %3476 = vmatmul.mubr.bf16.gmra.mrb[0].mxu0 %v3165
        %v3477 = vpop.f32.mrb[0].mxu0
        %v3478 = vadd.f32 %v3206, %v3477
        %v3479 = vpop.f32.mrb[0].mxu0
        %v3480 = vadd.f32 %v3210, %v3479
        %v3481 = vpop.f32.mrb[0].mxu0
        %v3482 = vadd.f32 %v3206, %v3481
        %v3483 = vpop.f32.mrb[0].mxu0
        %v3484 = vadd.f32 %v3210, %v3483
        %3485 = vmatprep.mubr.bf16.mxu0 %v3168
        %3486 = vmatmul.mubr.bf16.gmra.mrb[0].mxu0 %v3167
        %v3487 = vpop.f32.mrb[0].mxu0
        %v3488 = vadd.f32 %v3206, %v3487
        %v3489 = vpop.f32.mrb[0].mxu0
        %v3490 = vadd.f32 %v3210, %v3489
        %v3491 = vpop.f32.mrb[0].mxu0
        %v3492 = vadd.f32 %v3206, %v3491
        %v3493 = vpop.f32.mrb[0].mxu0
        %v3494 = vadd.f32 %v3210, %v3493
        %3495 = vdwg.mxu0
        %v3496 = vadd.f32 %v1060, %v3408
        %v3497 = vadd.f32 %v1061, %v3410
        %v3498 = vadd.f32 %v1062, %v3412
        %v3499 = vadd.f32 %v1063, %v3414
        %v3500 = vadd.f32 %v1064, %v3418
        %v3501 = vadd.f32 %v1065, %v3420
        %v3502 = vadd.f32 %v1066, %v3422
        %v3503 = vadd.f32 %v1067, %v3424
        %v3504 = vadd.f32 %v1068, %v3428
        %v3505 = vadd.f32 %v1069, %v3430
        %v3506 = vadd.f32 %v1070, %v3432
        %v3507 = vadd.f32 %v1071, %v3434
        %v3508 = vadd.f32 %v1072, %v3438
        %v3509 = vadd.f32 %v1073, %v3440
        %v3510 = vadd.f32 %v1074, %v3442
        %v3511 = vadd.f32 %v1075, %v3444
        %v3512 = vadd.f32 %v1076, %v3448
        %v3513 = vadd.f32 %v1077, %v3450
        %v3514 = vadd.f32 %v1078, %v3452
        %v3515 = vadd.f32 %v1079, %v3454
        %v3516 = vadd.f32 %v1080, %v3458
        %v3517 = vadd.f32 %v1081, %v3460
        %v3518 = vadd.f32 %v1082, %v3462
        %v3519 = vadd.f32 %v1083, %v3464
        %v3520 = vadd.f32 %v1084, %v3468
        %v3521 = vadd.f32 %v1085, %v3470
        %v3522 = vadd.f32 %v1086, %v3472
        %v3523 = vadd.f32 %v1087, %v3474
        %v3524 = vadd.f32 %v1088, %v3478
        %v3525 = vadd.f32 %v1089, %v3480
        %v3526 = vadd.f32 %v1090, %v3482
        %v3527 = vadd.f32 %v1091, %v3484
        %v3528 = vadd.f32 %v1092, %v3488
        %v3529 = vadd.f32 %v1093, %v3490
        %v3530 = vadd.f32 %v1094, %v3492
        %v3531 = vadd.f32 %v1095, %v3494
        %v3532 = vld [vmem:[%s775] sm:$0x3]
        %v3533 = vld [vmem:[%s779] sm:$0x3]
        %v3534 = vadd.f32 %v3496, %v3497
        %3535 = vadd.xlane.f32.xlu0 %v3534
        %v3536 = vpop.xlane.xlu0 %3535
        %v3537 = vadd.f32 %v3498, %v3499
        %3538 = vadd.xlane.f32.xlu0 %v3537
        %v3539 = vpop.xlane.xlu0 %3538
        %v3540 = vadd.f32 %v3500, %v3501
        %3541 = vadd.xlane.f32.xlu0 %v3540
        %v3542 = vpop.xlane.xlu0 %3541
        %v3543 = vadd.f32 %v3502, %v3503
        %3544 = vadd.xlane.f32.xlu0 %v3543
        %v3545 = vpop.xlane.xlu0 %3544
        %v3546 = vadd.f32 %v3504, %v3505
        %3547 = vadd.xlane.f32.xlu0 %v3546
        %v3548 = vpop.xlane.xlu0 %3547
        %v3549 = vadd.f32 %v3506, %v3507
        %3550 = vadd.xlane.f32.xlu0 %v3549
        %v3551 = vpop.xlane.xlu0 %3550
        %v3552 = vadd.f32 %v3508, %v3509
        %3553 = vadd.xlane.f32.xlu0 %v3552
        %v3554 = vpop.xlane.xlu0 %3553
        %v3555 = vadd.f32 %v3510, %v3511
        %3556 = vadd.xlane.f32.xlu0 %v3555
        %v3557 = vpop.xlane.xlu0 %3556
        %v3558 = vadd.f32 %v3512, %v3513
        %3559 = vadd.xlane.f32.xlu0 %v3558
        %v3560 = vpop.xlane.xlu0 %3559
        %v3561 = vadd.f32 %v3514, %v3515
        %3562 = vadd.xlane.f32.xlu0 %v3561
        %v3563 = vpop.xlane.xlu0 %3562
        %v3564 = vadd.f32 %v3516, %v3517
        %3565 = vadd.xlane.f32.xlu0 %v3564
        %v3566 = vpop.xlane.xlu0 %3565
        %v3567 = vadd.f32 %v3518, %v3519
        %3568 = vadd.xlane.f32.xlu0 %v3567
        %v3569 = vpop.xlane.xlu0 %3568
        %v3570 = vadd.f32 %v3520, %v3521
        %3571 = vadd.xlane.f32.xlu0 %v3570
        %v3572 = vpop.xlane.xlu0 %3571
        %v3573 = vadd.f32 %v3522, %v3523
        %3574 = vadd.xlane.f32.xlu0 %v3573
        %v3575 = vpop.xlane.xlu0 %3574
        %v3576 = vadd.f32 %v3524, %v3525
        %3577 = vadd.xlane.f32.xlu0 %v3576
        %v3578 = vpop.xlane.xlu0 %3577
        %v3579 = vadd.f32 %v3526, %v3527
        %3580 = vadd.xlane.f32.xlu0 %v3579
        %v3581 = vpop.xlane.xlu0 %3580
        %v3582 = vadd.f32 %v3528, %v3529
        %3583 = vadd.xlane.f32.xlu0 %v3582
        %v3584 = vpop.xlane.xlu0 %3583
        %v3585 = vadd.f32 %v3530, %v3531
        %3586 = vadd.xlane.f32.xlu0 %v3585
        %v3587 = vpop.xlane.xlu0 %3586
        %v3588 = vmul.f32 %v3536, %v1152
        %v3589 = vmul.f32 %v3539, %v1152
        %v3590 = vmul.f32 %v3542, %v1152
        %v3591 = vmul.f32 %v3545, %v1152
        %v3592 = vmul.f32 %v3548, %v1152
        %v3593 = vmul.f32 %v3551, %v1152
        %v3594 = vmul.f32 %v3554, %v1152
        %v3595 = vmul.f32 %v3557, %v1152
        %v3596 = vmul.f32 %v3560, %v1152
        %v3597 = vmul.f32 %v3563, %v1152
        %v3598 = vmul.f32 %v3566, %v1152
        %v3599 = vmul.f32 %v3569, %v1152
        %v3600 = vmul.f32 %v3572, %v1152
        %v3601 = vmul.f32 %v3575, %v1152
        %v3602 = vmul.f32 %v3578, %v1152
        %v3603 = vmul.f32 %v3581, %v1152
        %v3604 = vmul.f32 %v3584, %v1152
        %v3605 = vmul.f32 %v3587, %v1152
        %v3606 = vmul.f32 %v3496, %v3496
        %v3607 = vmul.f32 %v3497, %v3497
        %v3608 = vmul.f32 %v3498, %v3498
        %v3609 = vmul.f32 %v3499, %v3499
        %v3610 = vmul.f32 %v3500, %v3500
        %v3611 = vmul.f32 %v3501, %v3501
        %v3612 = vmul.f32 %v3502, %v3502
        %v3613 = vmul.f32 %v3503, %v3503
        %v3614 = vmul.f32 %v3504, %v3504
        %v3615 = vmul.f32 %v3505, %v3505
        %v3616 = vmul.f32 %v3506, %v3506
        %v3617 = vmul.f32 %v3507, %v3507
        %v3618 = vmul.f32 %v3508, %v3508
        %v3619 = vmul.f32 %v3509, %v3509
        %v3620 = vmul.f32 %v3510, %v3510
        %v3621 = vmul.f32 %v3511, %v3511
        %v3622 = vmul.f32 %v3512, %v3512
        %v3623 = vmul.f32 %v3513, %v3513
        %v3624 = vmul.f32 %v3514, %v3514
        %v3625 = vmul.f32 %v3515, %v3515
        %v3626 = vmul.f32 %v3516, %v3516
        %v3627 = vmul.f32 %v3517, %v3517
        %v3628 = vmul.f32 %v3518, %v3518
        %v3629 = vmul.f32 %v3519, %v3519
        %v3630 = vmul.f32 %v3520, %v3520
        %v3631 = vmul.f32 %v3521, %v3521
        %v3632 = vmul.f32 %v3522, %v3522
        %v3633 = vmul.f32 %v3523, %v3523
        %v3634 = vmul.f32 %v3524, %v3524
        %v3635 = vmul.f32 %v3525, %v3525
        %v3636 = vmul.f32 %v3526, %v3526
        %v3637 = vmul.f32 %v3527, %v3527
        %v3638 = vmul.f32 %v3528, %v3528
        %v3639 = vmul.f32 %v3529, %v3529
        %v3640 = vmul.f32 %v3530, %v3530
        %v3641 = vmul.f32 %v3531, %v3531
        %v3642 = vadd.f32 %v3606, %v3607
        %3643 = vadd.xlane.f32.xlu0 %v3642
        %v3644 = vpop.xlane.xlu0 %3643
        %v3645 = vadd.f32 %v3608, %v3609
        %3646 = vadd.xlane.f32.xlu0 %v3645
        %v3647 = vpop.xlane.xlu0 %3646
        %v3648 = vadd.f32 %v3610, %v3611
        %3649 = vadd.xlane.f32.xlu0 %v3648
        %v3650 = vpop.xlane.xlu0 %3649
        %v3651 = vadd.f32 %v3612, %v3613
        %3652 = vadd.xlane.f32.xlu0 %v3651
        %v3653 = vpop.xlane.xlu0 %3652
        %v3654 = vadd.f32 %v3614, %v3615
        %3655 = vadd.xlane.f32.xlu0 %v3654
        %v3656 = vpop.xlane.xlu0 %3655
        %v3657 = vadd.f32 %v3616, %v3617
        %3658 = vadd.xlane.f32.xlu0 %v3657
        %v3659 = vpop.xlane.xlu0 %3658
        %v3660 = vadd.f32 %v3618, %v3619
        %3661 = vadd.xlane.f32.xlu0 %v3660
        %v3662 = vpop.xlane.xlu0 %3661
        %v3663 = vadd.f32 %v3620, %v3621
        %3664 = vadd.xlane.f32.xlu0 %v3663
        %v3665 = vpop.xlane.xlu0 %3664
        %v3666 = vadd.f32 %v3622, %v3623
        %3667 = vadd.xlane.f32.xlu0 %v3666
        %v3668 = vpop.xlane.xlu0 %3667
        %v3669 = vadd.f32 %v3624, %v3625
        %3670 = vadd.xlane.f32.xlu0 %v3669
        %v3671 = vpop.xlane.xlu0 %3670
        %v3672 = vadd.f32 %v3626, %v3627
        %3673 = vadd.xlane.f32.xlu0 %v3672
        %v3674 = vpop.xlane.xlu0 %3673
        %v3675 = vadd.f32 %v3628, %v3629
        %3676 = vadd.xlane.f32.xlu0 %v3675
        %v3677 = vpop.xlane.xlu0 %3676
        %v3678 = vadd.f32 %v3630, %v3631
        %3679 = vadd.xlane.f32.xlu0 %v3678
        %v3680 = vpop.xlane.xlu0 %3679
        %v3681 = vadd.f32 %v3632, %v3633
        %3682 = vadd.xlane.f32.xlu0 %v3681
        %v3683 = vpop.xlane.xlu0 %3682
        %v3684 = vadd.f32 %v3634, %v3635
        %3685 = vadd.xlane.f32.xlu0 %v3684
        %v3686 = vpop.xlane.xlu0 %3685
        %v3687 = vadd.f32 %v3636, %v3637
        %3688 = vadd.xlane.f32.xlu0 %v3687
        %v3689 = vpop.xlane.xlu0 %3688
        %v3690 = vadd.f32 %v3638, %v3639
        %3691 = vadd.xlane.f32.xlu0 %v3690
        %v3692 = vpop.xlane.xlu0 %3691
        %v3693 = vadd.f32 %v3640, %v3641
        %3694 = vadd.xlane.f32.xlu0 %v3693
        %v3695 = vpop.xlane.xlu0 %3694
        %v3696 = vmul.f32 %v3644, %v1152
        %v3697 = vmul.f32 %v3647, %v1152
        %v3698 = vmul.f32 %v3650, %v1152
        %v3699 = vmul.f32 %v3653, %v1152
        %v3700 = vmul.f32 %v3656, %v1152
        %v3701 = vmul.f32 %v3659, %v1152
        %v3702 = vmul.f32 %v3662, %v1152
        %v3703 = vmul.f32 %v3665, %v1152
        %v3704 = vmul.f32 %v3668, %v1152
        %v3705 = vmul.f32 %v3671, %v1152
        %v3706 = vmul.f32 %v3674, %v1152
        %v3707 = vmul.f32 %v3677, %v1152
        %v3708 = vmul.f32 %v3680, %v1152
        %v3709 = vmul.f32 %v3683, %v1152
        %v3710 = vmul.f32 %v3686, %v1152
        %v3711 = vmul.f32 %v3689, %v1152
        %v3712 = vmul.f32 %v3692, %v1152
        %v3713 = vmul.f32 %v3695, %v1152
        %v3714 = vmul.f32 %v3588, %v3588
        %v3715 = vmul.f32 %v3589, %v3589
        %v3716 = vmul.f32 %v3590, %v3590
        %v3717 = vmul.f32 %v3591, %v3591
        %v3718 = vmul.f32 %v3592, %v3592
        %v3719 = vmul.f32 %v3593, %v3593
        %v3720 = vmul.f32 %v3594, %v3594
        %v3721 = vmul.f32 %v3595, %v3595
        %v3722 = vmul.f32 %v3596, %v3596
        %v3723 = vmul.f32 %v3597, %v3597
        %v3724 = vmul.f32 %v3598, %v3598
        %v3725 = vmul.f32 %v3599, %v3599
        %v3726 = vmul.f32 %v3600, %v3600
        %v3727 = vmul.f32 %v3601, %v3601
        %v3728 = vmul.f32 %v3602, %v3602
        %v3729 = vmul.f32 %v3603, %v3603
        %v3730 = vmul.f32 %v3604, %v3604
        %v3731 = vmul.f32 %v3605, %v3605
        %v3732 = vsub.f32 %v3696, %v3714
        %v3733 = vsub.f32 %v3697, %v3715
        %v3734 = vsub.f32 %v3698, %v3716
        %v3735 = vsub.f32 %v3699, %v3717
        %v3736 = vsub.f32 %v3700, %v3718
        %v3737 = vsub.f32 %v3701, %v3719
        %v3738 = vsub.f32 %v3702, %v3720
        %v3739 = vsub.f32 %v3703, %v3721
        %v3740 = vsub.f32 %v3704, %v3722
        %v3741 = vsub.f32 %v3705, %v3723
        %v3742 = vsub.f32 %v3706, %v3724
        %v3743 = vsub.f32 %v3707, %v3725
        %v3744 = vsub.f32 %v3708, %v3726
        %v3745 = vsub.f32 %v3709, %v3727
        %v3746 = vsub.f32 %v3710, %v3728
        %v3747 = vsub.f32 %v3711, %v3729
        %v3748 = vsub.f32 %v3712, %v3730
        %v3749 = vsub.f32 %v3713, %v3731
        %v3750 = vadd.f32 %v3732, 1e-05
        %v3751 = vadd.f32 %v3733, 1e-05
        %v3752 = vadd.f32 %v3734, 1e-05
        %v3753 = vadd.f32 %v3735, 1e-05
        %v3754 = vadd.f32 %v3736, 1e-05
        %v3755 = vadd.f32 %v3737, 1e-05
        %v3756 = vadd.f32 %v3738, 1e-05
        %v3757 = vadd.f32 %v3739, 1e-05
        %v3758 = vadd.f32 %v3740, 1e-05
        %v3759 = vadd.f32 %v3741, 1e-05
        %v3760 = vadd.f32 %v3742, 1e-05
        %v3761 = vadd.f32 %v3743, 1e-05
        %v3762 = vadd.f32 %v3744, 1e-05
        %v3763 = vadd.f32 %v3745, 1e-05
        %v3764 = vadd.f32 %v3746, 1e-05
        %v3765 = vadd.f32 %v3747, 1e-05
        %v3766 = vadd.f32 %v3748, 1e-05
        %v3767 = vadd.f32 %v3749, 1e-05
        %v3768 = vrsqrt.pop %v3750
        %v3769 = vrsqrt.pop %v3751
        %v3770 = vrsqrt.pop %v3752
        %v3771 = vrsqrt.pop %v3753
        %v3772 = vrsqrt.pop %v3754
        %v3773 = vrsqrt.pop %v3755
        %v3774 = vrsqrt.pop %v3756
        %v3775 = vrsqrt.pop %v3757
        %v3776 = vrsqrt.pop %v3758
        %v3777 = vrsqrt.pop %v3759
        %v3778 = vrsqrt.pop %v3760
        %v3779 = vrsqrt.pop %v3761
        %v3780 = vrsqrt.pop %v3762
        %v3781 = vrsqrt.pop %v3763
        %v3782 = vrsqrt.pop %v3764
        %v3783 = vrsqrt.pop %v3765
        %v3784 = vrsqrt.pop %v3766
        %v3785 = vrsqrt.pop %v3767
        %v3786 = vsub.f32 %v3496, %v3588
        %v3787 = vsub.f32 %v3497, %v3588
        %v3788 = vsub.f32 %v3498, %v3589
        %v3789 = vsub.f32 %v3499, %v3589
        %v3790 = vsub.f32 %v3500, %v3590
        %v3791 = vsub.f32 %v3501, %v3590
        %v3792 = vsub.f32 %v3502, %v3591
        %v3793 = vsub.f32 %v3503, %v3591
        %v3794 = vsub.f32 %v3504, %v3592
        %v3795 = vsub.f32 %v3505, %v3592
        %v3796 = vsub.f32 %v3506, %v3593
        %v3797 = vsub.f32 %v3507, %v3593
        %v3798 = vsub.f32 %v3508, %v3594
        %v3799 = vsub.f32 %v3509, %v3594
        %v3800 = vsub.f32 %v3510, %v3595
        %v3801 = vsub.f32 %v3511, %v3595
        %v3802 = vsub.f32 %v3512, %v3596
        %v3803 = vsub.f32 %v3513, %v3596
        %v3804 = vsub.f32 %v3514, %v3597
        %v3805 = vsub.f32 %v3515, %v3597
        %v3806 = vsub.f32 %v3516, %v3598
        %v3807 = vsub.f32 %v3517, %v3598
        %v3808 = vsub.f32 %v3518, %v3599
        %v3809 = vsub.f32 %v3519, %v3599
        %v3810 = vsub.f32 %v3520, %v3600
        %v3811 = vsub.f32 %v3521, %v3600
        %v3812 = vsub.f32 %v3522, %v3601
        %v3813 = vsub.f32 %v3523, %v3601
        %v3814 = vsub.f32 %v3524, %v3602
        %v3815 = vsub.f32 %v3525, %v3602
        %v3816 = vsub.f32 %v3526, %v3603
        %v3817 = vsub.f32 %v3527, %v3603
        %v3818 = vsub.f32 %v3528, %v3604
        %v3819 = vsub.f32 %v3529, %v3604
        %v3820 = vsub.f32 %v3530, %v3605
        %v3821 = vsub.f32 %v3531, %v3605
        %v3822 = vmul.f32 %v3786, %v3768
        %v3823 = vmul.f32 %v3787, %v3768
        %v3824 = vmul.f32 %v3788, %v3769
        %v3825 = vmul.f32 %v3789, %v3769
        %v3826 = vmul.f32 %v3790, %v3770
        %v3827 = vmul.f32 %v3791, %v3770
        %v3828 = vmul.f32 %v3792, %v3771
        %v3829 = vmul.f32 %v3793, %v3771
        %v3830 = vmul.f32 %v3794, %v3772
        %v3831 = vmul.f32 %v3795, %v3772
        %v3832 = vmul.f32 %v3796, %v3773
        %v3833 = vmul.f32 %v3797, %v3773
        %v3834 = vmul.f32 %v3798, %v3774
        %v3835 = vmul.f32 %v3799, %v3774
        %v3836 = vmul.f32 %v3800, %v3775
        %v3837 = vmul.f32 %v3801, %v3775
        %v3838 = vmul.f32 %v3802, %v3776
        %v3839 = vmul.f32 %v3803, %v3776
        %v3840 = vmul.f32 %v3804, %v3777
        %v3841 = vmul.f32 %v3805, %v3777
        %v3842 = vmul.f32 %v3806, %v3778
        %v3843 = vmul.f32 %v3807, %v3778
        %v3844 = vmul.f32 %v3808, %v3779
        %v3845 = vmul.f32 %v3809, %v3779
        %v3846 = vmul.f32 %v3810, %v3780
        %v3847 = vmul.f32 %v3811, %v3780
        %v3848 = vmul.f32 %v3812, %v3781
        %v3849 = vmul.f32 %v3813, %v3781
        %v3850 = vmul.f32 %v3814, %v3782
        %v3851 = vmul.f32 %v3815, %v3782
        %v3852 = vmul.f32 %v3816, %v3783
        %v3853 = vmul.f32 %v3817, %v3783
        %v3854 = vmul.f32 %v3818, %v3784
        %v3855 = vmul.f32 %v3819, %v3784
        %v3856 = vmul.f32 %v3820, %v3785
        %v3857 = vmul.f32 %v3821, %v3785
        %v3859 = vlaneseq
        %v3860 = vshrl.u32 %v3859, 7
        %v3861 = vsub.s32 0, %v3860
        %v3862 = vrot.slane %v3532, %v3861
        %v3863 = vlaneseq
        %v3864 = vshrl.u32 %v3863, 7
        %v3865 = vsub.s32 1, %v3864
        %v3866 = vrot.slane %v3532, %v3865
        %v3869 = vmul.f32 %v3822, %v3862
        %v3870 = vmul.f32 %v3823, %v3866
        %v3871 = vmul.f32 %v3824, %v3862
        %v3872 = vmul.f32 %v3825, %v3866
        %v3873 = vmul.f32 %v3826, %v3862
        %v3874 = vmul.f32 %v3827, %v3866
        %v3875 = vmul.f32 %v3828, %v3862
        %v3876 = vmul.f32 %v3829, %v3866
        %v3877 = vmul.f32 %v3830, %v3862
        %v3878 = vmul.f32 %v3831, %v3866
        %v3879 = vmul.f32 %v3832, %v3862
        %v3880 = vmul.f32 %v3833, %v3866
        %v3881 = vmul.f32 %v3834, %v3862
        %v3882 = vmul.f32 %v3835, %v3866
        %v3883 = vmul.f32 %v3836, %v3862
        %v3884 = vmul.f32 %v3837, %v3866
        %v3885 = vmul.f32 %v3838, %v3862
        %v3886 = vmul.f32 %v3839, %v3866
        %v3887 = vmul.f32 %v3840, %v3862
        %v3888 = vmul.f32 %v3841, %v3866
        %v3889 = vmul.f32 %v3842, %v3862
        %v3890 = vmul.f32 %v3843, %v3866
        %v3891 = vmul.f32 %v3844, %v3862
        %v3892 = vmul.f32 %v3845, %v3866
        %v3893 = vmul.f32 %v3846, %v3862
        %v3894 = vmul.f32 %v3847, %v3866
        %v3895 = vmul.f32 %v3848, %v3862
        %v3896 = vmul.f32 %v3849, %v3866
        %v3897 = vmul.f32 %v3850, %v3862
        %v3898 = vmul.f32 %v3851, %v3866
        %v3899 = vmul.f32 %v3852, %v3862
        %v3900 = vmul.f32 %v3853, %v3866
        %v3901 = vmul.f32 %v3854, %v3862
        %v3902 = vmul.f32 %v3855, %v3866
        %v3903 = vmul.f32 %v3856, %v3862
        %v3904 = vmul.f32 %v3857, %v3866
        %v3906 = vlaneseq
        %v3907 = vshrl.u32 %v3906, 7
        %v3908 = vsub.s32 0, %v3907
        %v3909 = vrot.slane %v3533, %v3908
        %v3910 = vlaneseq
        %v3911 = vshrl.u32 %v3910, 7
        %v3912 = vsub.s32 1, %v3911
        %v3913 = vrot.slane %v3533, %v3912
        %v3916 = vadd.f32 %v3869, %v3909
        %v3917 = vadd.f32 %v3870, %v3913
        %v3918 = vadd.f32 %v3871, %v3909
        %v3919 = vadd.f32 %v3872, %v3913
        %v3920 = vadd.f32 %v3873, %v3909
        %v3921 = vadd.f32 %v3874, %v3913
        %v3922 = vadd.f32 %v3875, %v3909
        %v3923 = vadd.f32 %v3876, %v3913
        %v3924 = vadd.f32 %v3877, %v3909
        %v3925 = vadd.f32 %v3878, %v3913
        %v3926 = vadd.f32 %v3879, %v3909
        %v3927 = vadd.f32 %v3880, %v3913
        %v3928 = vadd.f32 %v3881, %v3909
        %v3929 = vadd.f32 %v3882, %v3913
        %v3930 = vadd.f32 %v3883, %v3909
        %v3931 = vadd.f32 %v3884, %v3913
        %v3932 = vadd.f32 %v3885, %v3909
        %v3933 = vadd.f32 %v3886, %v3913
        %v3934 = vadd.f32 %v3887, %v3909
        %v3935 = vadd.f32 %v3888, %v3913
        %v3936 = vadd.f32 %v3889, %v3909
        %v3937 = vadd.f32 %v3890, %v3913
        %v3938 = vadd.f32 %v3891, %v3909
        %v3939 = vadd.f32 %v3892, %v3913
        %v3940 = vadd.f32 %v3893, %v3909
        %v3941 = vadd.f32 %v3894, %v3913
        %v3942 = vadd.f32 %v3895, %v3909
        %v3943 = vadd.f32 %v3896, %v3913
        %v3944 = vadd.f32 %v3897, %v3909
        %v3945 = vadd.f32 %v3898, %v3913
        %v3946 = vadd.f32 %v3899, %v3909
        %v3947 = vadd.f32 %v3900, %v3913
        %v3948 = vadd.f32 %v3901, %v3909
        %v3949 = vadd.f32 %v3902, %v3913
        %v3950 = vadd.f32 %v3903, %v3909
        %v3951 = vadd.f32 %v3904, %v3913
        %v3952 = vpack.c.bf16 %v3918, %v3916
        %v3953 = vpack.c.bf16 %v3919, %v3917
        %v3954 = vpack.c.bf16 %v3922, %v3920
        %v3955 = vpack.c.bf16 %v3923, %v3921
        %v3956 = vpack.c.bf16 %v3926, %v3924
        %v3957 = vpack.c.bf16 %v3927, %v3925
        %v3958 = vpack.c.bf16 %v3930, %v3928
        %v3959 = vpack.c.bf16 %v3931, %v3929
        %v3960 = vpack.c.bf16 %v3934, %v3932
        %v3961 = vpack.c.bf16 %v3935, %v3933
        %v3962 = vpack.c.bf16 %v3938, %v3936
        %v3963 = vpack.c.bf16 %v3939, %v3937
        %v3964 = vpack.c.bf16 %v3942, %v3940
        %v3965 = vpack.c.bf16 %v3943, %v3941
        %v3966 = vpack.c.bf16 %v3946, %v3944
        %v3967 = vpack.c.bf16 %v3947, %v3945
        %v3968 = vpack.c.bf16 %v3950, %v3948
        %v3969 = vpack.c.bf16 %v3951, %v3949
        %v3970 = vld [vmem:[%s649] sm:$0xff]
        %v3971 = vld [vmem:[%s649 + $0x8] sm:$0xff]
        %v3972 = vld [vmem:[%s649 + $0x10] sm:$0xff]
        %v3973 = vld [vmem:[%s649 + $0x18] sm:$0xff]
        %v3974 = vld [vmem:[%s649 + $0x20] sm:$0xff]
        %v3975 = vld [vmem:[%s649 + $0x28] sm:$0xff]
        %v3976 = vld [vmem:[%s649 + $0x30] sm:$0xff]
        %v3977 = vld [vmem:[%s649 + $0x38] sm:$0xff]
        %v3978 = vld [vmem:[%s649 + $0x40] sm:$0xff]
        %v3979 = vld [vmem:[%s649 + $0x48] sm:$0xff]
        %v3980 = vld [vmem:[%s649 + $0x50] sm:$0xff]
        %v3981 = vld [vmem:[%s649 + $0x58] sm:$0xff]
        %v3982 = vld [vmem:[%s649 + $0x60] sm:$0xff]
        %v3983 = vld [vmem:[%s649 + $0x68] sm:$0xff]
        %v3984 = vld [vmem:[%s649 + $0x70] sm:$0xff]
        %v3985 = vld [vmem:[%s649 + $0x78] sm:$0xff]
        %v3986 = vld [vmem:[%s649 + $0x80] sm:$0xff]
        %v3987 = vld [vmem:[%s649 + $0x88] sm:$0xff]
        %v3988 = vld [vmem:[%s649 + $0x90] sm:$0xff]
        %v3989 = vld [vmem:[%s649 + $0x98] sm:$0xff]
        %v3990 = vld [vmem:[%s649 + $0xa0] sm:$0xff]
        %v3991 = vld [vmem:[%s649 + $0xa8] sm:$0xff]
        %v3992 = vld [vmem:[%s649 + $0xb0] sm:$0xff]
        %v3993 = vld [vmem:[%s649 + $0xb8] sm:$0xff]
        %v3994 = vld [vmem:[%s649 + $0xc0] sm:$0xff]
        %v3995 = vld [vmem:[%s649 + $0xc8] sm:$0xff]
        %v3996 = vld [vmem:[%s649 + $0xd0] sm:$0xff]
        %v3997 = vld [vmem:[%s649 + $0xd8] sm:$0xff]
        %v3998 = vld [vmem:[%s649 + $0xe0] sm:$0xff]
        %v3999 = vld [vmem:[%s649 + $0xe8] sm:$0xff]
        %v4000 = vld [vmem:[%s649 + $0xf0] sm:$0xff]
        %v4001 = vld [vmem:[%s649 + $0xf8] sm:$0xff]
        %v4002 = vld [vmem:[%s783] sm:$0x3]
        %v4004 = vlaneseq
        %v4005 = vshrl.u32 %v4004, 7
        %v4006 = vsub.s32 0, %v4005
        %v4007 = vrot.slane %v4002, %v4006
        %v4008 = vlaneseq
        %v4009 = vshrl.u32 %v4008, 7
        %v4010 = vsub.s32 1, %v4009
        %v4011 = vrot.slane %v4002, %v4010
        %v4046 = vunpack.c.l.b16 %v3970
        %v4047 = vunpack.c.h.b16 %v3970
        %v4048 = vunpack.c.l.b16 %v3971
        %v4049 = vunpack.c.h.b16 %v3971
        %v4050 = vunpack.c.l.b16 %v3972
        %v4051 = vunpack.c.h.b16 %v3972
        %v4052 = vunpack.c.l.b16 %v3973
        %v4053 = vunpack.c.h.b16 %v3973
        %v4054 = vunpack.c.l.b16 %v3974
        %v4055 = vunpack.c.h.b16 %v3974
        %v4056 = vunpack.c.l.b16 %v3975
        %v4057 = vunpack.c.h.b16 %v3975
        %v4058 = vunpack.c.l.b16 %v3976
        %v4059 = vunpack.c.h.b16 %v3976
        %v4060 = vunpack.c.l.b16 %v3977
        %v4061 = vunpack.c.h.b16 %v3977
        %v4062 = vunpack.c.l.b16 %v3978
        %v4063 = vunpack.c.h.b16 %v3978
        %v4064 = vunpack.c.l.b16 %v3979
        %v4065 = vunpack.c.h.b16 %v3979
        %v4066 = vunpack.c.l.b16 %v3980
        %v4067 = vunpack.c.h.b16 %v3980
        %v4068 = vunpack.c.l.b16 %v3981
        %v4069 = vunpack.c.h.b16 %v3981
        %v4070 = vunpack.c.l.b16 %v3982
        %v4071 = vunpack.c.h.b16 %v3982
        %v4072 = vunpack.c.l.b16 %v3983
        %v4073 = vunpack.c.h.b16 %v3983
        %v4074 = vunpack.c.l.b16 %v3984
        %v4075 = vunpack.c.h.b16 %v3984
        %v4076 = vunpack.c.l.b16 %v3985
        %v4077 = vunpack.c.h.b16 %v3985
        %v4078 = vunpack.c.l.b16 %v3986
        %v4079 = vunpack.c.h.b16 %v3986
        %v4080 = vunpack.c.l.b16 %v3987
        %v4081 = vunpack.c.h.b16 %v3987
        %v4082 = vunpack.c.l.b16 %v3988
        %v4083 = vunpack.c.h.b16 %v3988
        %v4084 = vunpack.c.l.b16 %v3989
        %v4085 = vunpack.c.h.b16 %v3989
        %v4086 = vunpack.c.l.b16 %v3990
        %v4087 = vunpack.c.h.b16 %v3990
        %v4088 = vunpack.c.l.b16 %v3991
        %v4089 = vunpack.c.h.b16 %v3991
        %v4090 = vunpack.c.l.b16 %v3992
        %v4091 = vunpack.c.h.b16 %v3992
        %v4092 = vunpack.c.l.b16 %v3993
        %v4093 = vunpack.c.h.b16 %v3993
        %v4094 = vunpack.c.l.b16 %v3994
        %v4095 = vunpack.c.h.b16 %v3994
        %v4096 = vunpack.c.l.b16 %v3995
        %v4097 = vunpack.c.h.b16 %v3995
        %v4098 = vunpack.c.l.b16 %v3996
        %v4099 = vunpack.c.h.b16 %v3996
        %v4100 = vunpack.c.l.b16 %v3997
        %v4101 = vunpack.c.h.b16 %v3997
        %v4102 = vunpack.c.l.b16 %v3998
        %v4103 = vunpack.c.h.b16 %v3998
        %v4104 = vunpack.c.l.b16 %v3999
        %v4105 = vunpack.c.h.b16 %v3999
        %v4106 = vunpack.c.l.b16 %v4000
        %v4107 = vunpack.c.h.b16 %v4000
        %v4108 = vunpack.c.l.b16 %v4001
        %v4109 = vunpack.c.h.b16 %v4001
        %v4110 = vpack.c.b16 %v4048, %v4046
        %v4111 = vpack.c.b16 %v4049, %v4047
        %v4112 = vpack.c.b16 %v4052, %v4050
        %v4113 = vpack.c.b16 %v4053, %v4051
        %v4114 = vpack.c.b16 %v4056, %v4054
        %v4115 = vpack.c.b16 %v4057, %v4055
        %v4116 = vpack.c.b16 %v4060, %v4058
        %v4117 = vpack.c.b16 %v4061, %v4059
        %v4118 = vpack.c.b16 %v4064, %v4062
        %v4119 = vpack.c.b16 %v4065, %v4063
        %v4120 = vpack.c.b16 %v4068, %v4066
        %v4121 = vpack.c.b16 %v4069, %v4067
        %v4122 = vpack.c.b16 %v4072, %v4070
        %v4123 = vpack.c.b16 %v4073, %v4071
        %v4124 = vpack.c.b16 %v4076, %v4074
        %v4125 = vpack.c.b16 %v4077, %v4075
        %v4126 = vpack.c.b16 %v4080, %v4078
        %v4127 = vpack.c.b16 %v4081, %v4079
        %v4128 = vpack.c.b16 %v4084, %v4082
        %v4129 = vpack.c.b16 %v4085, %v4083
        %v4130 = vpack.c.b16 %v4088, %v4086
        %v4131 = vpack.c.b16 %v4089, %v4087
        %v4132 = vpack.c.b16 %v4092, %v4090
        %v4133 = vpack.c.b16 %v4093, %v4091
        %v4134 = vpack.c.b16 %v4096, %v4094
        %v4135 = vpack.c.b16 %v4097, %v4095
        %v4136 = vpack.c.b16 %v4100, %v4098
        %v4137 = vpack.c.b16 %v4101, %v4099
        %v4138 = vpack.c.b16 %v4104, %v4102
        %v4139 = vpack.c.b16 %v4105, %v4103
        %v4140 = vpack.c.b16 %v4108, %v4106
        %v4141 = vpack.c.b16 %v4109, %v4107
        %4174 = vmatprep.subr.bf16.mxu0 %v4111
        %4175 = vmatpush1.bf16.msra.mxu0 %v4110
        %4176 = vmatprep.subr.bf16.mxu0 %v4113
        %4177 = vmatpush1.bf16.msra.mxu0 %v4112
        %4178 = vmatprep.subr.bf16.mxu0 %v4115
        %4179 = vmatpush1.bf16.msra.mxu0 %v4114
        %4180 = vmatprep.subr.bf16.mxu0 %v4117
        %4181 = vmatpush1.bf16.msra.mxu0 %v4116
        %4182 = vmatprep.subr.bf16.mxu0 %v4119
        %4183 = vmatpush1.bf16.msra.mxu0 %v4118
        %4184 = vmatprep.subr.bf16.mxu0 %v4121
        %4185 = vmatpush1.bf16.msra.mxu0 %v4120
        %4186 = vmatprep.subr.bf16.mxu0 %v4123
        %4187 = vmatpush1.bf16.msra.mxu0 %v4122
        %4188 = vmatprep.subr.bf16.mxu0 %v4125
        %4189 = vmatpush1.bf16.msra.mxu0 %v4124
        %4190 = vmatprep.subr.bf16.mxu0 %v4127
        %4191 = vmatpush1.bf16.msra.mxu0 %v4126
        %4192 = vmatprep.subr.bf16.mxu0 %v4129
        %4193 = vmatpush1.bf16.msra.mxu0 %v4128
        %4194 = vmatprep.subr.bf16.mxu0 %v4131
        %4195 = vmatpush1.bf16.msra.mxu0 %v4130
        %4196 = vmatprep.subr.bf16.mxu0 %v4133
        %4197 = vmatpush1.bf16.msra.mxu0 %v4132
        %4198 = vmatprep.subr.bf16.mxu0 %v4135
        %4199 = vmatpush1.bf16.msra.mxu0 %v4134
        %4200 = vmatprep.subr.bf16.mxu0 %v4137
        %4201 = vmatpush1.bf16.msra.mxu0 %v4136
        %4202 = vmatprep.subr.bf16.mxu0 %v4139
        %4203 = vmatpush1.bf16.msra.mxu0 %v4138
        %4204 = vmatprep.subr.bf16.mxu0 %v4141
        %4205 = vmatpush1.bf16.msra.mxu0 %v4140
        %4206 = vmatprep.mubr.bf16.mxu0 %v3953
        %4207 = vmatmul.mubr.bf16.gmra.mrb[0].mxu0 %v3952
        %v4208 = vpop.f32.mrb[0].mxu0
        %v4209 = vadd.f32 %v4007, %v4208
        %v4210 = vpop.f32.mrb[0].mxu0
        %v4211 = vadd.f32 %v4011, %v4210
        %v4212 = vpop.f32.mrb[0].mxu0
        %v4213 = vadd.f32 %v4007, %v4212
        %v4214 = vpop.f32.mrb[0].mxu0
        %v4215 = vadd.f32 %v4011, %v4214
        %4216 = vmatprep.mubr.bf16.mxu0 %v3955
        %4217 = vmatmul.mubr.bf16.gmra.mrb[0].mxu0 %v3954
        %v4218 = vpop.f32.mrb[0].mxu0
        %v4219 = vadd.f32 %v4007, %v4218
        %v4220 = vpop.f32.mrb[0].mxu0
        %v4221 = vadd.f32 %v4011, %v4220
        %v4222 = vpop.f32.mrb[0].mxu0
        %v4223 = vadd.f32 %v4007, %v4222
        %v4224 = vpop.f32.mrb[0].mxu0
        %v4225 = vadd.f32 %v4011, %v4224
        %4226 = vmatprep.mubr.bf16.mxu0 %v3957
        %4227 = vmatmul.mubr.bf16.gmra.mrb[0].mxu0 %v3956
        %v4228 = vpop.f32.mrb[0].mxu0
        %v4229 = vadd.f32 %v4007, %v4228
        %v4230 = vpop.f32.mrb[0].mxu0
        %v4231 = vadd.f32 %v4011, %v4230
        %v4232 = vpop.f32.mrb[0].mxu0
        %v4233 = vadd.f32 %v4007, %v4232
        %v4234 = vpop.f32.mrb[0].mxu0
        %v4235 = vadd.f32 %v4011, %v4234
        %4236 = vmatprep.mubr.bf16.mxu0 %v3959
        %4237 = vmatmul.mubr.bf16.gmra.mrb[0].mxu0 %v3958
        %v4238 = vpop.f32.mrb[0].mxu0
        %v4239 = vadd.f32 %v4007, %v4238
        %v4240 = vpop.f32.mrb[0].mxu0
        %v4241 = vadd.f32 %v4011, %v4240
        %v4242 = vpop.f32.mrb[0].mxu0
        %v4243 = vadd.f32 %v4007, %v4242
        %v4244 = vpop.f32.mrb[0].mxu0
        %v4245 = vadd.f32 %v4011, %v4244
        %4246 = vmatprep.mubr.bf16.mxu0 %v3961
        %4247 = vmatmul.mubr.bf16.gmra.mrb[0].mxu0 %v3960
        %v4248 = vpop.f32.mrb[0].mxu0
        %v4249 = vadd.f32 %v4007, %v4248
        %v4250 = vpop.f32.mrb[0].mxu0
        %v4251 = vadd.f32 %v4011, %v4250
        %v4252 = vpop.f32.mrb[0].mxu0
        %v4253 = vadd.f32 %v4007, %v4252
        %v4254 = vpop.f32.mrb[0].mxu0
        %v4255 = vadd.f32 %v4011, %v4254
        %4256 = vmatprep.mubr.bf16.mxu0 %v3963
        %4257 = vmatmul.mubr.bf16.gmra.mrb[0].mxu0 %v3962
        %v4258 = vpop.f32.mrb[0].mxu0
        %v4259 = vadd.f32 %v4007, %v4258
        %v4260 = vpop.f32.mrb[0].mxu0
        %v4261 = vadd.f32 %v4011, %v4260
        %v4262 = vpop.f32.mrb[0].mxu0
        %v4263 = vadd.f32 %v4007, %v4262
        %v4264 = vpop.f32.mrb[0].mxu0
        %v4265 = vadd.f32 %v4011, %v4264
        %4266 = vmatprep.mubr.bf16.mxu0 %v3965
        %4267 = vmatmul.mubr.bf16.gmra.mrb[0].mxu0 %v3964
        %v4268 = vpop.f32.mrb[0].mxu0
        %v4269 = vadd.f32 %v4007, %v4268
        %v4270 = vpop.f32.mrb[0].mxu0
        %v4271 = vadd.f32 %v4011, %v4270
        %v4272 = vpop.f32.mrb[0].mxu0
        %v4273 = vadd.f32 %v4007, %v4272
        %v4274 = vpop.f32.mrb[0].mxu0
        %v4275 = vadd.f32 %v4011, %v4274
        %4276 = vmatprep.mubr.bf16.mxu0 %v3967
        %4277 = vmatmul.mubr.bf16.gmra.mrb[0].mxu0 %v3966
        %v4278 = vpop.f32.mrb[0].mxu0
        %v4279 = vadd.f32 %v4007, %v4278
        %v4280 = vpop.f32.mrb[0].mxu0
        %v4281 = vadd.f32 %v4011, %v4280
        %v4282 = vpop.f32.mrb[0].mxu0
        %v4283 = vadd.f32 %v4007, %v4282
        %v4284 = vpop.f32.mrb[0].mxu0
        %v4285 = vadd.f32 %v4011, %v4284
        %4286 = vmatprep.mubr.bf16.mxu0 %v3969
        %4287 = vmatmul.mubr.bf16.gmra.mrb[0].mxu0 %v3968
        %v4288 = vpop.f32.mrb[0].mxu0
        %v4289 = vadd.f32 %v4007, %v4288
        %v4290 = vpop.f32.mrb[0].mxu0
        %v4291 = vadd.f32 %v4011, %v4290
        %v4292 = vpop.f32.mrb[0].mxu0
        %v4293 = vadd.f32 %v4007, %v4292
        %v4294 = vpop.f32.mrb[0].mxu0
        %v4295 = vadd.f32 %v4011, %v4294
        %4296 = vdwg.mxu0
        %v4297 = vmul.f32 %v4209, %v4209
        %v4298 = vmul.f32 %v4211, %v4211
        %v4299 = vmul.f32 %v4213, %v4213
        %v4300 = vmul.f32 %v4215, %v4215
        %v4301 = vmul.f32 %v4219, %v4219
        %v4302 = vmul.f32 %v4221, %v4221
        %v4303 = vmul.f32 %v4223, %v4223
        %v4304 = vmul.f32 %v4225, %v4225
        %v4305 = vmul.f32 %v4229, %v4229
        %v4306 = vmul.f32 %v4231, %v4231
        %v4307 = vmul.f32 %v4233, %v4233
        %v4308 = vmul.f32 %v4235, %v4235
        %v4309 = vmul.f32 %v4239, %v4239
        %v4310 = vmul.f32 %v4241, %v4241
        %v4311 = vmul.f32 %v4243, %v4243
        %v4312 = vmul.f32 %v4245, %v4245
        %v4313 = vmul.f32 %v4249, %v4249
        %v4314 = vmul.f32 %v4251, %v4251
        %v4315 = vmul.f32 %v4253, %v4253
        %v4316 = vmul.f32 %v4255, %v4255
        %v4317 = vmul.f32 %v4259, %v4259
        %v4318 = vmul.f32 %v4261, %v4261
        %v4319 = vmul.f32 %v4263, %v4263
        %v4320 = vmul.f32 %v4265, %v4265
        %v4321 = vmul.f32 %v4269, %v4269
        %v4322 = vmul.f32 %v4271, %v4271
        %v4323 = vmul.f32 %v4273, %v4273
        %v4324 = vmul.f32 %v4275, %v4275
        %v4325 = vmul.f32 %v4279, %v4279
        %v4326 = vmul.f32 %v4281, %v4281
        %v4327 = vmul.f32 %v4283, %v4283
        %v4328 = vmul.f32 %v4285, %v4285
        %v4329 = vmul.f32 %v4289, %v4289
        %v4330 = vmul.f32 %v4291, %v4291
        %v4331 = vmul.f32 %v4293, %v4293
        %v4332 = vmul.f32 %v4295, %v4295
        %v4333 = vmul.f32 %v4209, %v4297
        %v4334 = vmul.f32 %v4211, %v4298
        %v4335 = vmul.f32 %v4213, %v4299
        %v4336 = vmul.f32 %v4215, %v4300
        %v4337 = vmul.f32 %v4219, %v4301
        %v4338 = vmul.f32 %v4221, %v4302
        %v4339 = vmul.f32 %v4223, %v4303
        %v4340 = vmul.f32 %v4225, %v4304
        %v4341 = vmul.f32 %v4229, %v4305
        %v4342 = vmul.f32 %v4231, %v4306
        %v4343 = vmul.f32 %v4233, %v4307
        %v4344 = vmul.f32 %v4235, %v4308
        %v4345 = vmul.f32 %v4239, %v4309
        %v4346 = vmul.f32 %v4241, %v4310
        %v4347 = vmul.f32 %v4243, %v4311
        %v4348 = vmul.f32 %v4245, %v4312
        %v4349 = vmul.f32 %v4249, %v4313
        %v4350 = vmul.f32 %v4251, %v4314
        %v4351 = vmul.f32 %v4253, %v4315
        %v4352 = vmul.f32 %v4255, %v4316
        %v4353 = vmul.f32 %v4259, %v4317
        %v4354 = vmul.f32 %v4261, %v4318
        %v4355 = vmul.f32 %v4263, %v4319
        %v4356 = vmul.f32 %v4265, %v4320
        %v4357 = vmul.f32 %v4269, %v4321
        %v4358 = vmul.f32 %v4271, %v4322
        %v4359 = vmul.f32 %v4273, %v4323
        %v4360 = vmul.f32 %v4275, %v4324
        %v4361 = vmul.f32 %v4279, %v4325
        %v4362 = vmul.f32 %v4281, %v4326
        %v4363 = vmul.f32 %v4283, %v4327
        %v4364 = vmul.f32 %v4285, %v4328
        %v4365 = vmul.f32 %v4289, %v4329
        %v4366 = vmul.f32 %v4291, %v4330
        %v4367 = vmul.f32 %v4293, %v4331
        %v4368 = vmul.f32 %v4295, %v4332
        %v4369 = vmul.f32 %v4333, 0.044715
        %v4370 = vmul.f32 %v4334, 0.044715
        %v4371 = vmul.f32 %v4335, 0.044715
        %v4372 = vmul.f32 %v4336, 0.044715
        %v4373 = vmul.f32 %v4337, 0.044715
        %v4374 = vmul.f32 %v4338, 0.044715
        %v4375 = vmul.f32 %v4339, 0.044715
        %v4376 = vmul.f32 %v4340, 0.044715
        %v4377 = vmul.f32 %v4341, 0.044715
        %v4378 = vmul.f32 %v4342, 0.044715
        %v4379 = vmul.f32 %v4343, 0.044715
        %v4380 = vmul.f32 %v4344, 0.044715
        %v4381 = vmul.f32 %v4345, 0.044715
        %v4382 = vmul.f32 %v4346, 0.044715
        %v4383 = vmul.f32 %v4347, 0.044715
        %v4384 = vmul.f32 %v4348, 0.044715
        %v4385 = vmul.f32 %v4349, 0.044715
        %v4386 = vmul.f32 %v4350, 0.044715
        %v4387 = vmul.f32 %v4351, 0.044715
        %v4388 = vmul.f32 %v4352, 0.044715
        %v4389 = vmul.f32 %v4353, 0.044715
        %v4390 = vmul.f32 %v4354, 0.044715
        %v4391 = vmul.f32 %v4355, 0.044715
        %v4392 = vmul.f32 %v4356, 0.044715
        %v4393 = vmul.f32 %v4357, 0.044715
        %v4394 = vmul.f32 %v4358, 0.044715
        %v4395 = vmul.f32 %v4359, 0.044715
        %v4396 = vmul.f32 %v4360, 0.044715
        %v4397 = vmul.f32 %v4361, 0.044715
        %v4398 = vmul.f32 %v4362, 0.044715
        %v4399 = vmul.f32 %v4363, 0.044715
        %v4400 = vmul.f32 %v4364, 0.044715
        %v4401 = vmul.f32 %v4365, 0.044715
        %v4402 = vmul.f32 %v4366, 0.044715
        %v4403 = vmul.f32 %v4367, 0.044715
        %v4404 = vmul.f32 %v4368, 0.044715
        %v4405 = vadd.f32 %v4209, %v4369
        %v4406 = vadd.f32 %v4211, %v4370
        %v4407 = vadd.f32 %v4213, %v4371
        %v4408 = vadd.f32 %v4215, %v4372
        %v4409 = vadd.f32 %v4219, %v4373
        %v4410 = vadd.f32 %v4221, %v4374
        %v4411 = vadd.f32 %v4223, %v4375
        %v4412 = vadd.f32 %v4225, %v4376
        %v4413 = vadd.f32 %v4229, %v4377
        %v4414 = vadd.f32 %v4231, %v4378
        %v4415 = vadd.f32 %v4233, %v4379
        %v4416 = vadd.f32 %v4235, %v4380
        %v4417 = vadd.f32 %v4239, %v4381
        %v4418 = vadd.f32 %v4241, %v4382
        %v4419 = vadd.f32 %v4243, %v4383
        %v4420 = vadd.f32 %v4245, %v4384
        %v4421 = vadd.f32 %v4249, %v4385
        %v4422 = vadd.f32 %v4251, %v4386
        %v4423 = vadd.f32 %v4253, %v4387
        %v4424 = vadd.f32 %v4255, %v4388
        %v4425 = vadd.f32 %v4259, %v4389
        %v4426 = vadd.f32 %v4261, %v4390
        %v4427 = vadd.f32 %v4263, %v4391
        %v4428 = vadd.f32 %v4265, %v4392
        %v4429 = vadd.f32 %v4269, %v4393
        %v4430 = vadd.f32 %v4271, %v4394
        %v4431 = vadd.f32 %v4273, %v4395
        %v4432 = vadd.f32 %v4275, %v4396
        %v4433 = vadd.f32 %v4279, %v4397
        %v4434 = vadd.f32 %v4281, %v4398
        %v4435 = vadd.f32 %v4283, %v4399
        %v4436 = vadd.f32 %v4285, %v4400
        %v4437 = vadd.f32 %v4289, %v4401
        %v4438 = vadd.f32 %v4291, %v4402
        %v4439 = vadd.f32 %v4293, %v4403
        %v4440 = vadd.f32 %v4295, %v4404
        %v4441 = vmul.f32 %v4405, 0.7978846
        %v4442 = vmul.f32 %v4406, 0.7978846
        %v4443 = vmul.f32 %v4407, 0.7978846
        %v4444 = vmul.f32 %v4408, 0.7978846
        %v4445 = vmul.f32 %v4409, 0.7978846
        %v4446 = vmul.f32 %v4410, 0.7978846
        %v4447 = vmul.f32 %v4411, 0.7978846
        %v4448 = vmul.f32 %v4412, 0.7978846
        %v4449 = vmul.f32 %v4413, 0.7978846
        %v4450 = vmul.f32 %v4414, 0.7978846
        %v4451 = vmul.f32 %v4415, 0.7978846
        %v4452 = vmul.f32 %v4416, 0.7978846
        %v4453 = vmul.f32 %v4417, 0.7978846
        %v4454 = vmul.f32 %v4418, 0.7978846
        %v4455 = vmul.f32 %v4419, 0.7978846
        %v4456 = vmul.f32 %v4420, 0.7978846
        %v4457 = vmul.f32 %v4421, 0.7978846
        %v4458 = vmul.f32 %v4422, 0.7978846
        %v4459 = vmul.f32 %v4423, 0.7978846
        %v4460 = vmul.f32 %v4424, 0.7978846
        %v4461 = vmul.f32 %v4425, 0.7978846
        %v4462 = vmul.f32 %v4426, 0.7978846
        %v4463 = vmul.f32 %v4427, 0.7978846
        %v4464 = vmul.f32 %v4428, 0.7978846
        %v4465 = vmul.f32 %v4429, 0.7978846
        %v4466 = vmul.f32 %v4430, 0.7978846
        %v4467 = vmul.f32 %v4431, 0.7978846
        %v4468 = vmul.f32 %v4432, 0.7978846
        %v4469 = vmul.f32 %v4433, 0.7978846
        %v4470 = vmul.f32 %v4434, 0.7978846
        %v4471 = vmul.f32 %v4435, 0.7978846
        %v4472 = vmul.f32 %v4436, 0.7978846
        %v4473 = vmul.f32 %v4437, 0.7978846
        %v4474 = vmul.f32 %v4438, 0.7978846
        %v4475 = vmul.f32 %v4439, 0.7978846
        %v4476 = vmul.f32 %v4440, 0.7978846
        %v4477 = vtanh.pop %v4441
        %v4478 = vtanh.pop %v4442
        %v4479 = vtanh.pop %v4443
        %v4480 = vtanh.pop %v4444
        %v4481 = vtanh.pop %v4445
        %v4482 = vtanh.pop %v4446
        %v4483 = vtanh.pop %v4447
        %v4484 = vtanh.pop %v4448
        %v4485 = vtanh.pop %v4449
        %v4486 = vtanh.pop %v4450
        %v4487 = vtanh.pop %v4451
        %v4488 = vtanh.pop %v4452
        %v4489 = vtanh.pop %v4453
        %v4490 = vtanh.pop %v4454
        %v4491 = vtanh.pop %v4455
        %v4492 = vtanh.pop %v4456
        %v4493 = vtanh.pop %v4457
        %v4494 = vtanh.pop %v4458
        %v4495 = vtanh.pop %v4459
        %v4496 = vtanh.pop %v4460
        %v4497 = vtanh.pop %v4461
        %v4498 = vtanh.pop %v4462
        %v4499 = vtanh.pop %v4463
        %v4500 = vtanh.pop %v4464
        %v4501 = vtanh.pop %v4465
        %v4502 = vtanh.pop %v4466
        %v4503 = vtanh.pop %v4467
        %v4504 = vtanh.pop %v4468
        %v4505 = vtanh.pop %v4469
        %v4506 = vtanh.pop %v4470
        %v4507 = vtanh.pop %v4471
        %v4508 = vtanh.pop %v4472
        %v4509 = vtanh.pop %v4473
        %v4510 = vtanh.pop %v4474
        %v4511 = vtanh.pop %v4475
        %v4512 = vtanh.pop %v4476
        %v4513 = vadd.f32 %v4477, 1.0
        %v4514 = vadd.f32 %v4478, 1.0
        %v4515 = vadd.f32 %v4479, 1.0
        %v4516 = vadd.f32 %v4480, 1.0
        %v4517 = vadd.f32 %v4481, 1.0
        %v4518 = vadd.f32 %v4482, 1.0
        %v4519 = vadd.f32 %v4483, 1.0
        %v4520 = vadd.f32 %v4484, 1.0
        %v4521 = vadd.f32 %v4485, 1.0
        %v4522 = vadd.f32 %v4486, 1.0
        %v4523 = vadd.f32 %v4487, 1.0
        %v4524 = vadd.f32 %v4488, 1.0
        %v4525 = vadd.f32 %v4489, 1.0
        %v4526 = vadd.f32 %v4490, 1.0
        %v4527 = vadd.f32 %v4491, 1.0
        %v4528 = vadd.f32 %v4492, 1.0
        %v4529 = vadd.f32 %v4493, 1.0
        %v4530 = vadd.f32 %v4494, 1.0
        %v4531 = vadd.f32 %v4495, 1.0
        %v4532 = vadd.f32 %v4496, 1.0
        %v4533 = vadd.f32 %v4497, 1.0
        %v4534 = vadd.f32 %v4498, 1.0
        %v4535 = vadd.f32 %v4499, 1.0
        %v4536 = vadd.f32 %v4500, 1.0
        %v4537 = vadd.f32 %v4501, 1.0
        %v4538 = vadd.f32 %v4502, 1.0
        %v4539 = vadd.f32 %v4503, 1.0
        %v4540 = vadd.f32 %v4504, 1.0
        %v4541 = vadd.f32 %v4505, 1.0
        %v4542 = vadd.f32 %v4506, 1.0
        %v4543 = vadd.f32 %v4507, 1.0
        %v4544 = vadd.f32 %v4508, 1.0
        %v4545 = vadd.f32 %v4509, 1.0
        %v4546 = vadd.f32 %v4510, 1.0
        %v4547 = vadd.f32 %v4511, 1.0
        %v4548 = vadd.f32 %v4512, 1.0
        %v4549 = vmul.f32 %v4513, 0.5
        %v4550 = vmul.f32 %v4514, 0.5
        %v4551 = vmul.f32 %v4515, 0.5
        %v4552 = vmul.f32 %v4516, 0.5
        %v4553 = vmul.f32 %v4517, 0.5
        %v4554 = vmul.f32 %v4518, 0.5
        %v4555 = vmul.f32 %v4519, 0.5
        %v4556 = vmul.f32 %v4520, 0.5
        %v4557 = vmul.f32 %v4521, 0.5
        %v4558 = vmul.f32 %v4522, 0.5
        %v4559 = vmul.f32 %v4523, 0.5
        %v4560 = vmul.f32 %v4524, 0.5
        %v4561 = vmul.f32 %v4525, 0.5
        %v4562 = vmul.f32 %v4526, 0.5
        %v4563 = vmul.f32 %v4527, 0.5
        %v4564 = vmul.f32 %v4528, 0.5
        %v4565 = vmul.f32 %v4529, 0.5
        %v4566 = vmul.f32 %v4530, 0.5
        %v4567 = vmul.f32 %v4531, 0.5
        %v4568 = vmul.f32 %v4532, 0.5
        %v4569 = vmul.f32 %v4533, 0.5
        %v4570 = vmul.f32 %v4534, 0.5
        %v4571 = vmul.f32 %v4535, 0.5
        %v4572 = vmul.f32 %v4536, 0.5
        %v4573 = vmul.f32 %v4537, 0.5
        %v4574 = vmul.f32 %v4538, 0.5
        %v4575 = vmul.f32 %v4539, 0.5
        %v4576 = vmul.f32 %v4540, 0.5
        %v4577 = vmul.f32 %v4541, 0.5
        %v4578 = vmul.f32 %v4542, 0.5
        %v4579 = vmul.f32 %v4543, 0.5
        %v4580 = vmul.f32 %v4544, 0.5
        %v4581 = vmul.f32 %v4545, 0.5
        %v4582 = vmul.f32 %v4546, 0.5
        %v4583 = vmul.f32 %v4547, 0.5
        %v4584 = vmul.f32 %v4548, 0.5
        %v4585 = vmul.f32 %v4209, %v4549
        %v4586 = vmul.f32 %v4211, %v4550
        %v4587 = vmul.f32 %v4213, %v4551
        %v4588 = vmul.f32 %v4215, %v4552
        %v4589 = vmul.f32 %v4219, %v4553
        %v4590 = vmul.f32 %v4221, %v4554
        %v4591 = vmul.f32 %v4223, %v4555
        %v4592 = vmul.f32 %v4225, %v4556
        %v4593 = vmul.f32 %v4229, %v4557
        %v4594 = vmul.f32 %v4231, %v4558
        %v4595 = vmul.f32 %v4233, %v4559
        %v4596 = vmul.f32 %v4235, %v4560
        %v4597 = vmul.f32 %v4239, %v4561
        %v4598 = vmul.f32 %v4241, %v4562
        %v4599 = vmul.f32 %v4243, %v4563
        %v4600 = vmul.f32 %v4245, %v4564
        %v4601 = vmul.f32 %v4249, %v4565
        %v4602 = vmul.f32 %v4251, %v4566
        %v4603 = vmul.f32 %v4253, %v4567
        %v4604 = vmul.f32 %v4255, %v4568
        %v4605 = vmul.f32 %v4259, %v4569
        %v4606 = vmul.f32 %v4261, %v4570
        %v4607 = vmul.f32 %v4263, %v4571
        %v4608 = vmul.f32 %v4265, %v4572
        %v4609 = vmul.f32 %v4269, %v4573
        %v4610 = vmul.f32 %v4271, %v4574
        %v4611 = vmul.f32 %v4273, %v4575
        %v4612 = vmul.f32 %v4275, %v4576
        %v4613 = vmul.f32 %v4279, %v4577
        %v4614 = vmul.f32 %v4281, %v4578
        %v4615 = vmul.f32 %v4283, %v4579
        %v4616 = vmul.f32 %v4285, %v4580
        %v4617 = vmul.f32 %v4289, %v4581
        %v4618 = vmul.f32 %v4291, %v4582
        %v4619 = vmul.f32 %v4293, %v4583
        %v4620 = vmul.f32 %v4295, %v4584
        %v4621 = vpack.c.bf16 %v4587, %v4585
        %v4622 = vpack.c.bf16 %v4588, %v4586
        %v4623 = vpack.c.bf16 %v4591, %v4589
        %v4624 = vpack.c.bf16 %v4592, %v4590
        %v4625 = vpack.c.bf16 %v4595, %v4593
        %v4626 = vpack.c.bf16 %v4596, %v4594
        %v4627 = vpack.c.bf16 %v4599, %v4597
        %v4628 = vpack.c.bf16 %v4600, %v4598
        %v4629 = vpack.c.bf16 %v4603, %v4601
        %v4630 = vpack.c.bf16 %v4604, %v4602
        %v4631 = vpack.c.bf16 %v4607, %v4605
        %v4632 = vpack.c.bf16 %v4608, %v4606
        %v4633 = vpack.c.bf16 %v4611, %v4609
        %v4634 = vpack.c.bf16 %v4612, %v4610
        %v4635 = vpack.c.bf16 %v4615, %v4613
        %v4636 = vpack.c.bf16 %v4616, %v4614
        %v4637 = vpack.c.bf16 %v4619, %v4617
        %v4638 = vpack.c.bf16 %v4620, %v4618
        %v4639 = vld [vmem:[%s658] sm:$0xff]
        %v4640 = vld [vmem:[%s658 + $0x8] sm:$0xff]
        %v4641 = vld [vmem:[%s658 + $0x10] sm:$0xff]
        %v4642 = vld [vmem:[%s658 + $0x18] sm:$0xff]
        %v4643 = vld [vmem:[%s658 + $0x20] sm:$0xff]
        %v4644 = vld [vmem:[%s658 + $0x28] sm:$0xff]
        %v4645 = vld [vmem:[%s658 + $0x30] sm:$0xff]
        %v4646 = vld [vmem:[%s658 + $0x38] sm:$0xff]
        %v4647 = vld [vmem:[%s658 + $0x40] sm:$0xff]
        %v4648 = vld [vmem:[%s658 + $0x48] sm:$0xff]
        %v4649 = vld [vmem:[%s658 + $0x50] sm:$0xff]
        %v4650 = vld [vmem:[%s658 + $0x58] sm:$0xff]
        %v4651 = vld [vmem:[%s658 + $0x60] sm:$0xff]
        %v4652 = vld [vmem:[%s658 + $0x68] sm:$0xff]
        %v4653 = vld [vmem:[%s658 + $0x70] sm:$0xff]
        %v4654 = vld [vmem:[%s658 + $0x78] sm:$0xff]
        %v4655 = vld [vmem:[%s658 + $0x80] sm:$0xff]
        %v4656 = vld [vmem:[%s658 + $0x88] sm:$0xff]
        %v4657 = vld [vmem:[%s658 + $0x90] sm:$0xff]
        %v4658 = vld [vmem:[%s658 + $0x98] sm:$0xff]
        %v4659 = vld [vmem:[%s658 + $0xa0] sm:$0xff]
        %v4660 = vld [vmem:[%s658 + $0xa8] sm:$0xff]
        %v4661 = vld [vmem:[%s658 + $0xb0] sm:$0xff]
        %v4662 = vld [vmem:[%s658 + $0xb8] sm:$0xff]
        %v4663 = vld [vmem:[%s658 + $0xc0] sm:$0xff]
        %v4664 = vld [vmem:[%s658 + $0xc8] sm:$0xff]
        %v4665 = vld [vmem:[%s658 + $0xd0] sm:$0xff]
        %v4666 = vld [vmem:[%s658 + $0xd8] sm:$0xff]
        %v4667 = vld [vmem:[%s658 + $0xe0] sm:$0xff]
        %v4668 = vld [vmem:[%s658 + $0xe8] sm:$0xff]
        %v4669 = vld [vmem:[%s658 + $0xf0] sm:$0xff]
        %v4670 = vld [vmem:[%s658 + $0xf8] sm:$0xff]
        %v4671 = vld [vmem:[%s787] sm:$0x3]
        %v4673 = vlaneseq
        %v4674 = vshrl.u32 %v4673, 7
        %v4675 = vsub.s32 0, %v4674
        %v4676 = vrot.slane %v4671, %v4675
        %v4677 = vlaneseq
        %v4678 = vshrl.u32 %v4677, 7
        %v4679 = vsub.s32 1, %v4678
        %v4680 = vrot.slane %v4671, %v4679
        %v4715 = vunpack.c.l.b16 %v4639
        %v4716 = vunpack.c.h.b16 %v4639
        %v4717 = vunpack.c.l.b16 %v4640
        %v4718 = vunpack.c.h.b16 %v4640
        %v4719 = vunpack.c.l.b16 %v4641
        %v4720 = vunpack.c.h.b16 %v4641
        %v4721 = vunpack.c.l.b16 %v4642
        %v4722 = vunpack.c.h.b16 %v4642
        %v4723 = vunpack.c.l.b16 %v4643
        %v4724 = vunpack.c.h.b16 %v4643
        %v4725 = vunpack.c.l.b16 %v4644
        %v4726 = vunpack.c.h.b16 %v4644
        %v4727 = vunpack.c.l.b16 %v4645
        %v4728 = vunpack.c.h.b16 %v4645
        %v4729 = vunpack.c.l.b16 %v4646
        %v4730 = vunpack.c.h.b16 %v4646
        %v4731 = vunpack.c.l.b16 %v4647
        %v4732 = vunpack.c.h.b16 %v4647
        %v4733 = vunpack.c.l.b16 %v4648
        %v4734 = vunpack.c.h.b16 %v4648
        %v4735 = vunpack.c.l.b16 %v4649
        %v4736 = vunpack.c.h.b16 %v4649
        %v4737 = vunpack.c.l.b16 %v4650
        %v4738 = vunpack.c.h.b16 %v4650
        %v4739 = vunpack.c.l.b16 %v4651
        %v4740 = vunpack.c.h.b16 %v4651
        %v4741 = vunpack.c.l.b16 %v4652
        %v4742 = vunpack.c.h.b16 %v4652
        %v4743 = vunpack.c.l.b16 %v4653
        %v4744 = vunpack.c.h.b16 %v4653
        %v4745 = vunpack.c.l.b16 %v4654
        %v4746 = vunpack.c.h.b16 %v4654
        %v4747 = vunpack.c.l.b16 %v4655
        %v4748 = vunpack.c.h.b16 %v4655
        %v4749 = vunpack.c.l.b16 %v4656
        %v4750 = vunpack.c.h.b16 %v4656
        %v4751 = vunpack.c.l.b16 %v4657
        %v4752 = vunpack.c.h.b16 %v4657
        %v4753 = vunpack.c.l.b16 %v4658
        %v4754 = vunpack.c.h.b16 %v4658
        %v4755 = vunpack.c.l.b16 %v4659
        %v4756 = vunpack.c.h.b16 %v4659
        %v4757 = vunpack.c.l.b16 %v4660
        %v4758 = vunpack.c.h.b16 %v4660
        %v4759 = vunpack.c.l.b16 %v4661
        %v4760 = vunpack.c.h.b16 %v4661
        %v4761 = vunpack.c.l.b16 %v4662
        %v4762 = vunpack.c.h.b16 %v4662
        %v4763 = vunpack.c.l.b16 %v4663
        %v4764 = vunpack.c.h.b16 %v4663
        %v4765 = vunpack.c.l.b16 %v4664
        %v4766 = vunpack.c.h.b16 %v4664
        %v4767 = vunpack.c.l.b16 %v4665
        %v4768 = vunpack.c.h.b16 %v4665
        %v4769 = vunpack.c.l.b16 %v4666
        %v4770 = vunpack.c.h.b16 %v4666
        %v4771 = vunpack.c.l.b16 %v4667
        %v4772 = vunpack.c.h.b16 %v4667
        %v4773 = vunpack.c.l.b16 %v4668
        %v4774 = vunpack.c.h.b16 %v4668
        %v4775 = vunpack.c.l.b16 %v4669
        %v4776 = vunpack.c.h.b16 %v4669
        %v4777 = vunpack.c.l.b16 %v4670
        %v4778 = vunpack.c.h.b16 %v4670
        %v4779 = vpack.c.b16 %v4717, %v4715
        %v4780 = vpack.c.b16 %v4718, %v4716
        %v4781 = vpack.c.b16 %v4721, %v4719
        %v4782 = vpack.c.b16 %v4722, %v4720
        %v4783 = vpack.c.b16 %v4725, %v4723
        %v4784 = vpack.c.b16 %v4726, %v4724
        %v4785 = vpack.c.b16 %v4729, %v4727
        %v4786 = vpack.c.b16 %v4730, %v4728
        %v4787 = vpack.c.b16 %v4733, %v4731
        %v4788 = vpack.c.b16 %v4734, %v4732
        %v4789 = vpack.c.b16 %v4737, %v4735
        %v4790 = vpack.c.b16 %v4738, %v4736
        %v4791 = vpack.c.b16 %v4741, %v4739
        %v4792 = vpack.c.b16 %v4742, %v4740
        %v4793 = vpack.c.b16 %v4745, %v4743
        %v4794 = vpack.c.b16 %v4746, %v4744
        %v4795 = vpack.c.b16 %v4749, %v4747
        %v4796 = vpack.c.b16 %v4750, %v4748
        %v4797 = vpack.c.b16 %v4753, %v4751
        %v4798 = vpack.c.b16 %v4754, %v4752
        %v4799 = vpack.c.b16 %v4757, %v4755
        %v4800 = vpack.c.b16 %v4758, %v4756
        %v4801 = vpack.c.b16 %v4761, %v4759
        %v4802 = vpack.c.b16 %v4762, %v4760
        %v4803 = vpack.c.b16 %v4765, %v4763
        %v4804 = vpack.c.b16 %v4766, %v4764
        %v4805 = vpack.c.b16 %v4769, %v4767
        %v4806 = vpack.c.b16 %v4770, %v4768
        %v4807 = vpack.c.b16 %v4773, %v4771
        %v4808 = vpack.c.b16 %v4774, %v4772
        %v4809 = vpack.c.b16 %v4777, %v4775
        %v4810 = vpack.c.b16 %v4778, %v4776
        %4843 = vmatprep.subr.bf16.mxu0 %v4780
        %4844 = vmatpush1.bf16.msra.mxu0 %v4779
        %4845 = vmatprep.subr.bf16.mxu0 %v4782
        %4846 = vmatpush1.bf16.msra.mxu0 %v4781
        %4847 = vmatprep.subr.bf16.mxu0 %v4784
        %4848 = vmatpush1.bf16.msra.mxu0 %v4783
        %4849 = vmatprep.subr.bf16.mxu0 %v4786
        %4850 = vmatpush1.bf16.msra.mxu0 %v4785
        %4851 = vmatprep.subr.bf16.mxu0 %v4788
        %4852 = vmatpush1.bf16.msra.mxu0 %v4787
        %4853 = vmatprep.subr.bf16.mxu0 %v4790
        %4854 = vmatpush1.bf16.msra.mxu0 %v4789
        %4855 = vmatprep.subr.bf16.mxu0 %v4792
        %4856 = vmatpush1.bf16.msra.mxu0 %v4791
        %4857 = vmatprep.subr.bf16.mxu0 %v4794
        %4858 = vmatpush1.bf16.msra.mxu0 %v4793
        %4859 = vmatprep.subr.bf16.mxu0 %v4796
        %4860 = vmatpush1.bf16.msra.mxu0 %v4795
        %4861 = vmatprep.subr.bf16.mxu0 %v4798
        %4862 = vmatpush1.bf16.msra.mxu0 %v4797
        %4863 = vmatprep.subr.bf16.mxu0 %v4800
        %4864 = vmatpush1.bf16.msra.mxu0 %v4799
        %4865 = vmatprep.subr.bf16.mxu0 %v4802
        %4866 = vmatpush1.bf16.msra.mxu0 %v4801
        %4867 = vmatprep.subr.bf16.mxu0 %v4804
        %4868 = vmatpush1.bf16.msra.mxu0 %v4803
        %4869 = vmatprep.subr.bf16.mxu0 %v4806
        %4870 = vmatpush1.bf16.msra.mxu0 %v4805
        %4871 = vmatprep.subr.bf16.mxu0 %v4808
        %4872 = vmatpush1.bf16.msra.mxu0 %v4807
        %4873 = vmatprep.subr.bf16.mxu0 %v4810
        %4874 = vmatpush1.bf16.msra.mxu0 %v4809
        %4875 = vmatprep.mubr.bf16.mxu0 %v4622
        %4876 = vmatmul.mubr.bf16.gmra.mrb[0].mxu0 %v4621
        %v4877 = vpop.f32.mrb[0].mxu0
        %v4878 = vadd.f32 %v4676, %v4877
        %v4879 = vpop.f32.mrb[0].mxu0
        %v4880 = vadd.f32 %v4680, %v4879
        %v4881 = vpop.f32.mrb[0].mxu0
        %v4882 = vadd.f32 %v4676, %v4881
        %v4883 = vpop.f32.mrb[0].mxu0
        %v4884 = vadd.f32 %v4680, %v4883
        %4885 = vmatprep.mubr.bf16.mxu0 %v4624
        %4886 = vmatmul.mubr.bf16.gmra.mrb[0].mxu0 %v4623
        %v4887 = vpop.f32.mrb[0].mxu0
        %v4888 = vadd.f32 %v4676, %v4887
        %v4889 = vpop.f32.mrb[0].mxu0
        %v4890 = vadd.f32 %v4680, %v4889
        %v4891 = vpop.f32.mrb[0].mxu0
        %v4892 = vadd.f32 %v4676, %v4891
        %v4893 = vpop.f32.mrb[0].mxu0
        %v4894 = vadd.f32 %v4680, %v4893
        %4895 = vmatprep.mubr.bf16.mxu0 %v4626
        %4896 = vmatmul.mubr.bf16.gmra.mrb[0].mxu0 %v4625
        %v4897 = vpop.f32.mrb[0].mxu0
        %v4898 = vadd.f32 %v4676, %v4897
        %v4899 = vpop.f32.mrb[0].mxu0
        %v4900 = vadd.f32 %v4680, %v4899
        %v4901 = vpop.f32.mrb[0].mxu0
        %v4902 = vadd.f32 %v4676, %v4901
        %v4903 = vpop.f32.mrb[0].mxu0
        %v4904 = vadd.f32 %v4680, %v4903
        %4905 = vmatprep.mubr.bf16.mxu0 %v4628
        %4906 = vmatmul.mubr.bf16.gmra.mrb[0].mxu0 %v4627
        %v4907 = vpop.f32.mrb[0].mxu0
        %v4908 = vadd.f32 %v4676, %v4907
        %v4909 = vpop.f32.mrb[0].mxu0
        %v4910 = vadd.f32 %v4680, %v4909
        %v4911 = vpop.f32.mrb[0].mxu0
        %v4912 = vadd.f32 %v4676, %v4911
        %v4913 = vpop.f32.mrb[0].mxu0
        %v4914 = vadd.f32 %v4680, %v4913
        %4915 = vmatprep.mubr.bf16.mxu0 %v4630
        %4916 = vmatmul.mubr.bf16.gmra.mrb[0].mxu0 %v4629
        %v4917 = vpop.f32.mrb[0].mxu0
        %v4918 = vadd.f32 %v4676, %v4917
        %v4919 = vpop.f32.mrb[0].mxu0
        %v4920 = vadd.f32 %v4680, %v4919
        %v4921 = vpop.f32.mrb[0].mxu0
        %v4922 = vadd.f32 %v4676, %v4921
        %v4923 = vpop.f32.mrb[0].mxu0
        %v4924 = vadd.f32 %v4680, %v4923
        %4925 = vmatprep.mubr.bf16.mxu0 %v4632
        %4926 = vmatmul.mubr.bf16.gmra.mrb[0].mxu0 %v4631
        %v4927 = vpop.f32.mrb[0].mxu0
        %v4928 = vadd.f32 %v4676, %v4927
        %v4929 = vpop.f32.mrb[0].mxu0
        %v4930 = vadd.f32 %v4680, %v4929
        %v4931 = vpop.f32.mrb[0].mxu0
        %v4932 = vadd.f32 %v4676, %v4931
        %v4933 = vpop.f32.mrb[0].mxu0
        %v4934 = vadd.f32 %v4680, %v4933
        %4935 = vmatprep.mubr.bf16.mxu0 %v4634
        %4936 = vmatmul.mubr.bf16.gmra.mrb[0].mxu0 %v4633
        %v4937 = vpop.f32.mrb[0].mxu0
        %v4938 = vadd.f32 %v4676, %v4937
        %v4939 = vpop.f32.mrb[0].mxu0
        %v4940 = vadd.f32 %v4680, %v4939
        %v4941 = vpop.f32.mrb[0].mxu0
        %v4942 = vadd.f32 %v4676, %v4941
        %v4943 = vpop.f32.mrb[0].mxu0
        %v4944 = vadd.f32 %v4680, %v4943
        %4945 = vmatprep.mubr.bf16.mxu0 %v4636
        %4946 = vmatmul.mubr.bf16.gmra.mrb[0].mxu0 %v4635
        %v4947 = vpop.f32.mrb[0].mxu0
        %v4948 = vadd.f32 %v4676, %v4947
        %v4949 = vpop.f32.mrb[0].mxu0
        %v4950 = vadd.f32 %v4680, %v4949
        %v4951 = vpop.f32.mrb[0].mxu0
        %v4952 = vadd.f32 %v4676, %v4951
        %v4953 = vpop.f32.mrb[0].mxu0
        %v4954 = vadd.f32 %v4680, %v4953
        %4955 = vmatprep.mubr.bf16.mxu0 %v4638
        %4956 = vmatmul.mubr.bf16.gmra.mrb[0].mxu0 %v4637
        %v4957 = vpop.f32.mrb[0].mxu0
        %v4958 = vadd.f32 %v4676, %v4957
        %v4959 = vpop.f32.mrb[0].mxu0
        %v4960 = vadd.f32 %v4680, %v4959
        %v4961 = vpop.f32.mrb[0].mxu0
        %v4962 = vadd.f32 %v4676, %v4961
        %v4963 = vpop.f32.mrb[0].mxu0
        %v4964 = vadd.f32 %v4680, %v4963
        %4965 = vdwg.mxu0
        %v4966 = vadd.f32 %v3496, %v4878
        %v4967 = vadd.f32 %v3497, %v4880
        %v4968 = vadd.f32 %v3498, %v4882
        %v4969 = vadd.f32 %v3499, %v4884
        %v4970 = vadd.f32 %v3500, %v4888
        %v4971 = vadd.f32 %v3501, %v4890
        %v4972 = vadd.f32 %v3502, %v4892
        %v4973 = vadd.f32 %v3503, %v4894
        %v4974 = vadd.f32 %v3504, %v4898
        %v4975 = vadd.f32 %v3505, %v4900
        %v4976 = vadd.f32 %v3506, %v4902
        %v4977 = vadd.f32 %v3507, %v4904
        %v4978 = vadd.f32 %v3508, %v4908
        %v4979 = vadd.f32 %v3509, %v4910
        %v4980 = vadd.f32 %v3510, %v4912
        %v4981 = vadd.f32 %v3511, %v4914
        %v4982 = vadd.f32 %v3512, %v4918
        %v4983 = vadd.f32 %v3513, %v4920
        %v4984 = vadd.f32 %v3514, %v4922
        %v4985 = vadd.f32 %v3515, %v4924
        %v4986 = vadd.f32 %v3516, %v4928
        %v4987 = vadd.f32 %v3517, %v4930
        %v4988 = vadd.f32 %v3518, %v4932
        %v4989 = vadd.f32 %v3519, %v4934
        %v4990 = vadd.f32 %v3520, %v4938
        %v4991 = vadd.f32 %v3521, %v4940
        %v4992 = vadd.f32 %v3522, %v4942
        %v4993 = vadd.f32 %v3523, %v4944
        %v4994 = vadd.f32 %v3524, %v4948
        %v4995 = vadd.f32 %v3525, %v4950
        %v4996 = vadd.f32 %v3526, %v4952
        %v4997 = vadd.f32 %v3527, %v4954
        %v4998 = vadd.f32 %v3528, %v4958
        %v4999 = vadd.f32 %v3529, %v4960
        %v5000 = vadd.f32 %v3530, %v4962
        %v5001 = vadd.f32 %v3531, %v4964
        %5002 = vst [vmem:[#allocation2] sm:$0xff] %v4966
        %5003 = vst [vmem:[#allocation2 + $0x8] sm:$0xff] %v4967
        %5004 = vst [vmem:[#allocation2 + $0x10] sm:$0xff] %v4968
        %5005 = vst [vmem:[#allocation2 + $0x18] sm:$0xff] %v4969
        %5006 = vst [vmem:[#allocation2 + $0x20] sm:$0xff] %v4970
        %5007 = vst [vmem:[#allocation2 + $0x28] sm:$0xff] %v4971
        %5008 = vst [vmem:[#allocation2 + $0x30] sm:$0xff] %v4972
        %5009 = vst [vmem:[#allocation2 + $0x38] sm:$0xff] %v4973
        %5010 = vst [vmem:[#allocation2 + $0x40] sm:$0xff] %v4974
        %5011 = vst [vmem:[#allocation2 + $0x48] sm:$0xff] %v4975
        %5012 = vst [vmem:[#allocation2 + $0x50] sm:$0xff] %v4976
        %5013 = vst [vmem:[#allocation2 + $0x58] sm:$0xff] %v4977
        %5014 = vst [vmem:[#allocation2 + $0x60] sm:$0xff] %v4978
        %5015 = vst [vmem:[#allocation2 + $0x68] sm:$0xff] %v4979
        %5016 = vst [vmem:[#allocation2 + $0x70] sm:$0xff] %v4980
        %5017 = vst [vmem:[#allocation2 + $0x78] sm:$0xff] %v4981
        %5018 = vst [vmem:[#allocation2 + $0x80] sm:$0xff] %v4982
        %5019 = vst [vmem:[#allocation2 + $0x88] sm:$0xff] %v4983
        %5020 = vst [vmem:[#allocation2 + $0x90] sm:$0xff] %v4984
        %5021 = vst [vmem:[#allocation2 + $0x98] sm:$0xff] %v4985
        %5022 = vst [vmem:[#allocation2 + $0xa0] sm:$0xff] %v4986
        %5023 = vst [vmem:[#allocation2 + $0xa8] sm:$0xff] %v4987
        %5024 = vst [vmem:[#allocation2 + $0xb0] sm:$0xff] %v4988
        %5025 = vst [vmem:[#allocation2 + $0xb8] sm:$0xff] %v4989
        %5026 = vst [vmem:[#allocation2 + $0xc0] sm:$0xff] %v4990
        %5027 = vst [vmem:[#allocation2 + $0xc8] sm:$0xff] %v4991
        %5028 = vst [vmem:[#allocation2 + $0xd0] sm:$0xff] %v4992
        %5029 = vst [vmem:[#allocation2 + $0xd8] sm:$0xff] %v4993
        %5030 = vst [vmem:[#allocation2 + $0xe0] sm:$0xff] %v4994
        %5031 = vst [vmem:[#allocation2 + $0xe8] sm:$0xff] %v4995
        %5032 = vst [vmem:[#allocation2 + $0xf0] sm:$0xff] %v4996
        %5033 = vst [vmem:[#allocation2 + $0xf8] sm:$0xff] %v4997
        %5034 = vst [vmem:[#allocation2 + $0x100] sm:$0xff] %v4998
        %5035 = vst [vmem:[#allocation2 + $0x108] sm:$0xff] %v4999
        %5036 = vst [vmem:[#allocation2 + $0x110] sm:$0xff] %v5000
        %5037 = vst [vmem:[#allocation2 + $0x118] sm:$0xff] %v5001
        %p5038 = scmp.eq.s32.totalorder %s35, 3
        // Predicated region
        $region105: #{vit_forward.1} parent=87 // pred_check
          %p5039 = pneg %p5038
        $region106: #{vit_forward.1} parent=87 // pred_check_branch
          %5041 = sbr.rel (%p5039) target = $region108
        $region107: #{vit_forward.1} parent=87 // pred_region
          %v5044 = vrot.slane %v4984, 7
          %v5045 = vrot.slane %v4985, 7
          %vm5048 = vcmask 1040384
          %v5049 = vsel %vm5048, %v4966, %v5044
          %v5050 = vsel %vm5048, %v4967, %v5045
          %v5051 = vpack.c.bf16 %v5049, %v5049
          %v5052 = vpack.c.bf16 %v5050, %v5050
          %v5053 = vld [vmem:[%s15] sm:$0xf]
          %v5054 = vld [vmem:[%s15 + $0x4] sm:$0xf]
          %v5055 = vld [vmem:[%s15 + $0x8] sm:$0xf]
          %v5056 = vld [vmem:[%s15 + $0xc] sm:$0xf]
          %v5057 = vld [vmem:[%s15 + $0x10] sm:$0xf]
          %v5058 = vld [vmem:[%s15 + $0x14] sm:$0xf]
          %v5059 = vld [vmem:[%s15 + $0x18] sm:$0xf]
          %v5060 = vld [vmem:[%s15 + $0x1c] sm:$0xf]
          %v5061 = vld [vmem:[%s15 + $0x20] sm:$0xf]
          %v5062 = vld [vmem:[%s15 + $0x24] sm:$0xf]
          %v5063 = vld [vmem:[%s15 + $0x28] sm:$0xf]
          %v5064 = vld [vmem:[%s15 + $0x2c] sm:$0xf]
          %v5065 = vld [vmem:[%s15 + $0x30] sm:$0xf]
          %v5066 = vld [vmem:[%s15 + $0x34] sm:$0xf]
          %v5067 = vld [vmem:[%s15 + $0x38] sm:$0xf]
          %v5068 = vld [vmem:[%s15 + $0x3c] sm:$0xf]
          %v5069 = vld [vmem:[%s15 + $0x40] sm:$0xf]
          %v5070 = vld [vmem:[%s15 + $0x44] sm:$0xf]
          %v5071 = vld [vmem:[%s15 + $0x48] sm:$0xf]
          %v5072 = vld [vmem:[%s15 + $0x4c] sm:$0xf]
          %v5073 = vld [vmem:[%s15 + $0x50] sm:$0xf]
          %v5074 = vld [vmem:[%s15 + $0x54] sm:$0xf]
          %v5075 = vld [vmem:[%s15 + $0x58] sm:$0xf]
          %v5076 = vld [vmem:[%s15 + $0x5c] sm:$0xf]
          %v5077 = vld [vmem:[%s15 + $0x60] sm:$0xf]
          %v5078 = vld [vmem:[%s15 + $0x64] sm:$0xf]
          %v5079 = vld [vmem:[%s15 + $0x68] sm:$0xf]
          %v5080 = vld [vmem:[%s15 + $0x6c] sm:$0xf]
          %v5081 = vld [vmem:[%s15 + $0x70] sm:$0xf]
          %v5082 = vld [vmem:[%s15 + $0x74] sm:$0xf]
          %v5083 = vld [vmem:[%s15 + $0x78] sm:$0xf]
          %v5084 = vld [vmem:[%s15 + $0x7c] sm:$0xf]
          %v5085 = vld [vmem:[%s16] sm:$0x1]
          %v5087 = vlaneseq
          %v5088 = vshrl.u32 %v5087, 7
          %v5089 = vsub.s32 0, %v5088
          %v5090 = vrot.slane %v5085, %v5089
          %v5124 = vunpack.c.l.b16 %v5053
          %v5125 = vunpack.c.l.b16 %v5054
          %v5126 = vunpack.c.l.b16 %v5055
          %v5127 = vunpack.c.l.b16 %v5056
          %v5128 = vunpack.c.l.b16 %v5057
          %v5129 = vunpack.c.l.b16 %v5058
          %v5130 = vunpack.c.l.b16 %v5059
          %v5131 = vunpack.c.l.b16 %v5060
          %v5132 = vunpack.c.l.b16 %v5061
          %v5133 = vunpack.c.l.b16 %v5062
          %v5134 = vunpack.c.l.b16 %v5063
          %v5135 = vunpack.c.l.b16 %v5064
          %v5136 = vunpack.c.l.b16 %v5065
          %v5137 = vunpack.c.l.b16 %v5066
          %v5138 = vunpack.c.l.b16 %v5067
          %v5139 = vunpack.c.l.b16 %v5068
          %v5140 = vunpack.c.l.b16 %v5069
          %v5141 = vunpack.c.l.b16 %v5070
          %v5142 = vunpack.c.l.b16 %v5071
          %v5143 = vunpack.c.l.b16 %v5072
          %v5144 = vunpack.c.l.b16 %v5073
          %v5145 = vunpack.c.l.b16 %v5074
          %v5146 = vunpack.c.l.b16 %v5075
          %v5147 = vunpack.c.l.b16 %v5076
          %v5148 = vunpack.c.l.b16 %v5077
          %v5149 = vunpack.c.l.b16 %v5078
          %v5150 = vunpack.c.l.b16 %v5079
          %v5151 = vunpack.c.l.b16 %v5080
          %v5152 = vunpack.c.l.b16 %v5081
          %v5153 = vunpack.c.l.b16 %v5082
          %v5154 = vunpack.c.l.b16 %v5083
          %v5155 = vunpack.c.l.b16 %v5084
          %v5156 = vpack.c.b16 %v5125, %v5124
          %v5157 = vpack.c.b16 %v5127, %v5126
          %v5158 = vpack.c.b16 %v5129, %v5128
          %v5159 = vpack.c.b16 %v5131, %v5130
          %v5160 = vpack.c.b16 %v5133, %v5132
          %v5161 = vpack.c.b16 %v5135, %v5134
          %v5162 = vpack.c.b16 %v5137, %v5136
          %v5163 = vpack.c.b16 %v5139, %v5138
          %v5164 = vpack.c.b16 %v5141, %v5140
          %v5165 = vpack.c.b16 %v5143, %v5142
          %v5166 = vpack.c.b16 %v5145, %v5144
          %v5167 = vpack.c.b16 %v5147, %v5146
          %v5168 = vpack.c.b16 %v5149, %v5148
          %v5169 = vpack.c.b16 %v5151, %v5150
          %v5170 = vpack.c.b16 %v5153, %v5152
          %v5171 = vpack.c.b16 %v5155, %v5154
          %5188 = vmatprep.subr.bf16.mxu0 0
          %5189 = vmatpush1.bf16.msra.mxu0 %v5156
          %5190 = vmatprep.subr.bf16.mxu0 0
          %5191 = vmatpush1.bf16.msra.mxu0 %v5157
          %5192 = vmatprep.subr.bf16.mxu0 0
          %5193 = vmatpush1.bf16.msra.mxu0 %v5158
          %5194 = vmatprep.subr.bf16.mxu0 0
          %5195 = vmatpush1.bf16.msra.mxu0 %v5159
          %5196 = vmatprep.subr.bf16.mxu0 0
          %5197 = vmatpush1.bf16.msra.mxu0 %v5160
          %5198 = vmatprep.subr.bf16.mxu0 0
          %5199 = vmatpush1.bf16.msra.mxu0 %v5161
          %5200 = vmatprep.subr.bf16.mxu0 0
          %5201 = vmatpush1.bf16.msra.mxu0 %v5162
          %5202 = vmatprep.subr.bf16.mxu0 0
          %5203 = vmatpush1.bf16.msra.mxu0 %v5163
          %5204 = vmatprep.subr.bf16.mxu0 0
          %5205 = vmatpush1.bf16.msra.mxu0 %v5164
          %5206 = vmatprep.subr.bf16.mxu0 0
          %5207 = vmatpush1.bf16.msra.mxu0 %v5165
          %5208 = vmatprep.subr.bf16.mxu0 0
          %5209 = vmatpush1.bf16.msra.mxu0 %v5166
          %5210 = vmatprep.subr.bf16.mxu0 0
          %5211 = vmatpush1.bf16.msra.mxu0 %v5167
          %5212 = vmatprep.subr.bf16.mxu0 0
          %5213 = vmatpush1.bf16.msra.mxu0 %v5168
          %5214 = vmatprep.subr.bf16.mxu0 0
          %5215 = vmatpush1.bf16.msra.mxu0 %v5169
          %5216 = vmatprep.subr.bf16.mxu0 0
          %5217 = vmatpush1.bf16.msra.mxu0 %v5170
          %5218 = vmatprep.subr.bf16.mxu0 0
          %5219 = vmatpush1.bf16.msra.mxu0 %v5171
          %5220 = vmatprep.mubr.bf16.mxu0 %v5052
          %5221 = vmatmul.mubr.bf16.gmra.mrb[0].mxu0 %v5051
          %v5222 = vpop.f32.mrb[0].mxu0
          %v5223 = vadd.f32 %v5090, %v5222
          %v5224 = vpop.f32.mrb[0].mxu0
          %v5225 = vpop.f32.mrb[0].mxu0
          %v5226 = vpop.f32.mrb[0].mxu0
          %5227 = vdwg.mxu0
          %v5228 = vxor.u32 %v5223, 2147483648
          %v5229 = vmul.f32 %v5228, 1.442695
          %v5230 = vpow.pop %v5229
          %v5231 = vadd.f32 %v5230, 1.0
          %v5232 = vrcp.pop %v5231
          %v5233 = vmul.f32 1.0, %v5232
          %vm5234 = vcmask 74752
          %5235 = vst.msk [vmem:[#allocation9] sm:$0x3] %vm5234, %v5233
        $region108: #{vit_forward.1} parent=87 // pred_fallthru
          _
        // Predicated region
        $region109: #{vit_forward.1} parent=87 // pred_check
          %p5236 = pneg %p465
        $region110: #{vit_forward.1} parent=87 // pred_check_branch
          %5238 = sbr.rel (%p5236) target = $region112
        $region111: #{vit_forward.1} parent=87 // pred_region
          %s5240 = ssub.s32 32, 32
          %5241 = vsyncadd [#allocation5], %s5240
          %s5243 = sshll.u32 [#allocation9], 4
          %s5244 = int_to_ptr.vmem [resolvable:$true] %s5243
          %5246 = dma.vmem_to_hbm [thread:$0]  %s5244, 32, %s17, [#allocation5]
        $region112: #{vit_forward.1} parent=87 // pred_fallthru
          _
        // Predicated region
        $region113: #{vit_forward.1} parent=87 // pred_check
          %p5247 = pneg %p465
        $region114: #{vit_forward.1} parent=87 // pred_check_branch
          %5249 = sbr.rel (%p5247) target = $region116
        $region115: #{vit_forward.1} parent=87 // pred_region
          %5250 = dma.done [#allocation5], 32
        $region116: #{vit_forward.1} parent=87 // pred_fallthru
          _
      $region88: #{vit_forward.1} parent=5 // pred_fallthru
        _
      %p5251 = scmp.le.s32.totalorder 2, %s30
      // Predicated region
      $region117: #{vit_forward.1} parent=5 // pred_check
        %p5252 = pneg %p5251
      $region118: #{vit_forward.1} parent=5 // pred_check_branch
        %5254 = sbr.rel (%p5252) target = $region120
      $region119: #{vit_forward.1} parent=5 // pred_region
        %s5255 = ssub.s32 %s30, 2
      $region120: #{vit_forward.1} parent=5 // pred_fallthru
        _
    $region6: #{vit_forward.1} parent=1 // loop_footer
      %s34 = sadd.s32 1, %s30
    $region7: #{vit_forward.1} parent=1 // loop_footer_branch
      %29 = sbr.rel target = $region3
    $region8: #{vit_forward.1} parent=1 // loop_exit
      _
    %5256 = vsyncpa [#allocation4], 1
    %s5257 = scalar_lea.sflag [#allocation4], 1
    %5258 = vsyncpa %s5257, 1
    %5259 = vsyncpa [#allocation7], 1
    %s5260 = scalar_lea.sflag [#allocation7], 1
    %5261 = vsyncpa %s5260, 1
    %5262 = vsyncpa [#allocation5], 1
    %s5263 = scalar_lea.sflag [#allocation5], 1
    %5264 = vsyncpa %s5263, 1

</llo_original>
